<compile_context>
chip_gen: v7x
topology: tpu7x:2x2x1
jax: 0.10.0
libtpu: 0.0.40
codegen_flags: <defaults>
</compile_context>

<pallas_src>
import jax
import jax.numpy as jnp
from jax.experimental import pallas as pl
from jax.experimental.pallas import tpu as pltpu


def _vmem_capacity_bytes():
    """Per-TensorCore VMEM capacity; falls back to the v7x size (64 MiB), the
    smallest across supported generations, if the query is unavailable."""
    try:
        info = pltpu.get_tpu_info()
        cap = getattr(info, "vmem_capacity_bytes", None)
        if cap:
            return int(cap)
    except Exception:
        pass
    return 64 << 20


def _pick_batch_tile(batch, per_image_bytes, *, target_block_bytes, max_block_bytes):
    """Images per grid step.

    Goals for this HBM-bound kernel:
      * block of roughly `target_block_bytes` (>= ~2 MiB hits ~85% of HBM BW),
      * never exceed `max_block_bytes` (VMEM footprint cap),
      * keep an even grid of >= 4 steps when that does not shrink the block
        below ~2 MiB (v7x: 2 TensorCores x >= 2 pipelined steps each),
      * for awkward batch sizes (e.g. prime B), allow a non-divisor tile and
        let Pallas mask the tail block instead of collapsing to tiny blocks.
    """
    cap = max(1, min(batch, max_block_bytes // max(1, per_image_bytes)))
    target = max(1, min(cap, -(-target_block_bytes // max(1, per_image_bytes))))
    divisors = [d for d in range(1, cap + 1) if batch % d == 0]

    def score(d):
        return abs(d * per_image_bytes - target_block_bytes)

    big = 2 << 20
    for ok in (
        lambda d: d * per_image_bytes >= big and batch // d >= 4 and (batch // d) % 2 == 0,
        lambda d: d * per_image_bytes >= big and batch // d >= 4,
        lambda d: d * per_image_bytes >= big and batch // d >= 2,
    ):
        cand = [d for d in divisors if ok(d)]
        if cand:
            return min(cand, key=score)
    if divisors:
        best = min(divisors, key=lambda d: (score(d), -d))
        if best >= target or 4 * best * per_image_bytes >= target_block_bytes:
            return best
    return target  # non-divisor tile; Pallas masks the tail block


def se_attention(x, w1, w2, *, bt=None):
    """SEAttention forward.

    x : (B, C, H, W) NCHW, like PyTorch
    w1: (C//r, C)  first Linear weight (PyTorch (out, in) layout, bias=False)
    w2: (C, C//r)  second Linear weight (bias=False)
    """
    B, C, H, W = x.shape
    HW = H * W
    Cr, C_in = w1.shape
    assert C_in == C and w2.shape == (C, Cr)

    itemsize = jnp.dtype(x.dtype).itemsize
    per_image_bytes = C * HW * itemsize
    inv_hw = 1.0 / HW

    # ---- generation-aware VMEM budget (v5e/v6e 128 MiB, v7x 64 MiB per TC) ----
    vmem_budget = min((_vmem_capacity_bytes() * 3) // 4, 96 << 20)

    # ---- layout choice: flat path needs the (C*HW, C) one-hot + transpose
    # resident in VMEM (double-buffered by the pipeline). ----
    onehot_resident = 4 * (C * HW) * C * itemsize
    use_flat = onehot_resident <= max(8 << 20, vmem_budget // 3)
    # TODO(synk): very large-C / small-HW shapes (e.g. 512x7x7) take the NCHW
    # fallback whose HW(<128) lane width gives masked stores; padding HW to a
    # 128 multiple would cost an extra HBM pass, so it is not done here.

    w1t = jnp.transpose(w1).astype(jnp.float32)   # (C, Cr): h = y @ w1t
    w2t = jnp.transpose(w2).astype(jnp.float32)   # (Cr, C): s = sigmoid(h @ w2t)

    # ---- batch tile sized against the VMEM footprint:
    # ~= 2x in-block + 2x out-block + ~2 block-sized temporaries + residents ----
    mlp_resident = 2 * 2 * C * Cr * 4
    resident = mlp_resident + (onehot_resident if use_flat else 0)
    max_block_bytes = max(1 << 20, (vmem_budget - resident - (2 << 20)) // 6)
    target_block_bytes = min(8 << 20, max_block_bytes)
    if bt is None:
        bt = _pick_batch_tile(B, per_image_bytes,
                              target_block_bytes=target_block_bytes,
                              max_block_bytes=max_block_bytes)
    bt = max(1, min(int(bt), B))

    cparams = pltpu.CompilerParams(
        dimension_semantics=("parallel",),
        vmem_limit_bytes=int(vmem_budget),
    )

    if use_flat:
        # Keep the block's sublane dim 8-aligned unless it spans the whole batch
        # (full-dimension blocks are exempt from the (8,128) rule).
        if bt < B and bt % 8 != 0:
            bt = min(B, -(-bt // 8) * 8)
        grid = (pl.cdiv(B, bt),)

        xf = x.reshape(B, C * HW)                                    # contiguous, free
        lane_ch = jnp.arange(C * HW, dtype=jnp.int32) // HW
        ch = jnp.arange(C, dtype=jnp.int32)
        s_pool = (lane_ch[:, None] == ch[None, :]).astype(x.dtype)   # (C*HW, C)
        s_bcast = jnp.transpose(s_pool)                              # (C, C*HW)

        def kernel(x_ref, w1_ref, w2_ref, sp_ref, sb_ref, o_ref):
            x_blk = x_ref[...]                                       # (bt, C*HW)
            # Squeeze: per-channel mean as a one-hot MXU matmul, f32 accumulate.
            y = jnp.dot(x_blk, sp_ref[...],
                        preferred_element_type=jnp.float32) * inv_hw  # (bt, C)
            # Excite MLP: two fused matmuls.
            h = jnp.maximum(
                jnp.dot(y, w1_ref[...], preferred_element_type=jnp.float32), 0.0)
            s = jax.nn.sigmoid(
                jnp.dot(h, w2_ref[...], preferred_element_type=jnp.float32))  # (bt, C)
            # Broadcast per-channel scale onto lanes with the transposed one-hot
            # (MXU), then a single VPU multiply + lane-dense store.
            scale = jnp.dot(s.astype(x_blk.dtype), sb_ref[...],
                            preferred_element_type=jnp.float32)      # (bt, C*HW)
            o_ref[...] = (x_blk * scale).astype(o_ref.dtype)

        out = pl.pallas_call(
            kernel,
            out_shape=jax.ShapeDtypeStruct((B, C * HW), x.dtype),
            grid_spec=pltpu.PrefetchScalarGridSpec(
                num_scalar_prefetch=0,
                grid=grid,
                in_specs=[
                    pl.BlockSpec((bt, C * HW), lambda b: (b, 0)),    # bt images/step
                    pl.BlockSpec((C, Cr), lambda b: (0, 0)),         # W1^T (resident)
                    pl.BlockSpec((Cr, C), lambda b: (0, 0)),         # W2^T (resident)
                    pl.BlockSpec((C * HW, C), lambda b: (0, 0)),     # one-hot pool
                    pl.BlockSpec((C, C * HW), lambda b: (0, 0)),     # one-hot broadcast
                ],
                out_specs=pl.BlockSpec((bt, C * HW), lambda b: (b, 0)),
            ),
            compiler_params=cparams,
        )(xf, w1t, w2t, s_pool, s_bcast)
        return out.reshape(B, C, H, W)

    # -------- fallback: (bt, C, HW) blocks, reduction-based pooling --------
    grid = (pl.cdiv(B, bt),)
    x3 = x.reshape(B, C, HW)

    def kernel(x_ref, w1_ref, w2_ref, o_ref):
        x_blk = x_ref[...]                                           # (bt, C, HW)
        y = jnp.sum(x_blk, axis=2, dtype=jnp.float32) * inv_hw       # (bt, C)
        h = jnp.maximum(
            jnp.dot(y, w1_ref[...], preferred_element_type=jnp.float32), 0.0)
        s = jax.nn.sigmoid(
            jnp.dot(h, w2_ref[...], preferred_element_type=jnp.float32))
        o_ref[...] = (x_blk * s[:, :, None]).astype(o_ref.dtype)

    out = pl.pallas_call(
        kernel,
        out_shape=jax.ShapeDtypeStruct((B, C, HW), x.dtype),
        grid_spec=pltpu.PrefetchScalarGridSpec(
            num_scalar_prefetch=0,
            grid=grid,
            in_specs=[
                pl.BlockSpec((bt, C, HW), lambda b: (b, 0, 0)),
                pl.BlockSpec((C, Cr), lambda b: (0, 0)),
                pl.BlockSpec((Cr, C), lambda b: (0, 0)),
            ],
            out_specs=pl.BlockSpec((bt, C, HW), lambda b: (b, 0, 0)),
        ),
        compiler_params=cparams,
    )(x3, w1t, w2t)
    return out.reshape(B, C, H, W)


def se_attention_ref(x, w1, w2):
    """Pure-JAX reference mirroring the PyTorch forward."""
    y = jnp.mean(x, axis=(2, 3))                 # (B, C)
    h = jnp.maximum(y @ w1.T, 0.0)               # (B, C//r)
    s = jax.nn.sigmoid(h @ w2.T)                 # (B, C)
    return x * s[:, :, None, None]


if __name__ == "__main__":
    # Small shapes consistent with the module: channel=64, reduction=16.
    B, C, H, W = 8, 64, 8, 8
    reduction = 16
    Cr = C // reduction

    key = jax.random.PRNGKey(0)
    kx, k1, k2 = jax.random.split(key, 3)
    x = jax.random.normal(kx, (B, C, H, W), dtype=jnp.float32)
    # PyTorch Linear layout: (out_features, in_features), bias=False per the spec.
    w1 = jax.random.normal(k1, (Cr, C), dtype=jnp.float32) * 0.1
    w2 = jax.random.normal(k2, (C, Cr), dtype=jnp.float32) * 0.1

    out = jax.block_until_ready(se_attention(x, w1, w2))
    ref = se_attention_ref(x, w1, w2)

    assert out.shape == (B, C, H, W)
    assert jnp.allclose(out, ref, atol=2e-5, rtol=2e-5), "mismatch vs reference"

    print("KERNEL_OK")
</pallas_src>

<mosaic_0001>
module attributes {stable_mosaic.version = 11 : i64} {
  func.func @kernel(%arg0: i32, %arg1: memref<8x4096xf32, #tpu.memory_space<vmem>>, %arg2: memref<64x4xf32, #tpu.memory_space<vmem>>, %arg3: memref<4x64xf32, #tpu.memory_space<vmem>>, %arg4: memref<4096x64xf32, #tpu.memory_space<vmem>>, %arg5: memref<64x4096xf32, #tpu.memory_space<vmem>>, %arg6: memref<8x4096xf32, #tpu.memory_space<vmem>>) attributes {dimension_semantics = [#tpu.dimension_semantics<parallel>], iteration_bounds = array<i64: 1>, scalar_prefetch = 0 : i64, scratch_operands = 0 : i64, tpu.core_type = #tpu.core_type<tc>, window_params = [{transform_indices = @transform_0, window_bounds = array<i64: 8, 4096>}, {pipeline_mode = #tpu.pipeline_mode<synchronous>, transform_indices = @transform_1, window_bounds = array<i64: 64, 4>}, {pipeline_mode = #tpu.pipeline_mode<synchronous>, transform_indices = @transform_2, window_bounds = array<i64: 4, 64>}, {pipeline_mode = #tpu.pipeline_mode<synchronous>, transform_indices = @transform_3, window_bounds = array<i64: 4096, 64>}, {pipeline_mode = #tpu.pipeline_mode<synchronous>, transform_indices = @transform_4, window_bounds = array<i64: 64, 4096>}, {transform_indices = @transform_5, window_bounds = array<i64: 8, 4096>}]} {
    %c0 = arith.constant 0 : index
    %c0_0 = arith.constant 0 : index
    %0 = vector.load %arg1[%c0, %c0_0] : memref<8x4096xf32, #tpu.memory_space<vmem>>, vector<8x4096xf32>
    %c0_1 = arith.constant 0 : index
    %c0_2 = arith.constant 0 : index
    %1 = vector.load %arg4[%c0_1, %c0_2] : memref<4096x64xf32, #tpu.memory_space<vmem>>, vector<4096x64xf32>
    %cst = arith.constant dense<0.000000e+00> : vector<8x64xf32>
    %2 = tpu.matmul %0, %1, %cst {dimension_numbers = #tpu.dot_dimension_numbers<[1], [0], [0], [1], [0, 0, 1, 1], [], []>} : vector<8x4096xf32>, vector<4096x64xf32>, vector<8x64xf32> -> vector<8x64xf32>
    %cst_3 = arith.constant 1.562500e-02 : f32
    %3 = vector.broadcast %cst_3 : f32 to vector<8x64xf32>
    %4 = arith.mulf %2, %3 : vector<8x64xf32>
    %c0_4 = arith.constant 0 : index
    %c0_5 = arith.constant 0 : index
    %5 = vector.load %arg2[%c0_4, %c0_5] : memref<64x4xf32, #tpu.memory_space<vmem>>, vector<64x4xf32>
    %cst_6 = arith.constant dense<0.000000e+00> : vector<8x4xf32>
    %6 = tpu.matmul %4, %5, %cst_6 {dimension_numbers = #tpu.dot_dimension_numbers<[1], [0], [0], [1], [0, 0, 1, 1], [], []>} : vector<8x64xf32>, vector<64x4xf32>, vector<8x4xf32> -> vector<8x4xf32>
    %cst_7 = arith.constant 0.000000e+00 : f32
    %7 = vector.broadcast %cst_7 : f32 to vector<8x4xf32>
    %8 = arith.maximumf %6, %7 : vector<8x4xf32>
    %c0_8 = arith.constant 0 : index
    %c0_9 = arith.constant 0 : index
    %9 = vector.load %arg3[%c0_8, %c0_9] : memref<4x64xf32, #tpu.memory_space<vmem>>, vector<4x64xf32>
    %cst_10 = arith.constant dense<0.000000e+00> : vector<8x64xf32>
    %10 = tpu.matmul %8, %9, %cst_10 {dimension_numbers = #tpu.dot_dimension_numbers<[1], [0], [0], [1], [0, 0, 1, 1], [], []>} : vector<8x4xf32>, vector<4x64xf32>, vector<8x64xf32> -> vector<8x64xf32>
    %11 = arith.negf %10 : vector<8x64xf32>
    %12 = math.exp %11 : vector<8x64xf32>
    %cst_11 = arith.constant 1.000000e+00 : f32
    %13 = vector.broadcast %cst_11 : f32 to vector<8x64xf32>
    %14 = arith.addf %13, %12 : vector<8x64xf32>
    %15 = arith.divf %13, %14 : vector<8x64xf32>
    %c0_12 = arith.constant 0 : index
    %c0_13 = arith.constant 0 : index
    %16 = vector.load %arg5[%c0_12, %c0_13] : memref<64x4096xf32, #tpu.memory_space<vmem>>, vector<64x4096xf32>
    %cst_14 = arith.constant dense<0.000000e+00> : vector<8x4096xf32>
    %17 = tpu.matmul %15, %16, %cst_14 {dimension_numbers = #tpu.dot_dimension_numbers<[1], [0], [0], [1], [0, 0, 1, 1], [], []>} : vector<8x64xf32>, vector<64x4096xf32>, vector<8x4096xf32> -> vector<8x4096xf32>
    %18 = arith.mulf %0, %17 : vector<8x4096xf32>
    %c0_15 = arith.constant 0 : index
    %c0_16 = arith.constant 0 : index
    %19 = vector.load %arg6[%c0_15, %c0_16] : memref<8x4096xf32, #tpu.memory_space<vmem>>, vector<8x4096xf32>
    tpu.vector_store %arg6[%c0_15, %c0_16], %18 {strides = array<i32>} : memref<8x4096xf32, #tpu.memory_space<vmem>>, vector<8x4096xf32>,
    return
  }
  func.func @transform_0(%arg0: i32) -> (i32, i32) {
    %c0_i32 = arith.constant 0 : i32
    %c0_i32_0 = arith.constant 0 : i32
    return %arg0, %c0_i32 : i32, i32
  }
  func.func @transform_1(%arg0: i32) -> (i32, i32) {
    %c0_i32 = arith.constant 0 : i32
    %c0_i32_0 = arith.constant 0 : i32
    %c0_i32_1 = arith.constant 0 : i32
    return %c0_i32, %c0_i32_0 : i32, i32
  }
  func.func @transform_2(%arg0: i32) -> (i32, i32) {
    %c0_i32 = arith.constant 0 : i32
    %c0_i32_0 = arith.constant 0 : i32
    %c0_i32_1 = arith.constant 0 : i32
    return %c0_i32, %c0_i32_0 : i32, i32
  }
  func.func @transform_3(%arg0: i32) -> (i32, i32) {
    %c0_i32 = arith.constant 0 : i32
    %c0_i32_0 = arith.constant 0 : i32
    %c0_i32_1 = arith.constant 0 : i32
    return %c0_i32, %c0_i32_0 : i32, i32
  }
  func.func @transform_4(%arg0: i32) -> (i32, i32) {
    %c0_i32 = arith.constant 0 : i32
    %c0_i32_0 = arith.constant 0 : i32
    %c0_i32_1 = arith.constant 0 : i32
    return %c0_i32, %c0_i32_0 : i32, i32
  }
  func.func @transform_5(%arg0: i32) -> (i32, i32) {
    %c0_i32 = arith.constant 0 : i32
    %c0_i32_0 = arith.constant 0 : i32
    return %arg0, %c0_i32 : i32, i32
  }
}

</mosaic_0001>

<llo_original>
// kernel: tpu_custom_call.1
$region0: #{tpu_custom_call.1}
  #allocation0 [shape = 'u32[]', space=smem, size = 0x4, offset = 0x4, fixed_abs, tag = 'smem constant byte address 0x4 - core index']
  #allocation1 [shape = 'u32[144,128]{1,0:T(1,128)}', space=vmem, size = 0x12000, scoped, tag = 'internal scratch']
  %s0 = inlined_call_operand.vmem [shape: f32[8,4096], index: 0, kind: input, shape index: {}]
  %s1 = inlined_call_operand.vmem [shape: f32[64,4], index: 1, kind: input, shape index: {}]
  %s2 = inlined_call_operand.vmem [shape: f32[4,64], index: 2, kind: input, shape index: {}]
  %s3 = inlined_call_operand.vmem [shape: f32[4096,64], index: 3, kind: input, shape index: {}]
  %s4 = inlined_call_operand.vmem [shape: f32[64,4096], index: 4, kind: input, shape index: {}]
  %s5 = inlined_call_operand.hbm [shape: f32[8,4096], index: 5, kind: output, shape index: {}]
  %s6 = sld [smem:[#allocation0]]
  $region30: #{tpu_custom_call.1} parent=0
    _
  %s8 = ssub.s32 1, %s6
  %s9 = scalar_select 0, %s8, %s6
  $region1: #{tpu_custom_call.1} parent=0
    #allocation2 [shape = 'u8[131072]{0}', space=vmem, size = 0x20000, scoped, tag = 'output window, operand 0, single buffered']
    #allocation3 [shape = 's32[1]{0}', space=sflag, size = 0x4, scoped, tag = 'scoped memory for tpu_custom_call.1']
    %10 = vsyncpa [#allocation3], 0
    // Predicated region
    $region2: #{tpu_custom_call.1} parent=1 // pred_check
      _
    $region3: #{tpu_custom_call.1} parent=1 // pred_check_branch
      %12 = sbr.rel (0) target = $region5
    $region4: #{tpu_custom_call.1} parent=1 // pred_region
      _
    $region5: #{tpu_custom_call.1} parent=1 // pred_fallthru
      _
    // Predicated region
    $region6: #{tpu_custom_call.1} parent=1 // pred_check
      _
    $region7: #{tpu_custom_call.1} parent=1 // pred_check_branch
      %14 = sbr.rel (0) target = $region9
    $region8: #{tpu_custom_call.1} parent=1 // pred_region
      _
    $region9: #{tpu_custom_call.1} parent=1 // pred_fallthru
      _
    // Predicated region
    $region10: #{tpu_custom_call.1} parent=1 // pred_check
      _
    $region11: #{tpu_custom_call.1} parent=1 // pred_check_branch
      %16 = sbr.rel (0) target = $region13
    $region12: #{tpu_custom_call.1} parent=1 // pred_region
      _
    $region13: #{tpu_custom_call.1} parent=1 // pred_fallthru
      _
    // Predicated region
    $region14: #{tpu_custom_call.1} parent=1 // pred_check
      _
    $region15: #{tpu_custom_call.1} parent=1 // pred_check_branch
      %18 = sbr.rel (0) target = $region17
    $region16: #{tpu_custom_call.1} parent=1 // pred_region
      _
    $region17: #{tpu_custom_call.1} parent=1 // pred_fallthru
      _
    // Predicated region
    $region18: #{tpu_custom_call.1} parent=1 // pred_check
      _
    $region19: #{tpu_custom_call.1} parent=1 // pred_check_branch
      %20 = sbr.rel (0) target = $region21
    $region20: #{tpu_custom_call.1} parent=1 // pred_region
      _
    $region21: #{tpu_custom_call.1} parent=1 // pred_fallthru
      _
    %v21 = vld [vmem:[%s0] sm:$0xff]
    %v22 = vld [vmem:[%s0 + $0x8] sm:$0xff]
    %v23 = vld [vmem:[%s0 + $0x10] sm:$0xff]
    %v24 = vld [vmem:[%s0 + $0x18] sm:$0xff]
    %v25 = vld [vmem:[%s0 + $0x20] sm:$0xff]
    %v26 = vld [vmem:[%s0 + $0x28] sm:$0xff]
    %v27 = vld [vmem:[%s0 + $0x30] sm:$0xff]
    %v28 = vld [vmem:[%s0 + $0x38] sm:$0xff]
    %v29 = vld [vmem:[%s0 + $0x40] sm:$0xff]
    %v30 = vld [vmem:[%s0 + $0x48] sm:$0xff]
    %v31 = vld [vmem:[%s0 + $0x50] sm:$0xff]
    %v32 = vld [vmem:[%s0 + $0x58] sm:$0xff]
    %v33 = vld [vmem:[%s0 + $0x60] sm:$0xff]
    %v34 = vld [vmem:[%s0 + $0x68] sm:$0xff]
    %v35 = vld [vmem:[%s0 + $0x70] sm:$0xff]
    %v36 = vld [vmem:[%s0 + $0x78] sm:$0xff]
    %v37 = vld [vmem:[%s0 + $0x80] sm:$0xff]
    %v38 = vld [vmem:[%s0 + $0x88] sm:$0xff]
    %v39 = vld [vmem:[%s0 + $0x90] sm:$0xff]
    %v40 = vld [vmem:[%s0 + $0x98] sm:$0xff]
    %v41 = vld [vmem:[%s0 + $0xa0] sm:$0xff]
    %v42 = vld [vmem:[%s0 + $0xa8] sm:$0xff]
    %v43 = vld [vmem:[%s0 + $0xb0] sm:$0xff]
    %v44 = vld [vmem:[%s0 + $0xb8] sm:$0xff]
    %v45 = vld [vmem:[%s0 + $0xc0] sm:$0xff]
    %v46 = vld [vmem:[%s0 + $0xc8] sm:$0xff]
    %v47 = vld [vmem:[%s0 + $0xd0] sm:$0xff]
    %v48 = vld [vmem:[%s0 + $0xd8] sm:$0xff]
    %v49 = vld [vmem:[%s0 + $0xe0] sm:$0xff]
    %v50 = vld [vmem:[%s0 + $0xe8] sm:$0xff]
    %v51 = vld [vmem:[%s0 + $0xf0] sm:$0xff]
    %v52 = vld [vmem:[%s0 + $0xf8] sm:$0xff]
    %v53 = vld [vmem:[%s3] sm:$0xff]
    %v54 = vld [vmem:[%s3 + $0x8] sm:$0xff]
    %v55 = vld [vmem:[%s3 + $0x10] sm:$0xff]
    %v56 = vld [vmem:[%s3 + $0x18] sm:$0xff]
    %v57 = vld [vmem:[%s3 + $0x20] sm:$0xff]
    %v58 = vld [vmem:[%s3 + $0x28] sm:$0xff]
    %v59 = vld [vmem:[%s3 + $0x30] sm:$0xff]
    %v60 = vld [vmem:[%s3 + $0x38] sm:$0xff]
    %v61 = vld [vmem:[%s3 + $0x40] sm:$0xff]
    %v62 = vld [vmem:[%s3 + $0x48] sm:$0xff]
    %v63 = vld [vmem:[%s3 + $0x50] sm:$0xff]
    %v64 = vld [vmem:[%s3 + $0x58] sm:$0xff]
    %v65 = vld [vmem:[%s3 + $0x60] sm:$0xff]
    %v66 = vld [vmem:[%s3 + $0x68] sm:$0xff]
    %v67 = vld [vmem:[%s3 + $0x70] sm:$0xff]
    %v68 = vld [vmem:[%s3 + $0x78] sm:$0xff]
    %v69 = vld [vmem:[%s3 + $0x80] sm:$0xff]
    %v70 = vld [vmem:[%s3 + $0x88] sm:$0xff]
    %v71 = vld [vmem:[%s3 + $0x90] sm:$0xff]
    %v72 = vld [vmem:[%s3 + $0x98] sm:$0xff]
    %v73 = vld [vmem:[%s3 + $0xa0] sm:$0xff]
    %v74 = vld [vmem:[%s3 + $0xa8] sm:$0xff]
    %v75 = vld [vmem:[%s3 + $0xb0] sm:$0xff]
    %v76 = vld [vmem:[%s3 + $0xb8] sm:$0xff]
    %v77 = vld [vmem:[%s3 + $0xc0] sm:$0xff]
    %v78 = vld [vmem:[%s3 + $0xc8] sm:$0xff]
    %v79 = vld [vmem:[%s3 + $0xd0] sm:$0xff]
    %v80 = vld [vmem:[%s3 + $0xd8] sm:$0xff]
    %v81 = vld [vmem:[%s3 + $0xe0] sm:$0xff]
    %v82 = vld [vmem:[%s3 + $0xe8] sm:$0xff]
    %v83 = vld [vmem:[%s3 + $0xf0] sm:$0xff]
    %v84 = vld [vmem:[%s3 + $0xf8] sm:$0xff]
    %v85 = vld [vmem:[%s3 + $0x100] sm:$0xff]
    %v86 = vld [vmem:[%s3 + $0x108] sm:$0xff]
    %v87 = vld [vmem:[%s3 + $0x110] sm:$0xff]
    %v88 = vld [vmem:[%s3 + $0x118] sm:$0xff]
    %v89 = vld [vmem:[%s3 + $0x120] sm:$0xff]
    %v90 = vld [vmem:[%s3 + $0x128] sm:$0xff]
    %v91 = vld [vmem:[%s3 + $0x130] sm:$0xff]
    %v92 = vld [vmem:[%s3 + $0x138] sm:$0xff]
    %v93 = vld [vmem:[%s3 + $0x140] sm:$0xff]
    %v94 = vld [vmem:[%s3 + $0x148] sm:$0xff]
    %v95 = vld [vmem:[%s3 + $0x150] sm:$0xff]
    %v96 = vld [vmem:[%s3 + $0x158] sm:$0xff]
    %v97 = vld [vmem:[%s3 + $0x160] sm:$0xff]
    %v98 = vld [vmem:[%s3 + $0x168] sm:$0xff]
    %v99 = vld [vmem:[%s3 + $0x170] sm:$0xff]
    %v100 = vld [vmem:[%s3 + $0x178] sm:$0xff]
    %v101 = vld [vmem:[%s3 + $0x180] sm:$0xff]
    %v102 = vld [vmem:[%s3 + $0x188] sm:$0xff]
    %v103 = vld [vmem:[%s3 + $0x190] sm:$0xff]
    %v104 = vld [vmem:[%s3 + $0x198] sm:$0xff]
    %v105 = vld [vmem:[%s3 + $0x1a0] sm:$0xff]
    %v106 = vld [vmem:[%s3 + $0x1a8] sm:$0xff]
    %v107 = vld [vmem:[%s3 + $0x1b0] sm:$0xff]
    %v108 = vld [vmem:[%s3 + $0x1b8] sm:$0xff]
    %v109 = vld [vmem:[%s3 + $0x1c0] sm:$0xff]
    %v110 = vld [vmem:[%s3 + $0x1c8] sm:$0xff]
    %v111 = vld [vmem:[%s3 + $0x1d0] sm:$0xff]
    %v112 = vld [vmem:[%s3 + $0x1d8] sm:$0xff]
    %v113 = vld [vmem:[%s3 + $0x1e0] sm:$0xff]
    %v114 = vld [vmem:[%s3 + $0x1e8] sm:$0xff]
    %v115 = vld [vmem:[%s3 + $0x1f0] sm:$0xff]
    %v116 = vld [vmem:[%s3 + $0x1f8] sm:$0xff]
    %v117 = vld [vmem:[%s3 + $0x200] sm:$0xff]
    %v118 = vld [vmem:[%s3 + $0x208] sm:$0xff]
    %v119 = vld [vmem:[%s3 + $0x210] sm:$0xff]
    %v120 = vld [vmem:[%s3 + $0x218] sm:$0xff]
    %v121 = vld [vmem:[%s3 + $0x220] sm:$0xff]
    %v122 = vld [vmem:[%s3 + $0x228] sm:$0xff]
    %v123 = vld [vmem:[%s3 + $0x230] sm:$0xff]
    %v124 = vld [vmem:[%s3 + $0x238] sm:$0xff]
    %v125 = vld [vmem:[%s3 + $0x240] sm:$0xff]
    %v126 = vld [vmem:[%s3 + $0x248] sm:$0xff]
    %v127 = vld [vmem:[%s3 + $0x250] sm:$0xff]
    %v128 = vld [vmem:[%s3 + $0x258] sm:$0xff]
    %v129 = vld [vmem:[%s3 + $0x260] sm:$0xff]
    %v130 = vld [vmem:[%s3 + $0x268] sm:$0xff]
    %v131 = vld [vmem:[%s3 + $0x270] sm:$0xff]
    %v132 = vld [vmem:[%s3 + $0x278] sm:$0xff]
    %v133 = vld [vmem:[%s3 + $0x280] sm:$0xff]
    %v134 = vld [vmem:[%s3 + $0x288] sm:$0xff]
    %v135 = vld [vmem:[%s3 + $0x290] sm:$0xff]
    %v136 = vld [vmem:[%s3 + $0x298] sm:$0xff]
    %v137 = vld [vmem:[%s3 + $0x2a0] sm:$0xff]
    %v138 = vld [vmem:[%s3 + $0x2a8] sm:$0xff]
    %v139 = vld [vmem:[%s3 + $0x2b0] sm:$0xff]
    %v140 = vld [vmem:[%s3 + $0x2b8] sm:$0xff]
    %v141 = vld [vmem:[%s3 + $0x2c0] sm:$0xff]
    %v142 = vld [vmem:[%s3 + $0x2c8] sm:$0xff]
    %v143 = vld [vmem:[%s3 + $0x2d0] sm:$0xff]
    %v144 = vld [vmem:[%s3 + $0x2d8] sm:$0xff]
    %v145 = vld [vmem:[%s3 + $0x2e0] sm:$0xff]
    %v146 = vld [vmem:[%s3 + $0x2e8] sm:$0xff]
    %v147 = vld [vmem:[%s3 + $0x2f0] sm:$0xff]
    %v148 = vld [vmem:[%s3 + $0x2f8] sm:$0xff]
    %v149 = vld [vmem:[%s3 + $0x300] sm:$0xff]
    %v150 = vld [vmem:[%s3 + $0x308] sm:$0xff]
    %v151 = vld [vmem:[%s3 + $0x310] sm:$0xff]
    %v152 = vld [vmem:[%s3 + $0x318] sm:$0xff]
    %v153 = vld [vmem:[%s3 + $0x320] sm:$0xff]
    %v154 = vld [vmem:[%s3 + $0x328] sm:$0xff]
    %v155 = vld [vmem:[%s3 + $0x330] sm:$0xff]
    %v156 = vld [vmem:[%s3 + $0x338] sm:$0xff]
    %v157 = vld [vmem:[%s3 + $0x340] sm:$0xff]
    %v158 = vld [vmem:[%s3 + $0x348] sm:$0xff]
    %v159 = vld [vmem:[%s3 + $0x350] sm:$0xff]
    %v160 = vld [vmem:[%s3 + $0x358] sm:$0xff]
    %v161 = vld [vmem:[%s3 + $0x360] sm:$0xff]
    %v162 = vld [vmem:[%s3 + $0x368] sm:$0xff]
    %v163 = vld [vmem:[%s3 + $0x370] sm:$0xff]
    %v164 = vld [vmem:[%s3 + $0x378] sm:$0xff]
    %v165 = vld [vmem:[%s3 + $0x380] sm:$0xff]
    %v166 = vld [vmem:[%s3 + $0x388] sm:$0xff]
    %v167 = vld [vmem:[%s3 + $0x390] sm:$0xff]
    %v168 = vld [vmem:[%s3 + $0x398] sm:$0xff]
    %v169 = vld [vmem:[%s3 + $0x3a0] sm:$0xff]
    %v170 = vld [vmem:[%s3 + $0x3a8] sm:$0xff]
    %v171 = vld [vmem:[%s3 + $0x3b0] sm:$0xff]
    %v172 = vld [vmem:[%s3 + $0x3b8] sm:$0xff]
    %v173 = vld [vmem:[%s3 + $0x3c0] sm:$0xff]
    %v174 = vld [vmem:[%s3 + $0x3c8] sm:$0xff]
    %v175 = vld [vmem:[%s3 + $0x3d0] sm:$0xff]
    %v176 = vld [vmem:[%s3 + $0x3d8] sm:$0xff]
    %v177 = vld [vmem:[%s3 + $0x3e0] sm:$0xff]
    %v178 = vld [vmem:[%s3 + $0x3e8] sm:$0xff]
    %v179 = vld [vmem:[%s3 + $0x3f0] sm:$0xff]
    %v180 = vld [vmem:[%s3 + $0x3f8] sm:$0xff]
    %v181 = vld [vmem:[%s3 + $0x400] sm:$0xff]
    %v182 = vld [vmem:[%s3 + $0x408] sm:$0xff]
    %v183 = vld [vmem:[%s3 + $0x410] sm:$0xff]
    %v184 = vld [vmem:[%s3 + $0x418] sm:$0xff]
    %v185 = vld [vmem:[%s3 + $0x420] sm:$0xff]
    %v186 = vld [vmem:[%s3 + $0x428] sm:$0xff]
    %v187 = vld [vmem:[%s3 + $0x430] sm:$0xff]
    %v188 = vld [vmem:[%s3 + $0x438] sm:$0xff]
    %v189 = vld [vmem:[%s3 + $0x440] sm:$0xff]
    %v190 = vld [vmem:[%s3 + $0x448] sm:$0xff]
    %v191 = vld [vmem:[%s3 + $0x450] sm:$0xff]
    %v192 = vld [vmem:[%s3 + $0x458] sm:$0xff]
    %v193 = vld [vmem:[%s3 + $0x460] sm:$0xff]
    %v194 = vld [vmem:[%s3 + $0x468] sm:$0xff]
    %v195 = vld [vmem:[%s3 + $0x470] sm:$0xff]
    %v196 = vld [vmem:[%s3 + $0x478] sm:$0xff]
    %v197 = vld [vmem:[%s3 + $0x480] sm:$0xff]
    %v198 = vld [vmem:[%s3 + $0x488] sm:$0xff]
    %v199 = vld [vmem:[%s3 + $0x490] sm:$0xff]
    %v200 = vld [vmem:[%s3 + $0x498] sm:$0xff]
    %v201 = vld [vmem:[%s3 + $0x4a0] sm:$0xff]
    %v202 = vld [vmem:[%s3 + $0x4a8] sm:$0xff]
    %v203 = vld [vmem:[%s3 + $0x4b0] sm:$0xff]
    %v204 = vld [vmem:[%s3 + $0x4b8] sm:$0xff]
    %v205 = vld [vmem:[%s3 + $0x4c0] sm:$0xff]
    %v206 = vld [vmem:[%s3 + $0x4c8] sm:$0xff]
    %v207 = vld [vmem:[%s3 + $0x4d0] sm:$0xff]
    %v208 = vld [vmem:[%s3 + $0x4d8] sm:$0xff]
    %v209 = vld [vmem:[%s3 + $0x4e0] sm:$0xff]
    %v210 = vld [vmem:[%s3 + $0x4e8] sm:$0xff]
    %v211 = vld [vmem:[%s3 + $0x4f0] sm:$0xff]
    %v212 = vld [vmem:[%s3 + $0x4f8] sm:$0xff]
    %v213 = vld [vmem:[%s3 + $0x500] sm:$0xff]
    %v214 = vld [vmem:[%s3 + $0x508] sm:$0xff]
    %v215 = vld [vmem:[%s3 + $0x510] sm:$0xff]
    %v216 = vld [vmem:[%s3 + $0x518] sm:$0xff]
    %v217 = vld [vmem:[%s3 + $0x520] sm:$0xff]
    %v218 = vld [vmem:[%s3 + $0x528] sm:$0xff]
    %v219 = vld [vmem:[%s3 + $0x530] sm:$0xff]
    %v220 = vld [vmem:[%s3 + $0x538] sm:$0xff]
    %v221 = vld [vmem:[%s3 + $0x540] sm:$0xff]
    %v222 = vld [vmem:[%s3 + $0x548] sm:$0xff]
    %v223 = vld [vmem:[%s3 + $0x550] sm:$0xff]
    %v224 = vld [vmem:[%s3 + $0x558] sm:$0xff]
    %v225 = vld [vmem:[%s3 + $0x560] sm:$0xff]
    %v226 = vld [vmem:[%s3 + $0x568] sm:$0xff]
    %v227 = vld [vmem:[%s3 + $0x570] sm:$0xff]
    %v228 = vld [vmem:[%s3 + $0x578] sm:$0xff]
    %v229 = vld [vmem:[%s3 + $0x580] sm:$0xff]
    %v230 = vld [vmem:[%s3 + $0x588] sm:$0xff]
    %v231 = vld [vmem:[%s3 + $0x590] sm:$0xff]
    %v232 = vld [vmem:[%s3 + $0x598] sm:$0xff]
    %v233 = vld [vmem:[%s3 + $0x5a0] sm:$0xff]
    %v234 = vld [vmem:[%s3 + $0x5a8] sm:$0xff]
    %v235 = vld [vmem:[%s3 + $0x5b0] sm:$0xff]
    %v236 = vld [vmem:[%s3 + $0x5b8] sm:$0xff]
    %v237 = vld [vmem:[%s3 + $0x5c0] sm:$0xff]
    %v238 = vld [vmem:[%s3 + $0x5c8] sm:$0xff]
    %v239 = vld [vmem:[%s3 + $0x5d0] sm:$0xff]
    %v240 = vld [vmem:[%s3 + $0x5d8] sm:$0xff]
    %v241 = vld [vmem:[%s3 + $0x5e0] sm:$0xff]
    %v242 = vld [vmem:[%s3 + $0x5e8] sm:$0xff]
    %v243 = vld [vmem:[%s3 + $0x5f0] sm:$0xff]
    %v244 = vld [vmem:[%s3 + $0x5f8] sm:$0xff]
    %v245 = vld [vmem:[%s3 + $0x600] sm:$0xff]
    %v246 = vld [vmem:[%s3 + $0x608] sm:$0xff]
    %v247 = vld [vmem:[%s3 + $0x610] sm:$0xff]
    %v248 = vld [vmem:[%s3 + $0x618] sm:$0xff]
    %v249 = vld [vmem:[%s3 + $0x620] sm:$0xff]
    %v250 = vld [vmem:[%s3 + $0x628] sm:$0xff]
    %v251 = vld [vmem:[%s3 + $0x630] sm:$0xff]
    %v252 = vld [vmem:[%s3 + $0x638] sm:$0xff]
    %v253 = vld [vmem:[%s3 + $0x640] sm:$0xff]
    %v254 = vld [vmem:[%s3 + $0x648] sm:$0xff]
    %v255 = vld [vmem:[%s3 + $0x650] sm:$0xff]
    %v256 = vld [vmem:[%s3 + $0x658] sm:$0xff]
    %v257 = vld [vmem:[%s3 + $0x660] sm:$0xff]
    %v258 = vld [vmem:[%s3 + $0x668] sm:$0xff]
    %v259 = vld [vmem:[%s3 + $0x670] sm:$0xff]
    %v260 = vld [vmem:[%s3 + $0x678] sm:$0xff]
    %v261 = vld [vmem:[%s3 + $0x680] sm:$0xff]
    %v262 = vld [vmem:[%s3 + $0x688] sm:$0xff]
    %v263 = vld [vmem:[%s3 + $0x690] sm:$0xff]
    %v264 = vld [vmem:[%s3 + $0x698] sm:$0xff]
    %v265 = vld [vmem:[%s3 + $0x6a0] sm:$0xff]
    %v266 = vld [vmem:[%s3 + $0x6a8] sm:$0xff]
    %v267 = vld [vmem:[%s3 + $0x6b0] sm:$0xff]
    %v268 = vld [vmem:[%s3 + $0x6b8] sm:$0xff]
    %v269 = vld [vmem:[%s3 + $0x6c0] sm:$0xff]
    %v270 = vld [vmem:[%s3 + $0x6c8] sm:$0xff]
    %v271 = vld [vmem:[%s3 + $0x6d0] sm:$0xff]
    %v272 = vld [vmem:[%s3 + $0x6d8] sm:$0xff]
    %v273 = vld [vmem:[%s3 + $0x6e0] sm:$0xff]
    %v274 = vld [vmem:[%s3 + $0x6e8] sm:$0xff]
    %v275 = vld [vmem:[%s3 + $0x6f0] sm:$0xff]
    %v276 = vld [vmem:[%s3 + $0x6f8] sm:$0xff]
    %v277 = vld [vmem:[%s3 + $0x700] sm:$0xff]
    %v278 = vld [vmem:[%s3 + $0x708] sm:$0xff]
    %v279 = vld [vmem:[%s3 + $0x710] sm:$0xff]
    %v280 = vld [vmem:[%s3 + $0x718] sm:$0xff]
    %v281 = vld [vmem:[%s3 + $0x720] sm:$0xff]
    %v282 = vld [vmem:[%s3 + $0x728] sm:$0xff]
    %v283 = vld [vmem:[%s3 + $0x730] sm:$0xff]
    %v284 = vld [vmem:[%s3 + $0x738] sm:$0xff]
    %v285 = vld [vmem:[%s3 + $0x740] sm:$0xff]
    %v286 = vld [vmem:[%s3 + $0x748] sm:$0xff]
    %v287 = vld [vmem:[%s3 + $0x750] sm:$0xff]
    %v288 = vld [vmem:[%s3 + $0x758] sm:$0xff]
    %v289 = vld [vmem:[%s3 + $0x760] sm:$0xff]
    %v290 = vld [vmem:[%s3 + $0x768] sm:$0xff]
    %v291 = vld [vmem:[%s3 + $0x770] sm:$0xff]
    %v292 = vld [vmem:[%s3 + $0x778] sm:$0xff]
    %v293 = vld [vmem:[%s3 + $0x780] sm:$0xff]
    %v294 = vld [vmem:[%s3 + $0x788] sm:$0xff]
    %v295 = vld [vmem:[%s3 + $0x790] sm:$0xff]
    %v296 = vld [vmem:[%s3 + $0x798] sm:$0xff]
    %v297 = vld [vmem:[%s3 + $0x7a0] sm:$0xff]
    %v298 = vld [vmem:[%s3 + $0x7a8] sm:$0xff]
    %v299 = vld [vmem:[%s3 + $0x7b0] sm:$0xff]
    %v300 = vld [vmem:[%s3 + $0x7b8] sm:$0xff]
    %v301 = vld [vmem:[%s3 + $0x7c0] sm:$0xff]
    %v302 = vld [vmem:[%s3 + $0x7c8] sm:$0xff]
    %v303 = vld [vmem:[%s3 + $0x7d0] sm:$0xff]
    %v304 = vld [vmem:[%s3 + $0x7d8] sm:$0xff]
    %v305 = vld [vmem:[%s3 + $0x7e0] sm:$0xff]
    %v306 = vld [vmem:[%s3 + $0x7e8] sm:$0xff]
    %v307 = vld [vmem:[%s3 + $0x7f0] sm:$0xff]
    %v308 = vld [vmem:[%s3 + $0x7f8] sm:$0xff]
    %v309 = vld [vmem:[%s3 + $0x800] sm:$0xff]
    %v310 = vld [vmem:[%s3 + $0x808] sm:$0xff]
    %v311 = vld [vmem:[%s3 + $0x810] sm:$0xff]
    %v312 = vld [vmem:[%s3 + $0x818] sm:$0xff]
    %v313 = vld [vmem:[%s3 + $0x820] sm:$0xff]
    %v314 = vld [vmem:[%s3 + $0x828] sm:$0xff]
    %v315 = vld [vmem:[%s3 + $0x830] sm:$0xff]
    %v316 = vld [vmem:[%s3 + $0x838] sm:$0xff]
    %v317 = vld [vmem:[%s3 + $0x840] sm:$0xff]
    %v318 = vld [vmem:[%s3 + $0x848] sm:$0xff]
    %v319 = vld [vmem:[%s3 + $0x850] sm:$0xff]
    %v320 = vld [vmem:[%s3 + $0x858] sm:$0xff]
    %v321 = vld [vmem:[%s3 + $0x860] sm:$0xff]
    %v322 = vld [vmem:[%s3 + $0x868] sm:$0xff]
    %v323 = vld [vmem:[%s3 + $0x870] sm:$0xff]
    %v324 = vld [vmem:[%s3 + $0x878] sm:$0xff]
    %v325 = vld [vmem:[%s3 + $0x880] sm:$0xff]
    %v326 = vld [vmem:[%s3 + $0x888] sm:$0xff]
    %v327 = vld [vmem:[%s3 + $0x890] sm:$0xff]
    %v328 = vld [vmem:[%s3 + $0x898] sm:$0xff]
    %v329 = vld [vmem:[%s3 + $0x8a0] sm:$0xff]
    %v330 = vld [vmem:[%s3 + $0x8a8] sm:$0xff]
    %v331 = vld [vmem:[%s3 + $0x8b0] sm:$0xff]
    %v332 = vld [vmem:[%s3 + $0x8b8] sm:$0xff]
    %v333 = vld [vmem:[%s3 + $0x8c0] sm:$0xff]
    %v334 = vld [vmem:[%s3 + $0x8c8] sm:$0xff]
    %v335 = vld [vmem:[%s3 + $0x8d0] sm:$0xff]
    %v336 = vld [vmem:[%s3 + $0x8d8] sm:$0xff]
    %v337 = vld [vmem:[%s3 + $0x8e0] sm:$0xff]
    %v338 = vld [vmem:[%s3 + $0x8e8] sm:$0xff]
    %v339 = vld [vmem:[%s3 + $0x8f0] sm:$0xff]
    %v340 = vld [vmem:[%s3 + $0x8f8] sm:$0xff]
    %v341 = vld [vmem:[%s3 + $0x900] sm:$0xff]
    %v342 = vld [vmem:[%s3 + $0x908] sm:$0xff]
    %v343 = vld [vmem:[%s3 + $0x910] sm:$0xff]
    %v344 = vld [vmem:[%s3 + $0x918] sm:$0xff]
    %v345 = vld [vmem:[%s3 + $0x920] sm:$0xff]
    %v346 = vld [vmem:[%s3 + $0x928] sm:$0xff]
    %v347 = vld [vmem:[%s3 + $0x930] sm:$0xff]
    %v348 = vld [vmem:[%s3 + $0x938] sm:$0xff]
    %v349 = vld [vmem:[%s3 + $0x940] sm:$0xff]
    %v350 = vld [vmem:[%s3 + $0x948] sm:$0xff]
    %v351 = vld [vmem:[%s3 + $0x950] sm:$0xff]
    %v352 = vld [vmem:[%s3 + $0x958] sm:$0xff]
    %v353 = vld [vmem:[%s3 + $0x960] sm:$0xff]
    %v354 = vld [vmem:[%s3 + $0x968] sm:$0xff]
    %v355 = vld [vmem:[%s3 + $0x970] sm:$0xff]
    %v356 = vld [vmem:[%s3 + $0x978] sm:$0xff]
    %v357 = vld [vmem:[%s3 + $0x980] sm:$0xff]
    %v358 = vld [vmem:[%s3 + $0x988] sm:$0xff]
    %v359 = vld [vmem:[%s3 + $0x990] sm:$0xff]
    %v360 = vld [vmem:[%s3 + $0x998] sm:$0xff]
    %v361 = vld [vmem:[%s3 + $0x9a0] sm:$0xff]
    %v362 = vld [vmem:[%s3 + $0x9a8] sm:$0xff]
    %v363 = vld [vmem:[%s3 + $0x9b0] sm:$0xff]
    %v364 = vld [vmem:[%s3 + $0x9b8] sm:$0xff]
    %v365 = vld [vmem:[%s3 + $0x9c0] sm:$0xff]
    %v366 = vld [vmem:[%s3 + $0x9c8] sm:$0xff]
    %v367 = vld [vmem:[%s3 + $0x9d0] sm:$0xff]
    %v368 = vld [vmem:[%s3 + $0x9d8] sm:$0xff]
    %v369 = vld [vmem:[%s3 + $0x9e0] sm:$0xff]
    %v370 = vld [vmem:[%s3 + $0x9e8] sm:$0xff]
    %v371 = vld [vmem:[%s3 + $0x9f0] sm:$0xff]
    %v372 = vld [vmem:[%s3 + $0x9f8] sm:$0xff]
    %v373 = vld [vmem:[%s3 + $0xa00] sm:$0xff]
    %v374 = vld [vmem:[%s3 + $0xa08] sm:$0xff]
    %v375 = vld [vmem:[%s3 + $0xa10] sm:$0xff]
    %v376 = vld [vmem:[%s3 + $0xa18] sm:$0xff]
    %v377 = vld [vmem:[%s3 + $0xa20] sm:$0xff]
    %v378 = vld [vmem:[%s3 + $0xa28] sm:$0xff]
    %v379 = vld [vmem:[%s3 + $0xa30] sm:$0xff]
    %v380 = vld [vmem:[%s3 + $0xa38] sm:$0xff]
    %v381 = vld [vmem:[%s3 + $0xa40] sm:$0xff]
    %v382 = vld [vmem:[%s3 + $0xa48] sm:$0xff]
    %v383 = vld [vmem:[%s3 + $0xa50] sm:$0xff]
    %v384 = vld [vmem:[%s3 + $0xa58] sm:$0xff]
    %v385 = vld [vmem:[%s3 + $0xa60] sm:$0xff]
    %v386 = vld [vmem:[%s3 + $0xa68] sm:$0xff]
    %v387 = vld [vmem:[%s3 + $0xa70] sm:$0xff]
    %v388 = vld [vmem:[%s3 + $0xa78] sm:$0xff]
    %v389 = vld [vmem:[%s3 + $0xa80] sm:$0xff]
    %v390 = vld [vmem:[%s3 + $0xa88] sm:$0xff]
    %v391 = vld [vmem:[%s3 + $0xa90] sm:$0xff]
    %v392 = vld [vmem:[%s3 + $0xa98] sm:$0xff]
    %v393 = vld [vmem:[%s3 + $0xaa0] sm:$0xff]
    %v394 = vld [vmem:[%s3 + $0xaa8] sm:$0xff]
    %v395 = vld [vmem:[%s3 + $0xab0] sm:$0xff]
    %v396 = vld [vmem:[%s3 + $0xab8] sm:$0xff]
    %v397 = vld [vmem:[%s3 + $0xac0] sm:$0xff]
    %v398 = vld [vmem:[%s3 + $0xac8] sm:$0xff]
    %v399 = vld [vmem:[%s3 + $0xad0] sm:$0xff]
    %v400 = vld [vmem:[%s3 + $0xad8] sm:$0xff]
    %v401 = vld [vmem:[%s3 + $0xae0] sm:$0xff]
    %v402 = vld [vmem:[%s3 + $0xae8] sm:$0xff]
    %v403 = vld [vmem:[%s3 + $0xaf0] sm:$0xff]
    %v404 = vld [vmem:[%s3 + $0xaf8] sm:$0xff]
    %v405 = vld [vmem:[%s3 + $0xb00] sm:$0xff]
    %v406 = vld [vmem:[%s3 + $0xb08] sm:$0xff]
    %v407 = vld [vmem:[%s3 + $0xb10] sm:$0xff]
    %v408 = vld [vmem:[%s3 + $0xb18] sm:$0xff]
    %v409 = vld [vmem:[%s3 + $0xb20] sm:$0xff]
    %v410 = vld [vmem:[%s3 + $0xb28] sm:$0xff]
    %v411 = vld [vmem:[%s3 + $0xb30] sm:$0xff]
    %v412 = vld [vmem:[%s3 + $0xb38] sm:$0xff]
    %v413 = vld [vmem:[%s3 + $0xb40] sm:$0xff]
    %v414 = vld [vmem:[%s3 + $0xb48] sm:$0xff]
    %v415 = vld [vmem:[%s3 + $0xb50] sm:$0xff]
    %v416 = vld [vmem:[%s3 + $0xb58] sm:$0xff]
    %v417 = vld [vmem:[%s3 + $0xb60] sm:$0xff]
    %v418 = vld [vmem:[%s3 + $0xb68] sm:$0xff]
    %v419 = vld [vmem:[%s3 + $0xb70] sm:$0xff]
    %v420 = vld [vmem:[%s3 + $0xb78] sm:$0xff]
    %v421 = vld [vmem:[%s3 + $0xb80] sm:$0xff]
    %v422 = vld [vmem:[%s3 + $0xb88] sm:$0xff]
    %v423 = vld [vmem:[%s3 + $0xb90] sm:$0xff]
    %v424 = vld [vmem:[%s3 + $0xb98] sm:$0xff]
    %v425 = vld [vmem:[%s3 + $0xba0] sm:$0xff]
    %v426 = vld [vmem:[%s3 + $0xba8] sm:$0xff]
    %v427 = vld [vmem:[%s3 + $0xbb0] sm:$0xff]
    %v428 = vld [vmem:[%s3 + $0xbb8] sm:$0xff]
    %v429 = vld [vmem:[%s3 + $0xbc0] sm:$0xff]
    %v430 = vld [vmem:[%s3 + $0xbc8] sm:$0xff]
    %v431 = vld [vmem:[%s3 + $0xbd0] sm:$0xff]
    %v432 = vld [vmem:[%s3 + $0xbd8] sm:$0xff]
    %v433 = vld [vmem:[%s3 + $0xbe0] sm:$0xff]
    %v434 = vld [vmem:[%s3 + $0xbe8] sm:$0xff]
    %v435 = vld [vmem:[%s3 + $0xbf0] sm:$0xff]
    %v436 = vld [vmem:[%s3 + $0xbf8] sm:$0xff]
    %v437 = vld [vmem:[%s3 + $0xc00] sm:$0xff]
    %v438 = vld [vmem:[%s3 + $0xc08] sm:$0xff]
    %v439 = vld [vmem:[%s3 + $0xc10] sm:$0xff]
    %v440 = vld [vmem:[%s3 + $0xc18] sm:$0xff]
    %v441 = vld [vmem:[%s3 + $0xc20] sm:$0xff]
    %v442 = vld [vmem:[%s3 + $0xc28] sm:$0xff]
    %v443 = vld [vmem:[%s3 + $0xc30] sm:$0xff]
    %v444 = vld [vmem:[%s3 + $0xc38] sm:$0xff]
    %v445 = vld [vmem:[%s3 + $0xc40] sm:$0xff]
    %v446 = vld [vmem:[%s3 + $0xc48] sm:$0xff]
    %v447 = vld [vmem:[%s3 + $0xc50] sm:$0xff]
    %v448 = vld [vmem:[%s3 + $0xc58] sm:$0xff]
    %v449 = vld [vmem:[%s3 + $0xc60] sm:$0xff]
    %v450 = vld [vmem:[%s3 + $0xc68] sm:$0xff]
    %v451 = vld [vmem:[%s3 + $0xc70] sm:$0xff]
    %v452 = vld [vmem:[%s3 + $0xc78] sm:$0xff]
    %v453 = vld [vmem:[%s3 + $0xc80] sm:$0xff]
    %v454 = vld [vmem:[%s3 + $0xc88] sm:$0xff]
    %v455 = vld [vmem:[%s3 + $0xc90] sm:$0xff]
    %v456 = vld [vmem:[%s3 + $0xc98] sm:$0xff]
    %v457 = vld [vmem:[%s3 + $0xca0] sm:$0xff]
    %v458 = vld [vmem:[%s3 + $0xca8] sm:$0xff]
    %v459 = vld [vmem:[%s3 + $0xcb0] sm:$0xff]
    %v460 = vld [vmem:[%s3 + $0xcb8] sm:$0xff]
    %v461 = vld [vmem:[%s3 + $0xcc0] sm:$0xff]
    %v462 = vld [vmem:[%s3 + $0xcc8] sm:$0xff]
    %v463 = vld [vmem:[%s3 + $0xcd0] sm:$0xff]
    %v464 = vld [vmem:[%s3 + $0xcd8] sm:$0xff]
    %v465 = vld [vmem:[%s3 + $0xce0] sm:$0xff]
    %v466 = vld [vmem:[%s3 + $0xce8] sm:$0xff]
    %v467 = vld [vmem:[%s3 + $0xcf0] sm:$0xff]
    %v468 = vld [vmem:[%s3 + $0xcf8] sm:$0xff]
    %v469 = vld [vmem:[%s3 + $0xd00] sm:$0xff]
    %v470 = vld [vmem:[%s3 + $0xd08] sm:$0xff]
    %v471 = vld [vmem:[%s3 + $0xd10] sm:$0xff]
    %v472 = vld [vmem:[%s3 + $0xd18] sm:$0xff]
    %v473 = vld [vmem:[%s3 + $0xd20] sm:$0xff]
    %v474 = vld [vmem:[%s3 + $0xd28] sm:$0xff]
    %v475 = vld [vmem:[%s3 + $0xd30] sm:$0xff]
    %v476 = vld [vmem:[%s3 + $0xd38] sm:$0xff]
    %v477 = vld [vmem:[%s3 + $0xd40] sm:$0xff]
    %v478 = vld [vmem:[%s3 + $0xd48] sm:$0xff]
    %v479 = vld [vmem:[%s3 + $0xd50] sm:$0xff]
    %v480 = vld [vmem:[%s3 + $0xd58] sm:$0xff]
    %v481 = vld [vmem:[%s3 + $0xd60] sm:$0xff]
    %v482 = vld [vmem:[%s3 + $0xd68] sm:$0xff]
    %v483 = vld [vmem:[%s3 + $0xd70] sm:$0xff]
    %v484 = vld [vmem:[%s3 + $0xd78] sm:$0xff]
    %v485 = vld [vmem:[%s3 + $0xd80] sm:$0xff]
    %v486 = vld [vmem:[%s3 + $0xd88] sm:$0xff]
    %v487 = vld [vmem:[%s3 + $0xd90] sm:$0xff]
    %v488 = vld [vmem:[%s3 + $0xd98] sm:$0xff]
    %v489 = vld [vmem:[%s3 + $0xda0] sm:$0xff]
    %v490 = vld [vmem:[%s3 + $0xda8] sm:$0xff]
    %v491 = vld [vmem:[%s3 + $0xdb0] sm:$0xff]
    %v492 = vld [vmem:[%s3 + $0xdb8] sm:$0xff]
    %v493 = vld [vmem:[%s3 + $0xdc0] sm:$0xff]
    %v494 = vld [vmem:[%s3 + $0xdc8] sm:$0xff]
    %v495 = vld [vmem:[%s3 + $0xdd0] sm:$0xff]
    %v496 = vld [vmem:[%s3 + $0xdd8] sm:$0xff]
    %v497 = vld [vmem:[%s3 + $0xde0] sm:$0xff]
    %v498 = vld [vmem:[%s3 + $0xde8] sm:$0xff]
    %v499 = vld [vmem:[%s3 + $0xdf0] sm:$0xff]
    %v500 = vld [vmem:[%s3 + $0xdf8] sm:$0xff]
    %v501 = vld [vmem:[%s3 + $0xe00] sm:$0xff]
    %v502 = vld [vmem:[%s3 + $0xe08] sm:$0xff]
    %v503 = vld [vmem:[%s3 + $0xe10] sm:$0xff]
    %v504 = vld [vmem:[%s3 + $0xe18] sm:$0xff]
    %v505 = vld [vmem:[%s3 + $0xe20] sm:$0xff]
    %v506 = vld [vmem:[%s3 + $0xe28] sm:$0xff]
    %v507 = vld [vmem:[%s3 + $0xe30] sm:$0xff]
    %v508 = vld [vmem:[%s3 + $0xe38] sm:$0xff]
    %v509 = vld [vmem:[%s3 + $0xe40] sm:$0xff]
    %v510 = vld [vmem:[%s3 + $0xe48] sm:$0xff]
    %v511 = vld [vmem:[%s3 + $0xe50] sm:$0xff]
    %v512 = vld [vmem:[%s3 + $0xe58] sm:$0xff]
    %v513 = vld [vmem:[%s3 + $0xe60] sm:$0xff]
    %v514 = vld [vmem:[%s3 + $0xe68] sm:$0xff]
    %v515 = vld [vmem:[%s3 + $0xe70] sm:$0xff]
    %v516 = vld [vmem:[%s3 + $0xe78] sm:$0xff]
    %v517 = vld [vmem:[%s3 + $0xe80] sm:$0xff]
    %v518 = vld [vmem:[%s3 + $0xe88] sm:$0xff]
    %v519 = vld [vmem:[%s3 + $0xe90] sm:$0xff]
    %v520 = vld [vmem:[%s3 + $0xe98] sm:$0xff]
    %v521 = vld [vmem:[%s3 + $0xea0] sm:$0xff]
    %v522 = vld [vmem:[%s3 + $0xea8] sm:$0xff]
    %v523 = vld [vmem:[%s3 + $0xeb0] sm:$0xff]
    %v524 = vld [vmem:[%s3 + $0xeb8] sm:$0xff]
    %v525 = vld [vmem:[%s3 + $0xec0] sm:$0xff]
    %v526 = vld [vmem:[%s3 + $0xec8] sm:$0xff]
    %v527 = vld [vmem:[%s3 + $0xed0] sm:$0xff]
    %v528 = vld [vmem:[%s3 + $0xed8] sm:$0xff]
    %v529 = vld [vmem:[%s3 + $0xee0] sm:$0xff]
    %v530 = vld [vmem:[%s3 + $0xee8] sm:$0xff]
    %v531 = vld [vmem:[%s3 + $0xef0] sm:$0xff]
    %v532 = vld [vmem:[%s3 + $0xef8] sm:$0xff]
    %v533 = vld [vmem:[%s3 + $0xf00] sm:$0xff]
    %v534 = vld [vmem:[%s3 + $0xf08] sm:$0xff]
    %v535 = vld [vmem:[%s3 + $0xf10] sm:$0xff]
    %v536 = vld [vmem:[%s3 + $0xf18] sm:$0xff]
    %v537 = vld [vmem:[%s3 + $0xf20] sm:$0xff]
    %v538 = vld [vmem:[%s3 + $0xf28] sm:$0xff]
    %v539 = vld [vmem:[%s3 + $0xf30] sm:$0xff]
    %v540 = vld [vmem:[%s3 + $0xf38] sm:$0xff]
    %v541 = vld [vmem:[%s3 + $0xf40] sm:$0xff]
    %v542 = vld [vmem:[%s3 + $0xf48] sm:$0xff]
    %v543 = vld [vmem:[%s3 + $0xf50] sm:$0xff]
    %v544 = vld [vmem:[%s3 + $0xf58] sm:$0xff]
    %v545 = vld [vmem:[%s3 + $0xf60] sm:$0xff]
    %v546 = vld [vmem:[%s3 + $0xf68] sm:$0xff]
    %v547 = vld [vmem:[%s3 + $0xf70] sm:$0xff]
    %v548 = vld [vmem:[%s3 + $0xf78] sm:$0xff]
    %v549 = vld [vmem:[%s3 + $0xf80] sm:$0xff]
    %v550 = vld [vmem:[%s3 + $0xf88] sm:$0xff]
    %v551 = vld [vmem:[%s3 + $0xf90] sm:$0xff]
    %v552 = vld [vmem:[%s3 + $0xf98] sm:$0xff]
    %v553 = vld [vmem:[%s3 + $0xfa0] sm:$0xff]
    %v554 = vld [vmem:[%s3 + $0xfa8] sm:$0xff]
    %v555 = vld [vmem:[%s3 + $0xfb0] sm:$0xff]
    %v556 = vld [vmem:[%s3 + $0xfb8] sm:$0xff]
    %v557 = vld [vmem:[%s3 + $0xfc0] sm:$0xff]
    %v558 = vld [vmem:[%s3 + $0xfc8] sm:$0xff]
    %v559 = vld [vmem:[%s3 + $0xfd0] sm:$0xff]
    %v560 = vld [vmem:[%s3 + $0xfd8] sm:$0xff]
    %v561 = vld [vmem:[%s3 + $0xfe0] sm:$0xff]
    %v562 = vld [vmem:[%s3 + $0xfe8] sm:$0xff]
    %v563 = vld [vmem:[%s3 + $0xff0] sm:$0xff]
    %v564 = vld [vmem:[%s3 + $0xff8] sm:$0xff]
    %565 = vmatprep.subr.mxu0 0.0
    %566 = vmatpush1.msra.mxu0 %v53
    %567 = vmatprep.subr.mxu0 0.0
    %568 = vmatpush1.msra.mxu0 %v54
    %569 = vmatprep.subr.mxu0 0.0
    %570 = vmatpush1.msra.mxu0 %v55
    %571 = vmatprep.subr.mxu0 0.0
    %572 = vmatpush1.msra.mxu0 %v56
    %573 = vmatprep.subr.mxu0 0.0
    %574 = vmatpush1.msra.mxu0 %v57
    %575 = vmatprep.subr.mxu0 0.0
    %576 = vmatpush1.msra.mxu0 %v58
    %577 = vmatprep.subr.mxu0 0.0
    %578 = vmatpush1.msra.mxu0 %v59
    %579 = vmatprep.subr.mxu0 0.0
    %580 = vmatpush1.msra.mxu0 %v60
    %581 = vmatprep.subr.mxu0 0.0
    %582 = vmatpush1.msra.mxu0 %v61
    %583 = vmatprep.subr.mxu0 0.0
    %584 = vmatpush1.msra.mxu0 %v62
    %585 = vmatprep.subr.mxu0 0.0
    %586 = vmatpush1.msra.mxu0 %v63
    %587 = vmatprep.subr.mxu0 0.0
    %588 = vmatpush1.msra.mxu0 %v64
    %589 = vmatprep.subr.mxu0 0.0
    %590 = vmatpush1.msra.mxu0 %v65
    %591 = vmatprep.subr.mxu0 0.0
    %592 = vmatpush1.msra.mxu0 %v66
    %593 = vmatprep.subr.mxu0 0.0
    %594 = vmatpush1.msra.mxu0 %v67
    %595 = vmatprep.subr.mxu0 0.0
    %596 = vmatpush1.msra.mxu0 %v68
    %597 = vmatprep.subr.mxu0 0.0
    %598 = vmatpush1.msra.mxu0 %v69
    %599 = vmatprep.subr.mxu0 0.0
    %600 = vmatpush1.msra.mxu0 %v70
    %601 = vmatprep.subr.mxu0 0.0
    %602 = vmatpush1.msra.mxu0 %v71
    %603 = vmatprep.subr.mxu0 0.0
    %604 = vmatpush1.msra.mxu0 %v72
    %605 = vmatprep.subr.mxu0 0.0
    %606 = vmatpush1.msra.mxu0 %v73
    %607 = vmatprep.subr.mxu0 0.0
    %608 = vmatpush1.msra.mxu0 %v74
    %609 = vmatprep.subr.mxu0 0.0
    %610 = vmatpush1.msra.mxu0 %v75
    %611 = vmatprep.subr.mxu0 0.0
    %612 = vmatpush1.msra.mxu0 %v76
    %613 = vmatprep.subr.mxu0 0.0
    %614 = vmatpush1.msra.mxu0 %v77
    %615 = vmatprep.subr.mxu0 0.0
    %616 = vmatpush1.msra.mxu0 %v78
    %617 = vmatprep.subr.mxu0 0.0
    %618 = vmatpush1.msra.mxu0 %v79
    %619 = vmatprep.subr.mxu0 0.0
    %620 = vmatpush1.msra.mxu0 %v80
    %621 = vmatprep.subr.mxu0 0.0
    %622 = vmatpush1.msra.mxu0 %v81
    %623 = vmatprep.subr.mxu0 0.0
    %624 = vmatpush1.msra.mxu0 %v82
    %625 = vmatprep.subr.mxu0 0.0
    %626 = vmatpush1.msra.mxu0 %v83
    %627 = vmatprep.subr.mxu0 0.0
    %628 = vmatpush1.msra.mxu0 %v84
    %629 = vmatprep.mubr.f32.mxu0 %v22
    %630 = vmatmul.mubr.f32.gmra.mrb[0].mxu0 %v21
    %v631 = vpop.f32.mrb[0].mxu0
    %v632 = vadd.f32 0.0, %v631
    %v633 = vpop.f32.mrb[0].mxu0
    %634 = vdwg.mxu0
    %635 = vmatprep.subr.mxu0 0.0
    %636 = vmatpush1.msra.mxu0 %v85
    %637 = vmatprep.subr.mxu0 0.0
    %638 = vmatpush1.msra.mxu0 %v86
    %639 = vmatprep.subr.mxu0 0.0
    %640 = vmatpush1.msra.mxu0 %v87
    %641 = vmatprep.subr.mxu0 0.0
    %642 = vmatpush1.msra.mxu0 %v88
    %643 = vmatprep.subr.mxu0 0.0
    %644 = vmatpush1.msra.mxu0 %v89
    %645 = vmatprep.subr.mxu0 0.0
    %646 = vmatpush1.msra.mxu0 %v90
    %647 = vmatprep.subr.mxu0 0.0
    %648 = vmatpush1.msra.mxu0 %v91
    %649 = vmatprep.subr.mxu0 0.0
    %650 = vmatpush1.msra.mxu0 %v92
    %651 = vmatprep.subr.mxu0 0.0
    %652 = vmatpush1.msra.mxu0 %v93
    %653 = vmatprep.subr.mxu0 0.0
    %654 = vmatpush1.msra.mxu0 %v94
    %655 = vmatprep.subr.mxu0 0.0
    %656 = vmatpush1.msra.mxu0 %v95
    %657 = vmatprep.subr.mxu0 0.0
    %658 = vmatpush1.msra.mxu0 %v96
    %659 = vmatprep.subr.mxu0 0.0
    %660 = vmatpush1.msra.mxu0 %v97
    %661 = vmatprep.subr.mxu0 0.0
    %662 = vmatpush1.msra.mxu0 %v98
    %663 = vmatprep.subr.mxu0 0.0
    %664 = vmatpush1.msra.mxu0 %v99
    %665 = vmatprep.subr.mxu0 0.0
    %666 = vmatpush1.msra.mxu0 %v100
    %667 = vmatprep.subr.mxu0 0.0
    %668 = vmatpush1.msra.mxu0 %v101
    %669 = vmatprep.subr.mxu0 0.0
    %670 = vmatpush1.msra.mxu0 %v102
    %671 = vmatprep.subr.mxu0 0.0
    %672 = vmatpush1.msra.mxu0 %v103
    %673 = vmatprep.subr.mxu0 0.0
    %674 = vmatpush1.msra.mxu0 %v104
    %675 = vmatprep.subr.mxu0 0.0
    %676 = vmatpush1.msra.mxu0 %v105
    %677 = vmatprep.subr.mxu0 0.0
    %678 = vmatpush1.msra.mxu0 %v106
    %679 = vmatprep.subr.mxu0 0.0
    %680 = vmatpush1.msra.mxu0 %v107
    %681 = vmatprep.subr.mxu0 0.0
    %682 = vmatpush1.msra.mxu0 %v108
    %683 = vmatprep.subr.mxu0 0.0
    %684 = vmatpush1.msra.mxu0 %v109
    %685 = vmatprep.subr.mxu0 0.0
    %686 = vmatpush1.msra.mxu0 %v110
    %687 = vmatprep.subr.mxu0 0.0
    %688 = vmatpush1.msra.mxu0 %v111
    %689 = vmatprep.subr.mxu0 0.0
    %690 = vmatpush1.msra.mxu0 %v112
    %691 = vmatprep.subr.mxu0 0.0
    %692 = vmatpush1.msra.mxu0 %v113
    %693 = vmatprep.subr.mxu0 0.0
    %694 = vmatpush1.msra.mxu0 %v114
    %695 = vmatprep.subr.mxu0 0.0
    %696 = vmatpush1.msra.mxu0 %v115
    %697 = vmatprep.subr.mxu0 0.0
    %698 = vmatpush1.msra.mxu0 %v116
    %699 = vmatprep.mubr.f32.mxu0 %v24
    %700 = vmatmul.mubr.f32.gmra.mrb[0].mxu0 %v23
    %v701 = vpop.f32.mrb[0].mxu0
    %v702 = vadd.f32 %v632, %v701
    %v703 = vpop.f32.mrb[0].mxu0
    %704 = vdwg.mxu0
    %705 = vmatprep.subr.mxu0 0.0
    %706 = vmatpush1.msra.mxu0 %v117
    %707 = vmatprep.subr.mxu0 0.0
    %708 = vmatpush1.msra.mxu0 %v118
    %709 = vmatprep.subr.mxu0 0.0
    %710 = vmatpush1.msra.mxu0 %v119
    %711 = vmatprep.subr.mxu0 0.0
    %712 = vmatpush1.msra.mxu0 %v120
    %713 = vmatprep.subr.mxu0 0.0
    %714 = vmatpush1.msra.mxu0 %v121
    %715 = vmatprep.subr.mxu0 0.0
    %716 = vmatpush1.msra.mxu0 %v122
    %717 = vmatprep.subr.mxu0 0.0
    %718 = vmatpush1.msra.mxu0 %v123
    %719 = vmatprep.subr.mxu0 0.0
    %720 = vmatpush1.msra.mxu0 %v124
    %721 = vmatprep.subr.mxu0 0.0
    %722 = vmatpush1.msra.mxu0 %v125
    %723 = vmatprep.subr.mxu0 0.0
    %724 = vmatpush1.msra.mxu0 %v126
    %725 = vmatprep.subr.mxu0 0.0
    %726 = vmatpush1.msra.mxu0 %v127
    %727 = vmatprep.subr.mxu0 0.0
    %728 = vmatpush1.msra.mxu0 %v128
    %729 = vmatprep.subr.mxu0 0.0
    %730 = vmatpush1.msra.mxu0 %v129
    %731 = vmatprep.subr.mxu0 0.0
    %732 = vmatpush1.msra.mxu0 %v130
    %733 = vmatprep.subr.mxu0 0.0
    %734 = vmatpush1.msra.mxu0 %v131
    %735 = vmatprep.subr.mxu0 0.0
    %736 = vmatpush1.msra.mxu0 %v132
    %737 = vmatprep.subr.mxu0 0.0
    %738 = vmatpush1.msra.mxu0 %v133
    %739 = vmatprep.subr.mxu0 0.0
    %740 = vmatpush1.msra.mxu0 %v134
    %741 = vmatprep.subr.mxu0 0.0
    %742 = vmatpush1.msra.mxu0 %v135
    %743 = vmatprep.subr.mxu0 0.0
    %744 = vmatpush1.msra.mxu0 %v136
    %745 = vmatprep.subr.mxu0 0.0
    %746 = vmatpush1.msra.mxu0 %v137
    %747 = vmatprep.subr.mxu0 0.0
    %748 = vmatpush1.msra.mxu0 %v138
    %749 = vmatprep.subr.mxu0 0.0
    %750 = vmatpush1.msra.mxu0 %v139
    %751 = vmatprep.subr.mxu0 0.0
    %752 = vmatpush1.msra.mxu0 %v140
    %753 = vmatprep.subr.mxu0 0.0
    %754 = vmatpush1.msra.mxu0 %v141
    %755 = vmatprep.subr.mxu0 0.0
    %756 = vmatpush1.msra.mxu0 %v142
    %757 = vmatprep.subr.mxu0 0.0
    %758 = vmatpush1.msra.mxu0 %v143
    %759 = vmatprep.subr.mxu0 0.0
    %760 = vmatpush1.msra.mxu0 %v144
    %761 = vmatprep.subr.mxu0 0.0
    %762 = vmatpush1.msra.mxu0 %v145
    %763 = vmatprep.subr.mxu0 0.0
    %764 = vmatpush1.msra.mxu0 %v146
    %765 = vmatprep.subr.mxu0 0.0
    %766 = vmatpush1.msra.mxu0 %v147
    %767 = vmatprep.subr.mxu0 0.0
    %768 = vmatpush1.msra.mxu0 %v148
    %769 = vmatprep.mubr.f32.mxu0 %v26
    %770 = vmatmul.mubr.f32.gmra.mrb[0].mxu0 %v25
    %v771 = vpop.f32.mrb[0].mxu0
    %v772 = vadd.f32 %v702, %v771
    %v773 = vpop.f32.mrb[0].mxu0
    %774 = vdwg.mxu0
    %775 = vmatprep.subr.mxu0 0.0
    %776 = vmatpush1.msra.mxu0 %v149
    %777 = vmatprep.subr.mxu0 0.0
    %778 = vmatpush1.msra.mxu0 %v150
    %779 = vmatprep.subr.mxu0 0.0
    %780 = vmatpush1.msra.mxu0 %v151
    %781 = vmatprep.subr.mxu0 0.0
    %782 = vmatpush1.msra.mxu0 %v152
    %783 = vmatprep.subr.mxu0 0.0
    %784 = vmatpush1.msra.mxu0 %v153
    %785 = vmatprep.subr.mxu0 0.0
    %786 = vmatpush1.msra.mxu0 %v154
    %787 = vmatprep.subr.mxu0 0.0
    %788 = vmatpush1.msra.mxu0 %v155
    %789 = vmatprep.subr.mxu0 0.0
    %790 = vmatpush1.msra.mxu0 %v156
    %791 = vmatprep.subr.mxu0 0.0
    %792 = vmatpush1.msra.mxu0 %v157
    %793 = vmatprep.subr.mxu0 0.0
    %794 = vmatpush1.msra.mxu0 %v158
    %795 = vmatprep.subr.mxu0 0.0
    %796 = vmatpush1.msra.mxu0 %v159
    %797 = vmatprep.subr.mxu0 0.0
    %798 = vmatpush1.msra.mxu0 %v160
    %799 = vmatprep.subr.mxu0 0.0
    %800 = vmatpush1.msra.mxu0 %v161
    %801 = vmatprep.subr.mxu0 0.0
    %802 = vmatpush1.msra.mxu0 %v162
    %803 = vmatprep.subr.mxu0 0.0
    %804 = vmatpush1.msra.mxu0 %v163
    %805 = vmatprep.subr.mxu0 0.0
    %806 = vmatpush1.msra.mxu0 %v164
    %807 = vmatprep.subr.mxu0 0.0
    %808 = vmatpush1.msra.mxu0 %v165
    %809 = vmatprep.subr.mxu0 0.0
    %810 = vmatpush1.msra.mxu0 %v166
    %811 = vmatprep.subr.mxu0 0.0
    %812 = vmatpush1.msra.mxu0 %v167
    %813 = vmatprep.subr.mxu0 0.0
    %814 = vmatpush1.msra.mxu0 %v168
    %815 = vmatprep.subr.mxu0 0.0
    %816 = vmatpush1.msra.mxu0 %v169
    %817 = vmatprep.subr.mxu0 0.0
    %818 = vmatpush1.msra.mxu0 %v170
    %819 = vmatprep.subr.mxu0 0.0
    %820 = vmatpush1.msra.mxu0 %v171
    %821 = vmatprep.subr.mxu0 0.0
    %822 = vmatpush1.msra.mxu0 %v172
    %823 = vmatprep.subr.mxu0 0.0
    %824 = vmatpush1.msra.mxu0 %v173
    %825 = vmatprep.subr.mxu0 0.0
    %826 = vmatpush1.msra.mxu0 %v174
    %827 = vmatprep.subr.mxu0 0.0
    %828 = vmatpush1.msra.mxu0 %v175
    %829 = vmatprep.subr.mxu0 0.0
    %830 = vmatpush1.msra.mxu0 %v176
    %831 = vmatprep.subr.mxu0 0.0
    %832 = vmatpush1.msra.mxu0 %v177
    %833 = vmatprep.subr.mxu0 0.0
    %834 = vmatpush1.msra.mxu0 %v178
    %835 = vmatprep.subr.mxu0 0.0
    %836 = vmatpush1.msra.mxu0 %v179
    %837 = vmatprep.subr.mxu0 0.0
    %838 = vmatpush1.msra.mxu0 %v180
    %839 = vmatprep.mubr.f32.mxu0 %v28
    %840 = vmatmul.mubr.f32.gmra.mrb[0].mxu0 %v27
    %v841 = vpop.f32.mrb[0].mxu0
    %v842 = vadd.f32 %v772, %v841
    %v843 = vpop.f32.mrb[0].mxu0
    %844 = vdwg.mxu0
    %845 = vmatprep.subr.mxu0 0.0
    %846 = vmatpush1.msra.mxu0 %v181
    %847 = vmatprep.subr.mxu0 0.0
    %848 = vmatpush1.msra.mxu0 %v182
    %849 = vmatprep.subr.mxu0 0.0
    %850 = vmatpush1.msra.mxu0 %v183
    %851 = vmatprep.subr.mxu0 0.0
    %852 = vmatpush1.msra.mxu0 %v184
    %853 = vmatprep.subr.mxu0 0.0
    %854 = vmatpush1.msra.mxu0 %v185
    %855 = vmatprep.subr.mxu0 0.0
    %856 = vmatpush1.msra.mxu0 %v186
    %857 = vmatprep.subr.mxu0 0.0
    %858 = vmatpush1.msra.mxu0 %v187
    %859 = vmatprep.subr.mxu0 0.0
    %860 = vmatpush1.msra.mxu0 %v188
    %861 = vmatprep.subr.mxu0 0.0
    %862 = vmatpush1.msra.mxu0 %v189
    %863 = vmatprep.subr.mxu0 0.0
    %864 = vmatpush1.msra.mxu0 %v190
    %865 = vmatprep.subr.mxu0 0.0
    %866 = vmatpush1.msra.mxu0 %v191
    %867 = vmatprep.subr.mxu0 0.0
    %868 = vmatpush1.msra.mxu0 %v192
    %869 = vmatprep.subr.mxu0 0.0
    %870 = vmatpush1.msra.mxu0 %v193
    %871 = vmatprep.subr.mxu0 0.0
    %872 = vmatpush1.msra.mxu0 %v194
    %873 = vmatprep.subr.mxu0 0.0
    %874 = vmatpush1.msra.mxu0 %v195
    %875 = vmatprep.subr.mxu0 0.0
    %876 = vmatpush1.msra.mxu0 %v196
    %877 = vmatprep.subr.mxu0 0.0
    %878 = vmatpush1.msra.mxu0 %v197
    %879 = vmatprep.subr.mxu0 0.0
    %880 = vmatpush1.msra.mxu0 %v198
    %881 = vmatprep.subr.mxu0 0.0
    %882 = vmatpush1.msra.mxu0 %v199
    %883 = vmatprep.subr.mxu0 0.0
    %884 = vmatpush1.msra.mxu0 %v200
    %885 = vmatprep.subr.mxu0 0.0
    %886 = vmatpush1.msra.mxu0 %v201
    %887 = vmatprep.subr.mxu0 0.0
    %888 = vmatpush1.msra.mxu0 %v202
    %889 = vmatprep.subr.mxu0 0.0
    %890 = vmatpush1.msra.mxu0 %v203
    %891 = vmatprep.subr.mxu0 0.0
    %892 = vmatpush1.msra.mxu0 %v204
    %893 = vmatprep.subr.mxu0 0.0
    %894 = vmatpush1.msra.mxu0 %v205
    %895 = vmatprep.subr.mxu0 0.0
    %896 = vmatpush1.msra.mxu0 %v206
    %897 = vmatprep.subr.mxu0 0.0
    %898 = vmatpush1.msra.mxu0 %v207
    %899 = vmatprep.subr.mxu0 0.0
    %900 = vmatpush1.msra.mxu0 %v208
    %901 = vmatprep.subr.mxu0 0.0
    %902 = vmatpush1.msra.mxu0 %v209
    %903 = vmatprep.subr.mxu0 0.0
    %904 = vmatpush1.msra.mxu0 %v210
    %905 = vmatprep.subr.mxu0 0.0
    %906 = vmatpush1.msra.mxu0 %v211
    %907 = vmatprep.subr.mxu0 0.0
    %908 = vmatpush1.msra.mxu0 %v212
    %909 = vmatprep.mubr.f32.mxu0 %v30
    %910 = vmatmul.mubr.f32.gmra.mrb[0].mxu0 %v29
    %v911 = vpop.f32.mrb[0].mxu0
    %v912 = vadd.f32 %v842, %v911
    %v913 = vpop.f32.mrb[0].mxu0
    %914 = vdwg.mxu0
    %915 = vmatprep.subr.mxu0 0.0
    %916 = vmatpush1.msra.mxu0 %v213
    %917 = vmatprep.subr.mxu0 0.0
    %918 = vmatpush1.msra.mxu0 %v214
    %919 = vmatprep.subr.mxu0 0.0
    %920 = vmatpush1.msra.mxu0 %v215
    %921 = vmatprep.subr.mxu0 0.0
    %922 = vmatpush1.msra.mxu0 %v216
    %923 = vmatprep.subr.mxu0 0.0
    %924 = vmatpush1.msra.mxu0 %v217
    %925 = vmatprep.subr.mxu0 0.0
    %926 = vmatpush1.msra.mxu0 %v218
    %927 = vmatprep.subr.mxu0 0.0
    %928 = vmatpush1.msra.mxu0 %v219
    %929 = vmatprep.subr.mxu0 0.0
    %930 = vmatpush1.msra.mxu0 %v220
    %931 = vmatprep.subr.mxu0 0.0
    %932 = vmatpush1.msra.mxu0 %v221
    %933 = vmatprep.subr.mxu0 0.0
    %934 = vmatpush1.msra.mxu0 %v222
    %935 = vmatprep.subr.mxu0 0.0
    %936 = vmatpush1.msra.mxu0 %v223
    %937 = vmatprep.subr.mxu0 0.0
    %938 = vmatpush1.msra.mxu0 %v224
    %939 = vmatprep.subr.mxu0 0.0
    %940 = vmatpush1.msra.mxu0 %v225
    %941 = vmatprep.subr.mxu0 0.0
    %942 = vmatpush1.msra.mxu0 %v226
    %943 = vmatprep.subr.mxu0 0.0
    %944 = vmatpush1.msra.mxu0 %v227
    %945 = vmatprep.subr.mxu0 0.0
    %946 = vmatpush1.msra.mxu0 %v228
    %947 = vmatprep.subr.mxu0 0.0
    %948 = vmatpush1.msra.mxu0 %v229
    %949 = vmatprep.subr.mxu0 0.0
    %950 = vmatpush1.msra.mxu0 %v230
    %951 = vmatprep.subr.mxu0 0.0
    %952 = vmatpush1.msra.mxu0 %v231
    %953 = vmatprep.subr.mxu0 0.0
    %954 = vmatpush1.msra.mxu0 %v232
    %955 = vmatprep.subr.mxu0 0.0
    %956 = vmatpush1.msra.mxu0 %v233
    %957 = vmatprep.subr.mxu0 0.0
    %958 = vmatpush1.msra.mxu0 %v234
    %959 = vmatprep.subr.mxu0 0.0
    %960 = vmatpush1.msra.mxu0 %v235
    %961 = vmatprep.subr.mxu0 0.0
    %962 = vmatpush1.msra.mxu0 %v236
    %963 = vmatprep.subr.mxu0 0.0
    %964 = vmatpush1.msra.mxu0 %v237
    %965 = vmatprep.subr.mxu0 0.0
    %966 = vmatpush1.msra.mxu0 %v238
    %967 = vmatprep.subr.mxu0 0.0
    %968 = vmatpush1.msra.mxu0 %v239
    %969 = vmatprep.subr.mxu0 0.0
    %970 = vmatpush1.msra.mxu0 %v240
    %971 = vmatprep.subr.mxu0 0.0
    %972 = vmatpush1.msra.mxu0 %v241
    %973 = vmatprep.subr.mxu0 0.0
    %974 = vmatpush1.msra.mxu0 %v242
    %975 = vmatprep.subr.mxu0 0.0
    %976 = vmatpush1.msra.mxu0 %v243
    %977 = vmatprep.subr.mxu0 0.0
    %978 = vmatpush1.msra.mxu0 %v244
    %979 = vmatprep.mubr.f32.mxu0 %v32
    %980 = vmatmul.mubr.f32.gmra.mrb[0].mxu0 %v31
    %v981 = vpop.f32.mrb[0].mxu0
    %v982 = vadd.f32 %v912, %v981
    %v983 = vpop.f32.mrb[0].mxu0
    %984 = vdwg.mxu0
    %985 = vmatprep.subr.mxu0 0.0
    %986 = vmatpush1.msra.mxu0 %v245
    %987 = vmatprep.subr.mxu0 0.0
    %988 = vmatpush1.msra.mxu0 %v246
    %989 = vmatprep.subr.mxu0 0.0
    %990 = vmatpush1.msra.mxu0 %v247
    %991 = vmatprep.subr.mxu0 0.0
    %992 = vmatpush1.msra.mxu0 %v248
    %993 = vmatprep.subr.mxu0 0.0
    %994 = vmatpush1.msra.mxu0 %v249
    %995 = vmatprep.subr.mxu0 0.0
    %996 = vmatpush1.msra.mxu0 %v250
    %997 = vmatprep.subr.mxu0 0.0
    %998 = vmatpush1.msra.mxu0 %v251
    %999 = vmatprep.subr.mxu0 0.0
    %1000 = vmatpush1.msra.mxu0 %v252
    %1001 = vmatprep.subr.mxu0 0.0
    %1002 = vmatpush1.msra.mxu0 %v253
    %1003 = vmatprep.subr.mxu0 0.0
    %1004 = vmatpush1.msra.mxu0 %v254
    %1005 = vmatprep.subr.mxu0 0.0
    %1006 = vmatpush1.msra.mxu0 %v255
    %1007 = vmatprep.subr.mxu0 0.0
    %1008 = vmatpush1.msra.mxu0 %v256
    %1009 = vmatprep.subr.mxu0 0.0
    %1010 = vmatpush1.msra.mxu0 %v257
    %1011 = vmatprep.subr.mxu0 0.0
    %1012 = vmatpush1.msra.mxu0 %v258
    %1013 = vmatprep.subr.mxu0 0.0
    %1014 = vmatpush1.msra.mxu0 %v259
    %1015 = vmatprep.subr.mxu0 0.0
    %1016 = vmatpush1.msra.mxu0 %v260
    %1017 = vmatprep.subr.mxu0 0.0
    %1018 = vmatpush1.msra.mxu0 %v261
    %1019 = vmatprep.subr.mxu0 0.0
    %1020 = vmatpush1.msra.mxu0 %v262
    %1021 = vmatprep.subr.mxu0 0.0
    %1022 = vmatpush1.msra.mxu0 %v263
    %1023 = vmatprep.subr.mxu0 0.0
    %1024 = vmatpush1.msra.mxu0 %v264
    %1025 = vmatprep.subr.mxu0 0.0
    %1026 = vmatpush1.msra.mxu0 %v265
    %1027 = vmatprep.subr.mxu0 0.0
    %1028 = vmatpush1.msra.mxu0 %v266
    %1029 = vmatprep.subr.mxu0 0.0
    %1030 = vmatpush1.msra.mxu0 %v267
    %1031 = vmatprep.subr.mxu0 0.0
    %1032 = vmatpush1.msra.mxu0 %v268
    %1033 = vmatprep.subr.mxu0 0.0
    %1034 = vmatpush1.msra.mxu0 %v269
    %1035 = vmatprep.subr.mxu0 0.0
    %1036 = vmatpush1.msra.mxu0 %v270
    %1037 = vmatprep.subr.mxu0 0.0
    %1038 = vmatpush1.msra.mxu0 %v271
    %1039 = vmatprep.subr.mxu0 0.0
    %1040 = vmatpush1.msra.mxu0 %v272
    %1041 = vmatprep.subr.mxu0 0.0
    %1042 = vmatpush1.msra.mxu0 %v273
    %1043 = vmatprep.subr.mxu0 0.0
    %1044 = vmatpush1.msra.mxu0 %v274
    %1045 = vmatprep.subr.mxu0 0.0
    %1046 = vmatpush1.msra.mxu0 %v275
    %1047 = vmatprep.subr.mxu0 0.0
    %1048 = vmatpush1.msra.mxu0 %v276
    %1049 = vmatprep.mubr.f32.mxu0 %v34
    %1050 = vmatmul.mubr.f32.gmra.mrb[0].mxu0 %v33
    %v1051 = vpop.f32.mrb[0].mxu0
    %v1052 = vadd.f32 %v982, %v1051
    %v1053 = vpop.f32.mrb[0].mxu0
    %1054 = vdwg.mxu0
    %1055 = vmatprep.subr.mxu0 0.0
    %1056 = vmatpush1.msra.mxu0 %v277
    %1057 = vmatprep.subr.mxu0 0.0
    %1058 = vmatpush1.msra.mxu0 %v278
    %1059 = vmatprep.subr.mxu0 0.0
    %1060 = vmatpush1.msra.mxu0 %v279
    %1061 = vmatprep.subr.mxu0 0.0
    %1062 = vmatpush1.msra.mxu0 %v280
    %1063 = vmatprep.subr.mxu0 0.0
    %1064 = vmatpush1.msra.mxu0 %v281
    %1065 = vmatprep.subr.mxu0 0.0
    %1066 = vmatpush1.msra.mxu0 %v282
    %1067 = vmatprep.subr.mxu0 0.0
    %1068 = vmatpush1.msra.mxu0 %v283
    %1069 = vmatprep.subr.mxu0 0.0
    %1070 = vmatpush1.msra.mxu0 %v284
    %1071 = vmatprep.subr.mxu0 0.0
    %1072 = vmatpush1.msra.mxu0 %v285
    %1073 = vmatprep.subr.mxu0 0.0
    %1074 = vmatpush1.msra.mxu0 %v286
    %1075 = vmatprep.subr.mxu0 0.0
    %1076 = vmatpush1.msra.mxu0 %v287
    %1077 = vmatprep.subr.mxu0 0.0
    %1078 = vmatpush1.msra.mxu0 %v288
    %1079 = vmatprep.subr.mxu0 0.0
    %1080 = vmatpush1.msra.mxu0 %v289
    %1081 = vmatprep.subr.mxu0 0.0
    %1082 = vmatpush1.msra.mxu0 %v290
    %1083 = vmatprep.subr.mxu0 0.0
    %1084 = vmatpush1.msra.mxu0 %v291
    %1085 = vmatprep.subr.mxu0 0.0
    %1086 = vmatpush1.msra.mxu0 %v292
    %1087 = vmatprep.subr.mxu0 0.0
    %1088 = vmatpush1.msra.mxu0 %v293
    %1089 = vmatprep.subr.mxu0 0.0
    %1090 = vmatpush1.msra.mxu0 %v294
    %1091 = vmatprep.subr.mxu0 0.0
    %1092 = vmatpush1.msra.mxu0 %v295
    %1093 = vmatprep.subr.mxu0 0.0
    %1094 = vmatpush1.msra.mxu0 %v296
    %1095 = vmatprep.subr.mxu0 0.0
    %1096 = vmatpush1.msra.mxu0 %v297
    %1097 = vmatprep.subr.mxu0 0.0
    %1098 = vmatpush1.msra.mxu0 %v298
    %1099 = vmatprep.subr.mxu0 0.0
    %1100 = vmatpush1.msra.mxu0 %v299
    %1101 = vmatprep.subr.mxu0 0.0
    %1102 = vmatpush1.msra.mxu0 %v300
    %1103 = vmatprep.subr.mxu0 0.0
    %1104 = vmatpush1.msra.mxu0 %v301
    %1105 = vmatprep.subr.mxu0 0.0
    %1106 = vmatpush1.msra.mxu0 %v302
    %1107 = vmatprep.subr.mxu0 0.0
    %1108 = vmatpush1.msra.mxu0 %v303
    %1109 = vmatprep.subr.mxu0 0.0
    %1110 = vmatpush1.msra.mxu0 %v304
    %1111 = vmatprep.subr.mxu0 0.0
    %1112 = vmatpush1.msra.mxu0 %v305
    %1113 = vmatprep.subr.mxu0 0.0
    %1114 = vmatpush1.msra.mxu0 %v306
    %1115 = vmatprep.subr.mxu0 0.0
    %1116 = vmatpush1.msra.mxu0 %v307
    %1117 = vmatprep.subr.mxu0 0.0
    %1118 = vmatpush1.msra.mxu0 %v308
    %1119 = vmatprep.mubr.f32.mxu0 %v36
    %1120 = vmatmul.mubr.f32.gmra.mrb[0].mxu0 %v35
    %v1121 = vpop.f32.mrb[0].mxu0
    %v1122 = vadd.f32 %v1052, %v1121
    %v1123 = vpop.f32.mrb[0].mxu0
    %1124 = vdwg.mxu0
    %1125 = vmatprep.subr.mxu0 0.0
    %1126 = vmatpush1.msra.mxu0 %v309
    %1127 = vmatprep.subr.mxu0 0.0
    %1128 = vmatpush1.msra.mxu0 %v310
    %1129 = vmatprep.subr.mxu0 0.0
    %1130 = vmatpush1.msra.mxu0 %v311
    %1131 = vmatprep.subr.mxu0 0.0
    %1132 = vmatpush1.msra.mxu0 %v312
    %1133 = vmatprep.subr.mxu0 0.0
    %1134 = vmatpush1.msra.mxu0 %v313
    %1135 = vmatprep.subr.mxu0 0.0
    %1136 = vmatpush1.msra.mxu0 %v314
    %1137 = vmatprep.subr.mxu0 0.0
    %1138 = vmatpush1.msra.mxu0 %v315
    %1139 = vmatprep.subr.mxu0 0.0
    %1140 = vmatpush1.msra.mxu0 %v316
    %1141 = vmatprep.subr.mxu0 0.0
    %1142 = vmatpush1.msra.mxu0 %v317
    %1143 = vmatprep.subr.mxu0 0.0
    %1144 = vmatpush1.msra.mxu0 %v318
    %1145 = vmatprep.subr.mxu0 0.0
    %1146 = vmatpush1.msra.mxu0 %v319
    %1147 = vmatprep.subr.mxu0 0.0
    %1148 = vmatpush1.msra.mxu0 %v320
    %1149 = vmatprep.subr.mxu0 0.0
    %1150 = vmatpush1.msra.mxu0 %v321
    %1151 = vmatprep.subr.mxu0 0.0
    %1152 = vmatpush1.msra.mxu0 %v322
    %1153 = vmatprep.subr.mxu0 0.0
    %1154 = vmatpush1.msra.mxu0 %v323
    %1155 = vmatprep.subr.mxu0 0.0
    %1156 = vmatpush1.msra.mxu0 %v324
    %1157 = vmatprep.subr.mxu0 0.0
    %1158 = vmatpush1.msra.mxu0 %v325
    %1159 = vmatprep.subr.mxu0 0.0
    %1160 = vmatpush1.msra.mxu0 %v326
    %1161 = vmatprep.subr.mxu0 0.0
    %1162 = vmatpush1.msra.mxu0 %v327
    %1163 = vmatprep.subr.mxu0 0.0
    %1164 = vmatpush1.msra.mxu0 %v328
    %1165 = vmatprep.subr.mxu0 0.0
    %1166 = vmatpush1.msra.mxu0 %v329
    %1167 = vmatprep.subr.mxu0 0.0
    %1168 = vmatpush1.msra.mxu0 %v330
    %1169 = vmatprep.subr.mxu0 0.0
    %1170 = vmatpush1.msra.mxu0 %v331
    %1171 = vmatprep.subr.mxu0 0.0
    %1172 = vmatpush1.msra.mxu0 %v332
    %1173 = vmatprep.subr.mxu0 0.0
    %1174 = vmatpush1.msra.mxu0 %v333
    %1175 = vmatprep.subr.mxu0 0.0
    %1176 = vmatpush1.msra.mxu0 %v334
    %1177 = vmatprep.subr.mxu0 0.0
    %1178 = vmatpush1.msra.mxu0 %v335
    %1179 = vmatprep.subr.mxu0 0.0
    %1180 = vmatpush1.msra.mxu0 %v336
    %1181 = vmatprep.subr.mxu0 0.0
    %1182 = vmatpush1.msra.mxu0 %v337
    %1183 = vmatprep.subr.mxu0 0.0
    %1184 = vmatpush1.msra.mxu0 %v338
    %1185 = vmatprep.subr.mxu0 0.0
    %1186 = vmatpush1.msra.mxu0 %v339
    %1187 = vmatprep.subr.mxu0 0.0
    %1188 = vmatpush1.msra.mxu0 %v340
    %1189 = vmatprep.mubr.f32.mxu0 %v38
    %1190 = vmatmul.mubr.f32.gmra.mrb[0].mxu0 %v37
    %v1191 = vpop.f32.mrb[0].mxu0
    %v1192 = vadd.f32 %v1122, %v1191
    %v1193 = vpop.f32.mrb[0].mxu0
    %1194 = vdwg.mxu0
    %1195 = vmatprep.subr.mxu0 0.0
    %1196 = vmatpush1.msra.mxu0 %v341
    %1197 = vmatprep.subr.mxu0 0.0
    %1198 = vmatpush1.msra.mxu0 %v342
    %1199 = vmatprep.subr.mxu0 0.0
    %1200 = vmatpush1.msra.mxu0 %v343
    %1201 = vmatprep.subr.mxu0 0.0
    %1202 = vmatpush1.msra.mxu0 %v344
    %1203 = vmatprep.subr.mxu0 0.0
    %1204 = vmatpush1.msra.mxu0 %v345
    %1205 = vmatprep.subr.mxu0 0.0
    %1206 = vmatpush1.msra.mxu0 %v346
    %1207 = vmatprep.subr.mxu0 0.0
    %1208 = vmatpush1.msra.mxu0 %v347
    %1209 = vmatprep.subr.mxu0 0.0
    %1210 = vmatpush1.msra.mxu0 %v348
    %1211 = vmatprep.subr.mxu0 0.0
    %1212 = vmatpush1.msra.mxu0 %v349
    %1213 = vmatprep.subr.mxu0 0.0
    %1214 = vmatpush1.msra.mxu0 %v350
    %1215 = vmatprep.subr.mxu0 0.0
    %1216 = vmatpush1.msra.mxu0 %v351
    %1217 = vmatprep.subr.mxu0 0.0
    %1218 = vmatpush1.msra.mxu0 %v352
    %1219 = vmatprep.subr.mxu0 0.0
    %1220 = vmatpush1.msra.mxu0 %v353
    %1221 = vmatprep.subr.mxu0 0.0
    %1222 = vmatpush1.msra.mxu0 %v354
    %1223 = vmatprep.subr.mxu0 0.0
    %1224 = vmatpush1.msra.mxu0 %v355
    %1225 = vmatprep.subr.mxu0 0.0
    %1226 = vmatpush1.msra.mxu0 %v356
    %1227 = vmatprep.subr.mxu0 0.0
    %1228 = vmatpush1.msra.mxu0 %v357
    %1229 = vmatprep.subr.mxu0 0.0
    %1230 = vmatpush1.msra.mxu0 %v358
    %1231 = vmatprep.subr.mxu0 0.0
    %1232 = vmatpush1.msra.mxu0 %v359
    %1233 = vmatprep.subr.mxu0 0.0
    %1234 = vmatpush1.msra.mxu0 %v360
    %1235 = vmatprep.subr.mxu0 0.0
    %1236 = vmatpush1.msra.mxu0 %v361
    %1237 = vmatprep.subr.mxu0 0.0
    %1238 = vmatpush1.msra.mxu0 %v362
    %1239 = vmatprep.subr.mxu0 0.0
    %1240 = vmatpush1.msra.mxu0 %v363
    %1241 = vmatprep.subr.mxu0 0.0
    %1242 = vmatpush1.msra.mxu0 %v364
    %1243 = vmatprep.subr.mxu0 0.0
    %1244 = vmatpush1.msra.mxu0 %v365
    %1245 = vmatprep.subr.mxu0 0.0
    %1246 = vmatpush1.msra.mxu0 %v366
    %1247 = vmatprep.subr.mxu0 0.0
    %1248 = vmatpush1.msra.mxu0 %v367
    %1249 = vmatprep.subr.mxu0 0.0
    %1250 = vmatpush1.msra.mxu0 %v368
    %1251 = vmatprep.subr.mxu0 0.0
    %1252 = vmatpush1.msra.mxu0 %v369
    %1253 = vmatprep.subr.mxu0 0.0
    %1254 = vmatpush1.msra.mxu0 %v370
    %1255 = vmatprep.subr.mxu0 0.0
    %1256 = vmatpush1.msra.mxu0 %v371
    %1257 = vmatprep.subr.mxu0 0.0
    %1258 = vmatpush1.msra.mxu0 %v372
    %1259 = vmatprep.mubr.f32.mxu0 %v40
    %1260 = vmatmul.mubr.f32.gmra.mrb[0].mxu0 %v39
    %v1261 = vpop.f32.mrb[0].mxu0
    %v1262 = vadd.f32 %v1192, %v1261
    %v1263 = vpop.f32.mrb[0].mxu0
    %1264 = vdwg.mxu0
    %1265 = vmatprep.subr.mxu0 0.0
    %1266 = vmatpush1.msra.mxu0 %v373
    %1267 = vmatprep.subr.mxu0 0.0
    %1268 = vmatpush1.msra.mxu0 %v374
    %1269 = vmatprep.subr.mxu0 0.0
    %1270 = vmatpush1.msra.mxu0 %v375
    %1271 = vmatprep.subr.mxu0 0.0
    %1272 = vmatpush1.msra.mxu0 %v376
    %1273 = vmatprep.subr.mxu0 0.0
    %1274 = vmatpush1.msra.mxu0 %v377
    %1275 = vmatprep.subr.mxu0 0.0
    %1276 = vmatpush1.msra.mxu0 %v378
    %1277 = vmatprep.subr.mxu0 0.0
    %1278 = vmatpush1.msra.mxu0 %v379
    %1279 = vmatprep.subr.mxu0 0.0
    %1280 = vmatpush1.msra.mxu0 %v380
    %1281 = vmatprep.subr.mxu0 0.0
    %1282 = vmatpush1.msra.mxu0 %v381
    %1283 = vmatprep.subr.mxu0 0.0
    %1284 = vmatpush1.msra.mxu0 %v382
    %1285 = vmatprep.subr.mxu0 0.0
    %1286 = vmatpush1.msra.mxu0 %v383
    %1287 = vmatprep.subr.mxu0 0.0
    %1288 = vmatpush1.msra.mxu0 %v384
    %1289 = vmatprep.subr.mxu0 0.0
    %1290 = vmatpush1.msra.mxu0 %v385
    %1291 = vmatprep.subr.mxu0 0.0
    %1292 = vmatpush1.msra.mxu0 %v386
    %1293 = vmatprep.subr.mxu0 0.0
    %1294 = vmatpush1.msra.mxu0 %v387
    %1295 = vmatprep.subr.mxu0 0.0
    %1296 = vmatpush1.msra.mxu0 %v388
    %1297 = vmatprep.subr.mxu0 0.0
    %1298 = vmatpush1.msra.mxu0 %v389
    %1299 = vmatprep.subr.mxu0 0.0
    %1300 = vmatpush1.msra.mxu0 %v390
    %1301 = vmatprep.subr.mxu0 0.0
    %1302 = vmatpush1.msra.mxu0 %v391
    %1303 = vmatprep.subr.mxu0 0.0
    %1304 = vmatpush1.msra.mxu0 %v392
    %1305 = vmatprep.subr.mxu0 0.0
    %1306 = vmatpush1.msra.mxu0 %v393
    %1307 = vmatprep.subr.mxu0 0.0
    %1308 = vmatpush1.msra.mxu0 %v394
    %1309 = vmatprep.subr.mxu0 0.0
    %1310 = vmatpush1.msra.mxu0 %v395
    %1311 = vmatprep.subr.mxu0 0.0
    %1312 = vmatpush1.msra.mxu0 %v396
    %1313 = vmatprep.subr.mxu0 0.0
    %1314 = vmatpush1.msra.mxu0 %v397
    %1315 = vmatprep.subr.mxu0 0.0
    %1316 = vmatpush1.msra.mxu0 %v398
    %1317 = vmatprep.subr.mxu0 0.0
    %1318 = vmatpush1.msra.mxu0 %v399
    %1319 = vmatprep.subr.mxu0 0.0
    %1320 = vmatpush1.msra.mxu0 %v400
    %1321 = vmatprep.subr.mxu0 0.0
    %1322 = vmatpush1.msra.mxu0 %v401
    %1323 = vmatprep.subr.mxu0 0.0
    %1324 = vmatpush1.msra.mxu0 %v402
    %1325 = vmatprep.subr.mxu0 0.0
    %1326 = vmatpush1.msra.mxu0 %v403
    %1327 = vmatprep.subr.mxu0 0.0
    %1328 = vmatpush1.msra.mxu0 %v404
    %1329 = vmatprep.mubr.f32.mxu0 %v42
    %1330 = vmatmul.mubr.f32.gmra.mrb[0].mxu0 %v41
    %v1331 = vpop.f32.mrb[0].mxu0
    %v1332 = vadd.f32 %v1262, %v1331
    %v1333 = vpop.f32.mrb[0].mxu0
    %1334 = vdwg.mxu0
    %1335 = vmatprep.subr.mxu0 0.0
    %1336 = vmatpush1.msra.mxu0 %v405
    %1337 = vmatprep.subr.mxu0 0.0
    %1338 = vmatpush1.msra.mxu0 %v406
    %1339 = vmatprep.subr.mxu0 0.0
    %1340 = vmatpush1.msra.mxu0 %v407
    %1341 = vmatprep.subr.mxu0 0.0
    %1342 = vmatpush1.msra.mxu0 %v408
    %1343 = vmatprep.subr.mxu0 0.0
    %1344 = vmatpush1.msra.mxu0 %v409
    %1345 = vmatprep.subr.mxu0 0.0
    %1346 = vmatpush1.msra.mxu0 %v410
    %1347 = vmatprep.subr.mxu0 0.0
    %1348 = vmatpush1.msra.mxu0 %v411
    %1349 = vmatprep.subr.mxu0 0.0
    %1350 = vmatpush1.msra.mxu0 %v412
    %1351 = vmatprep.subr.mxu0 0.0
    %1352 = vmatpush1.msra.mxu0 %v413
    %1353 = vmatprep.subr.mxu0 0.0
    %1354 = vmatpush1.msra.mxu0 %v414
    %1355 = vmatprep.subr.mxu0 0.0
    %1356 = vmatpush1.msra.mxu0 %v415
    %1357 = vmatprep.subr.mxu0 0.0
    %1358 = vmatpush1.msra.mxu0 %v416
    %1359 = vmatprep.subr.mxu0 0.0
    %1360 = vmatpush1.msra.mxu0 %v417
    %1361 = vmatprep.subr.mxu0 0.0
    %1362 = vmatpush1.msra.mxu0 %v418
    %1363 = vmatprep.subr.mxu0 0.0
    %1364 = vmatpush1.msra.mxu0 %v419
    %1365 = vmatprep.subr.mxu0 0.0
    %1366 = vmatpush1.msra.mxu0 %v420
    %1367 = vmatprep.subr.mxu0 0.0
    %1368 = vmatpush1.msra.mxu0 %v421
    %1369 = vmatprep.subr.mxu0 0.0
    %1370 = vmatpush1.msra.mxu0 %v422
    %1371 = vmatprep.subr.mxu0 0.0
    %1372 = vmatpush1.msra.mxu0 %v423
    %1373 = vmatprep.subr.mxu0 0.0
    %1374 = vmatpush1.msra.mxu0 %v424
    %1375 = vmatprep.subr.mxu0 0.0
    %1376 = vmatpush1.msra.mxu0 %v425
    %1377 = vmatprep.subr.mxu0 0.0
    %1378 = vmatpush1.msra.mxu0 %v426
    %1379 = vmatprep.subr.mxu0 0.0
    %1380 = vmatpush1.msra.mxu0 %v427
    %1381 = vmatprep.subr.mxu0 0.0
    %1382 = vmatpush1.msra.mxu0 %v428
    %1383 = vmatprep.subr.mxu0 0.0
    %1384 = vmatpush1.msra.mxu0 %v429
    %1385 = vmatprep.subr.mxu0 0.0
    %1386 = vmatpush1.msra.mxu0 %v430
    %1387 = vmatprep.subr.mxu0 0.0
    %1388 = vmatpush1.msra.mxu0 %v431
    %1389 = vmatprep.subr.mxu0 0.0
    %1390 = vmatpush1.msra.mxu0 %v432
    %1391 = vmatprep.subr.mxu0 0.0
    %1392 = vmatpush1.msra.mxu0 %v433
    %1393 = vmatprep.subr.mxu0 0.0
    %1394 = vmatpush1.msra.mxu0 %v434
    %1395 = vmatprep.subr.mxu0 0.0
    %1396 = vmatpush1.msra.mxu0 %v435
    %1397 = vmatprep.subr.mxu0 0.0
    %1398 = vmatpush1.msra.mxu0 %v436
    %1399 = vmatprep.mubr.f32.mxu0 %v44
    %1400 = vmatmul.mubr.f32.gmra.mrb[0].mxu0 %v43
    %v1401 = vpop.f32.mrb[0].mxu0
    %v1402 = vadd.f32 %v1332, %v1401
    %v1403 = vpop.f32.mrb[0].mxu0
    %1404 = vdwg.mxu0
    %1405 = vmatprep.subr.mxu0 0.0
    %1406 = vmatpush1.msra.mxu0 %v437
    %1407 = vmatprep.subr.mxu0 0.0
    %1408 = vmatpush1.msra.mxu0 %v438
    %1409 = vmatprep.subr.mxu0 0.0
    %1410 = vmatpush1.msra.mxu0 %v439
    %1411 = vmatprep.subr.mxu0 0.0
    %1412 = vmatpush1.msra.mxu0 %v440
    %1413 = vmatprep.subr.mxu0 0.0
    %1414 = vmatpush1.msra.mxu0 %v441
    %1415 = vmatprep.subr.mxu0 0.0
    %1416 = vmatpush1.msra.mxu0 %v442
    %1417 = vmatprep.subr.mxu0 0.0
    %1418 = vmatpush1.msra.mxu0 %v443
    %1419 = vmatprep.subr.mxu0 0.0
    %1420 = vmatpush1.msra.mxu0 %v444
    %1421 = vmatprep.subr.mxu0 0.0
    %1422 = vmatpush1.msra.mxu0 %v445
    %1423 = vmatprep.subr.mxu0 0.0
    %1424 = vmatpush1.msra.mxu0 %v446
    %1425 = vmatprep.subr.mxu0 0.0
    %1426 = vmatpush1.msra.mxu0 %v447
    %1427 = vmatprep.subr.mxu0 0.0
    %1428 = vmatpush1.msra.mxu0 %v448
    %1429 = vmatprep.subr.mxu0 0.0
    %1430 = vmatpush1.msra.mxu0 %v449
    %1431 = vmatprep.subr.mxu0 0.0
    %1432 = vmatpush1.msra.mxu0 %v450
    %1433 = vmatprep.subr.mxu0 0.0
    %1434 = vmatpush1.msra.mxu0 %v451
    %1435 = vmatprep.subr.mxu0 0.0
    %1436 = vmatpush1.msra.mxu0 %v452
    %1437 = vmatprep.subr.mxu0 0.0
    %1438 = vmatpush1.msra.mxu0 %v453
    %1439 = vmatprep.subr.mxu0 0.0
    %1440 = vmatpush1.msra.mxu0 %v454
    %1441 = vmatprep.subr.mxu0 0.0
    %1442 = vmatpush1.msra.mxu0 %v455
    %1443 = vmatprep.subr.mxu0 0.0
    %1444 = vmatpush1.msra.mxu0 %v456
    %1445 = vmatprep.subr.mxu0 0.0
    %1446 = vmatpush1.msra.mxu0 %v457
    %1447 = vmatprep.subr.mxu0 0.0
    %1448 = vmatpush1.msra.mxu0 %v458
    %1449 = vmatprep.subr.mxu0 0.0
    %1450 = vmatpush1.msra.mxu0 %v459
    %1451 = vmatprep.subr.mxu0 0.0
    %1452 = vmatpush1.msra.mxu0 %v460
    %1453 = vmatprep.subr.mxu0 0.0
    %1454 = vmatpush1.msra.mxu0 %v461
    %1455 = vmatprep.subr.mxu0 0.0
    %1456 = vmatpush1.msra.mxu0 %v462
    %1457 = vmatprep.subr.mxu0 0.0
    %1458 = vmatpush1.msra.mxu0 %v463
    %1459 = vmatprep.subr.mxu0 0.0
    %1460 = vmatpush1.msra.mxu0 %v464
    %1461 = vmatprep.subr.mxu0 0.0
    %1462 = vmatpush1.msra.mxu0 %v465
    %1463 = vmatprep.subr.mxu0 0.0
    %1464 = vmatpush1.msra.mxu0 %v466
    %1465 = vmatprep.subr.mxu0 0.0
    %1466 = vmatpush1.msra.mxu0 %v467
    %1467 = vmatprep.subr.mxu0 0.0
    %1468 = vmatpush1.msra.mxu0 %v468
    %1469 = vmatprep.mubr.f32.mxu0 %v46
    %1470 = vmatmul.mubr.f32.gmra.mrb[0].mxu0 %v45
    %v1471 = vpop.f32.mrb[0].mxu0
    %v1472 = vadd.f32 %v1402, %v1471
    %v1473 = vpop.f32.mrb[0].mxu0
    %1474 = vdwg.mxu0
    %1475 = vmatprep.subr.mxu0 0.0
    %1476 = vmatpush1.msra.mxu0 %v469
    %1477 = vmatprep.subr.mxu0 0.0
    %1478 = vmatpush1.msra.mxu0 %v470
    %1479 = vmatprep.subr.mxu0 0.0
    %1480 = vmatpush1.msra.mxu0 %v471
    %1481 = vmatprep.subr.mxu0 0.0
    %1482 = vmatpush1.msra.mxu0 %v472
    %1483 = vmatprep.subr.mxu0 0.0
    %1484 = vmatpush1.msra.mxu0 %v473
    %1485 = vmatprep.subr.mxu0 0.0
    %1486 = vmatpush1.msra.mxu0 %v474
    %1487 = vmatprep.subr.mxu0 0.0
    %1488 = vmatpush1.msra.mxu0 %v475
    %1489 = vmatprep.subr.mxu0 0.0
    %1490 = vmatpush1.msra.mxu0 %v476
    %1491 = vmatprep.subr.mxu0 0.0
    %1492 = vmatpush1.msra.mxu0 %v477
    %1493 = vmatprep.subr.mxu0 0.0
    %1494 = vmatpush1.msra.mxu0 %v478
    %1495 = vmatprep.subr.mxu0 0.0
    %1496 = vmatpush1.msra.mxu0 %v479
    %1497 = vmatprep.subr.mxu0 0.0
    %1498 = vmatpush1.msra.mxu0 %v480
    %1499 = vmatprep.subr.mxu0 0.0
    %1500 = vmatpush1.msra.mxu0 %v481
    %1501 = vmatprep.subr.mxu0 0.0
    %1502 = vmatpush1.msra.mxu0 %v482
    %1503 = vmatprep.subr.mxu0 0.0
    %1504 = vmatpush1.msra.mxu0 %v483
    %1505 = vmatprep.subr.mxu0 0.0
    %1506 = vmatpush1.msra.mxu0 %v484
    %1507 = vmatprep.subr.mxu0 0.0
    %1508 = vmatpush1.msra.mxu0 %v485
    %1509 = vmatprep.subr.mxu0 0.0
    %1510 = vmatpush1.msra.mxu0 %v486
    %1511 = vmatprep.subr.mxu0 0.0
    %1512 = vmatpush1.msra.mxu0 %v487
    %1513 = vmatprep.subr.mxu0 0.0
    %1514 = vmatpush1.msra.mxu0 %v488
    %1515 = vmatprep.subr.mxu0 0.0
    %1516 = vmatpush1.msra.mxu0 %v489
    %1517 = vmatprep.subr.mxu0 0.0
    %1518 = vmatpush1.msra.mxu0 %v490
    %1519 = vmatprep.subr.mxu0 0.0
    %1520 = vmatpush1.msra.mxu0 %v491
    %1521 = vmatprep.subr.mxu0 0.0
    %1522 = vmatpush1.msra.mxu0 %v492
    %1523 = vmatprep.subr.mxu0 0.0
    %1524 = vmatpush1.msra.mxu0 %v493
    %1525 = vmatprep.subr.mxu0 0.0
    %1526 = vmatpush1.msra.mxu0 %v494
    %1527 = vmatprep.subr.mxu0 0.0
    %1528 = vmatpush1.msra.mxu0 %v495
    %1529 = vmatprep.subr.mxu0 0.0
    %1530 = vmatpush1.msra.mxu0 %v496
    %1531 = vmatprep.subr.mxu0 0.0
    %1532 = vmatpush1.msra.mxu0 %v497
    %1533 = vmatprep.subr.mxu0 0.0
    %1534 = vmatpush1.msra.mxu0 %v498
    %1535 = vmatprep.subr.mxu0 0.0
    %1536 = vmatpush1.msra.mxu0 %v499
    %1537 = vmatprep.subr.mxu0 0.0
    %1538 = vmatpush1.msra.mxu0 %v500
    %1539 = vmatprep.mubr.f32.mxu0 %v48
    %1540 = vmatmul.mubr.f32.gmra.mrb[0].mxu0 %v47
    %v1541 = vpop.f32.mrb[0].mxu0
    %v1542 = vadd.f32 %v1472, %v1541
    %v1543 = vpop.f32.mrb[0].mxu0
    %1544 = vdwg.mxu0
    %1545 = vmatprep.subr.mxu0 0.0
    %1546 = vmatpush1.msra.mxu0 %v501
    %1547 = vmatprep.subr.mxu0 0.0
    %1548 = vmatpush1.msra.mxu0 %v502
    %1549 = vmatprep.subr.mxu0 0.0
    %1550 = vmatpush1.msra.mxu0 %v503
    %1551 = vmatprep.subr.mxu0 0.0
    %1552 = vmatpush1.msra.mxu0 %v504
    %1553 = vmatprep.subr.mxu0 0.0
    %1554 = vmatpush1.msra.mxu0 %v505
    %1555 = vmatprep.subr.mxu0 0.0
    %1556 = vmatpush1.msra.mxu0 %v506
    %1557 = vmatprep.subr.mxu0 0.0
    %1558 = vmatpush1.msra.mxu0 %v507
    %1559 = vmatprep.subr.mxu0 0.0
    %1560 = vmatpush1.msra.mxu0 %v508
    %1561 = vmatprep.subr.mxu0 0.0
    %1562 = vmatpush1.msra.mxu0 %v509
    %1563 = vmatprep.subr.mxu0 0.0
    %1564 = vmatpush1.msra.mxu0 %v510
    %1565 = vmatprep.subr.mxu0 0.0
    %1566 = vmatpush1.msra.mxu0 %v511
    %1567 = vmatprep.subr.mxu0 0.0
    %1568 = vmatpush1.msra.mxu0 %v512
    %1569 = vmatprep.subr.mxu0 0.0
    %1570 = vmatpush1.msra.mxu0 %v513
    %1571 = vmatprep.subr.mxu0 0.0
    %1572 = vmatpush1.msra.mxu0 %v514
    %1573 = vmatprep.subr.mxu0 0.0
    %1574 = vmatpush1.msra.mxu0 %v515
    %1575 = vmatprep.subr.mxu0 0.0
    %1576 = vmatpush1.msra.mxu0 %v516
    %1577 = vmatprep.subr.mxu0 0.0
    %1578 = vmatpush1.msra.mxu0 %v517
    %1579 = vmatprep.subr.mxu0 0.0
    %1580 = vmatpush1.msra.mxu0 %v518
    %1581 = vmatprep.subr.mxu0 0.0
    %1582 = vmatpush1.msra.mxu0 %v519
    %1583 = vmatprep.subr.mxu0 0.0
    %1584 = vmatpush1.msra.mxu0 %v520
    %1585 = vmatprep.subr.mxu0 0.0
    %1586 = vmatpush1.msra.mxu0 %v521
    %1587 = vmatprep.subr.mxu0 0.0
    %1588 = vmatpush1.msra.mxu0 %v522
    %1589 = vmatprep.subr.mxu0 0.0
    %1590 = vmatpush1.msra.mxu0 %v523
    %1591 = vmatprep.subr.mxu0 0.0
    %1592 = vmatpush1.msra.mxu0 %v524
    %1593 = vmatprep.subr.mxu0 0.0
    %1594 = vmatpush1.msra.mxu0 %v525
    %1595 = vmatprep.subr.mxu0 0.0
    %1596 = vmatpush1.msra.mxu0 %v526
    %1597 = vmatprep.subr.mxu0 0.0
    %1598 = vmatpush1.msra.mxu0 %v527
    %1599 = vmatprep.subr.mxu0 0.0
    %1600 = vmatpush1.msra.mxu0 %v528
    %1601 = vmatprep.subr.mxu0 0.0
    %1602 = vmatpush1.msra.mxu0 %v529
    %1603 = vmatprep.subr.mxu0 0.0
    %1604 = vmatpush1.msra.mxu0 %v530
    %1605 = vmatprep.subr.mxu0 0.0
    %1606 = vmatpush1.msra.mxu0 %v531
    %1607 = vmatprep.subr.mxu0 0.0
    %1608 = vmatpush1.msra.mxu0 %v532
    %1609 = vmatprep.mubr.f32.mxu0 %v50
    %1610 = vmatmul.mubr.f32.gmra.mrb[0].mxu0 %v49
    %v1611 = vpop.f32.mrb[0].mxu0
    %v1612 = vadd.f32 %v1542, %v1611
    %v1613 = vpop.f32.mrb[0].mxu0
    %1614 = vdwg.mxu0
    %1615 = vmatprep.subr.mxu0 0.0
    %1616 = vmatpush1.msra.mxu0 %v533
    %1617 = vmatprep.subr.mxu0 0.0
    %1618 = vmatpush1.msra.mxu0 %v534
    %1619 = vmatprep.subr.mxu0 0.0
    %1620 = vmatpush1.msra.mxu0 %v535
    %1621 = vmatprep.subr.mxu0 0.0
    %1622 = vmatpush1.msra.mxu0 %v536
    %1623 = vmatprep.subr.mxu0 0.0
    %1624 = vmatpush1.msra.mxu0 %v537
    %1625 = vmatprep.subr.mxu0 0.0
    %1626 = vmatpush1.msra.mxu0 %v538
    %1627 = vmatprep.subr.mxu0 0.0
    %1628 = vmatpush1.msra.mxu0 %v539
    %1629 = vmatprep.subr.mxu0 0.0
    %1630 = vmatpush1.msra.mxu0 %v540
    %1631 = vmatprep.subr.mxu0 0.0
    %1632 = vmatpush1.msra.mxu0 %v541
    %1633 = vmatprep.subr.mxu0 0.0
    %1634 = vmatpush1.msra.mxu0 %v542
    %1635 = vmatprep.subr.mxu0 0.0
    %1636 = vmatpush1.msra.mxu0 %v543
    %1637 = vmatprep.subr.mxu0 0.0
    %1638 = vmatpush1.msra.mxu0 %v544
    %1639 = vmatprep.subr.mxu0 0.0
    %1640 = vmatpush1.msra.mxu0 %v545
    %1641 = vmatprep.subr.mxu0 0.0
    %1642 = vmatpush1.msra.mxu0 %v546
    %1643 = vmatprep.subr.mxu0 0.0
    %1644 = vmatpush1.msra.mxu0 %v547
    %1645 = vmatprep.subr.mxu0 0.0
    %1646 = vmatpush1.msra.mxu0 %v548
    %1647 = vmatprep.subr.mxu0 0.0
    %1648 = vmatpush1.msra.mxu0 %v549
    %1649 = vmatprep.subr.mxu0 0.0
    %1650 = vmatpush1.msra.mxu0 %v550
    %1651 = vmatprep.subr.mxu0 0.0
    %1652 = vmatpush1.msra.mxu0 %v551
    %1653 = vmatprep.subr.mxu0 0.0
    %1654 = vmatpush1.msra.mxu0 %v552
    %1655 = vmatprep.subr.mxu0 0.0
    %1656 = vmatpush1.msra.mxu0 %v553
    %1657 = vmatprep.subr.mxu0 0.0
    %1658 = vmatpush1.msra.mxu0 %v554
    %1659 = vmatprep.subr.mxu0 0.0
    %1660 = vmatpush1.msra.mxu0 %v555
    %1661 = vmatprep.subr.mxu0 0.0
    %1662 = vmatpush1.msra.mxu0 %v556
    %1663 = vmatprep.subr.mxu0 0.0
    %1664 = vmatpush1.msra.mxu0 %v557
    %1665 = vmatprep.subr.mxu0 0.0
    %1666 = vmatpush1.msra.mxu0 %v558
    %1667 = vmatprep.subr.mxu0 0.0
    %1668 = vmatpush1.msra.mxu0 %v559
    %1669 = vmatprep.subr.mxu0 0.0
    %1670 = vmatpush1.msra.mxu0 %v560
    %1671 = vmatprep.subr.mxu0 0.0
    %1672 = vmatpush1.msra.mxu0 %v561
    %1673 = vmatprep.subr.mxu0 0.0
    %1674 = vmatpush1.msra.mxu0 %v562
    %1675 = vmatprep.subr.mxu0 0.0
    %1676 = vmatpush1.msra.mxu0 %v563
    %1677 = vmatprep.subr.mxu0 0.0
    %1678 = vmatpush1.msra.mxu0 %v564
    %1679 = vmatprep.mubr.f32.mxu0 %v52
    %1680 = vmatmul.mubr.f32.gmra.mrb[0].mxu0 %v51
    %v1681 = vpop.f32.mrb[0].mxu0
    %v1682 = vadd.f32 %v1612, %v1681
    %v1683 = vpop.f32.mrb[0].mxu0
    %1684 = vdwg.mxu0
    %v1685 = vmul.f32 %v1682, 0.015625
    %v1686 = vld [vmem:[%s1] sm:$0xff]
    %v1687 = vld [vmem:[%s1 + $0x8] sm:$0xff]
    %v1688 = vld [vmem:[%s1 + $0x10] sm:$0xff]
    %v1689 = vld [vmem:[%s1 + $0x18] sm:$0xff]
    %v1690 = vld [vmem:[%s1 + $0x20] sm:$0xff]
    %v1691 = vld [vmem:[%s1 + $0x28] sm:$0xff]
    %v1692 = vld [vmem:[%s1 + $0x30] sm:$0xff]
    %v1693 = vld [vmem:[%s1 + $0x38] sm:$0xff]
    %vm1694 = vcmask 523264
    %v1696 = vsel %vm1694, %v1685, 0
    %1698 = vmatprep.subr.mxu0 0.0
    %1699 = vmatpush1.msra.mxu0 %v1686
    %1700 = vmatprep.subr.mxu0 0.0
    %1701 = vmatpush1.msra.mxu0 %v1687
    %1702 = vmatprep.subr.mxu0 0.0
    %1703 = vmatpush1.msra.mxu0 %v1688
    %1704 = vmatprep.subr.mxu0 0.0
    %1705 = vmatpush1.msra.mxu0 %v1689
    %1706 = vmatprep.subr.mxu0 0.0
    %1707 = vmatpush1.msra.mxu0 %v1690
    %1708 = vmatprep.subr.mxu0 0.0
    %1709 = vmatpush1.msra.mxu0 %v1691
    %1710 = vmatprep.subr.mxu0 0.0
    %1711 = vmatpush1.msra.mxu0 %v1692
    %1712 = vmatprep.subr.mxu0 0.0
    %1713 = vmatpush1.msra.mxu0 %v1693
    %1714 = vmatprep.subr.mxu0 0.0
    %1715 = vmatpush1.msra.mxu0 0.0
    %1716 = vmatprep.subr.mxu0 0.0
    %1717 = vmatpush1.msra.mxu0 0.0
    %1718 = vmatprep.subr.mxu0 0.0
    %1719 = vmatpush1.msra.mxu0 0.0
    %1720 = vmatprep.subr.mxu0 0.0
    %1721 = vmatpush1.msra.mxu0 0.0
    %1722 = vmatprep.subr.mxu0 0.0
    %1723 = vmatpush1.msra.mxu0 0.0
    %1724 = vmatprep.subr.mxu0 0.0
    %1725 = vmatpush1.msra.mxu0 0.0
    %1726 = vmatprep.subr.mxu0 0.0
    %1727 = vmatpush1.msra.mxu0 0.0
    %1728 = vmatprep.subr.mxu0 0.0
    %1729 = vmatpush1.msra.mxu0 0.0
    %1730 = vmatprep.subr.mxu0 0.0
    %1731 = vmatpush1.msra.mxu0 0.0
    %1732 = vmatprep.subr.mxu0 0.0
    %1733 = vmatpush1.msra.mxu0 0.0
    %1734 = vmatprep.subr.mxu0 0.0
    %1735 = vmatpush1.msra.mxu0 0.0
    %1736 = vmatprep.subr.mxu0 0.0
    %1737 = vmatpush1.msra.mxu0 0.0
    %1738 = vmatprep.subr.mxu0 0.0
    %1739 = vmatpush1.msra.mxu0 0.0
    %1740 = vmatprep.subr.mxu0 0.0
    %1741 = vmatpush1.msra.mxu0 0.0
    %1742 = vmatprep.subr.mxu0 0.0
    %1743 = vmatpush1.msra.mxu0 0.0
    %1744 = vmatprep.subr.mxu0 0.0
    %1745 = vmatpush1.msra.mxu0 0.0
    %1746 = vmatprep.subr.mxu0 0.0
    %1747 = vmatpush1.msra.mxu0 0.0
    %1748 = vmatprep.subr.mxu0 0.0
    %1749 = vmatpush1.msra.mxu0 0.0
    %1750 = vmatprep.subr.mxu0 0.0
    %1751 = vmatpush1.msra.mxu0 0.0
    %1752 = vmatprep.subr.mxu0 0.0
    %1753 = vmatpush1.msra.mxu0 0.0
    %1754 = vmatprep.subr.mxu0 0.0
    %1755 = vmatpush1.msra.mxu0 0.0
    %1756 = vmatprep.subr.mxu0 0.0
    %1757 = vmatpush1.msra.mxu0 0.0
    %1758 = vmatprep.subr.mxu0 0.0
    %1759 = vmatpush1.msra.mxu0 0.0
    %1760 = vmatprep.subr.mxu0 0.0
    %1761 = vmatpush1.msra.mxu0 0.0
    %1762 = vmatprep.mubr.f32.mxu0 0.0
    %1763 = vmatmul.mubr.f32.gmra.mrb[0].mxu0 %v1696
    %v1764 = vpop.f32.mrb[0].mxu0
    %v1765 = vadd.f32 0.0, %v1764
    %v1766 = vpop.f32.mrb[0].mxu0
    %1767 = vdwg.mxu0
    %v1768 = vmax.f32 %v1765, 0.0
    %v1769 = vld [vmem:[%s2] sm:$0xf]
    %vm1770 = vcmask 31744
    %v1772 = vsel %vm1770, %v1768, 0
    %vm1774 = vcmask 1043456
    %v1776 = vsel %vm1774, %v1769, 0
    %1778 = vmatprep.subr.mxu0 0.0
    %1779 = vmatpush1.msra.mxu0 %v1776
    %1780 = vmatprep.subr.mxu0 0.0
    %1781 = vmatpush1.msra.mxu0 0.0
    %1782 = vmatprep.subr.mxu0 0.0
    %1783 = vmatpush1.msra.mxu0 0.0
    %1784 = vmatprep.subr.mxu0 0.0
    %1785 = vmatpush1.msra.mxu0 0.0
    %1786 = vmatprep.subr.mxu0 0.0
    %1787 = vmatpush1.msra.mxu0 0.0
    %1788 = vmatprep.subr.mxu0 0.0
    %1789 = vmatpush1.msra.mxu0 0.0
    %1790 = vmatprep.subr.mxu0 0.0
    %1791 = vmatpush1.msra.mxu0 0.0
    %1792 = vmatprep.subr.mxu0 0.0
    %1793 = vmatpush1.msra.mxu0 0.0
    %1794 = vmatprep.subr.mxu0 0.0
    %1795 = vmatpush1.msra.mxu0 0.0
    %1796 = vmatprep.subr.mxu0 0.0
    %1797 = vmatpush1.msra.mxu0 0.0
    %1798 = vmatprep.subr.mxu0 0.0
    %1799 = vmatpush1.msra.mxu0 0.0
    %1800 = vmatprep.subr.mxu0 0.0
    %1801 = vmatpush1.msra.mxu0 0.0
    %1802 = vmatprep.subr.mxu0 0.0
    %1803 = vmatpush1.msra.mxu0 0.0
    %1804 = vmatprep.subr.mxu0 0.0
    %1805 = vmatpush1.msra.mxu0 0.0
    %1806 = vmatprep.subr.mxu0 0.0
    %1807 = vmatpush1.msra.mxu0 0.0
    %1808 = vmatprep.subr.mxu0 0.0
    %1809 = vmatpush1.msra.mxu0 0.0
    %1810 = vmatprep.subr.mxu0 0.0
    %1811 = vmatpush1.msra.mxu0 0.0
    %1812 = vmatprep.subr.mxu0 0.0
    %1813 = vmatpush1.msra.mxu0 0.0
    %1814 = vmatprep.subr.mxu0 0.0
    %1815 = vmatpush1.msra.mxu0 0.0
    %1816 = vmatprep.subr.mxu0 0.0
    %1817 = vmatpush1.msra.mxu0 0.0
    %1818 = vmatprep.subr.mxu0 0.0
    %1819 = vmatpush1.msra.mxu0 0.0
    %1820 = vmatprep.subr.mxu0 0.0
    %1821 = vmatpush1.msra.mxu0 0.0
    %1822 = vmatprep.subr.mxu0 0.0
    %1823 = vmatpush1.msra.mxu0 0.0
    %1824 = vmatprep.subr.mxu0 0.0
    %1825 = vmatpush1.msra.mxu0 0.0
    %1826 = vmatprep.subr.mxu0 0.0
    %1827 = vmatpush1.msra.mxu0 0.0
    %1828 = vmatprep.subr.mxu0 0.0
    %1829 = vmatpush1.msra.mxu0 0.0
    %1830 = vmatprep.subr.mxu0 0.0
    %1831 = vmatpush1.msra.mxu0 0.0
    %1832 = vmatprep.subr.mxu0 0.0
    %1833 = vmatpush1.msra.mxu0 0.0
    %1834 = vmatprep.subr.mxu0 0.0
    %1835 = vmatpush1.msra.mxu0 0.0
    %1836 = vmatprep.subr.mxu0 0.0
    %1837 = vmatpush1.msra.mxu0 0.0
    %1838 = vmatprep.subr.mxu0 0.0
    %1839 = vmatpush1.msra.mxu0 0.0
    %1840 = vmatprep.subr.mxu0 0.0
    %1841 = vmatpush1.msra.mxu0 0.0
    %1842 = vmatprep.mubr.f32.mxu0 0.0
    %1843 = vmatmul.mubr.f32.gmra.mrb[0].mxu0 %v1772
    %v1844 = vpop.f32.mrb[0].mxu0
    %v1845 = vadd.f32 0.0, %v1844
    %v1846 = vpop.f32.mrb[0].mxu0
    %1847 = vdwg.mxu0
    %v1848 = vxor.u32 %v1845, 2147483648
    %v1849 = vmul.f32 %v1848, 1.442695
    %v1850 = vpow.pop %v1849
    %v1851 = vadd.f32 %v1850, 1.0
    %v1852 = vrcp.pop %v1851
    %v1853 = vmul.f32 1.0, %v1852
    %v1854 = vld [vmem:[%s4] sm:$0xff]
    %v1855 = vld [vmem:[%s4 + $0x8] sm:$0xff]
    %v1856 = vld [vmem:[%s4 + $0x10] sm:$0xff]
    %v1857 = vld [vmem:[%s4 + $0x18] sm:$0xff]
    %v1858 = vld [vmem:[%s4 + $0x20] sm:$0xff]
    %v1859 = vld [vmem:[%s4 + $0x28] sm:$0xff]
    %v1860 = vld [vmem:[%s4 + $0x30] sm:$0xff]
    %v1861 = vld [vmem:[%s4 + $0x38] sm:$0xff]
    %v1862 = vld [vmem:[%s4 + $0x40] sm:$0xff]
    %v1863 = vld [vmem:[%s4 + $0x48] sm:$0xff]
    %v1864 = vld [vmem:[%s4 + $0x50] sm:$0xff]
    %v1865 = vld [vmem:[%s4 + $0x58] sm:$0xff]
    %v1866 = vld [vmem:[%s4 + $0x60] sm:$0xff]
    %v1867 = vld [vmem:[%s4 + $0x68] sm:$0xff]
    %v1868 = vld [vmem:[%s4 + $0x70] sm:$0xff]
    %v1869 = vld [vmem:[%s4 + $0x78] sm:$0xff]
    %v1870 = vld [vmem:[%s4 + $0x80] sm:$0xff]
    %v1871 = vld [vmem:[%s4 + $0x88] sm:$0xff]
    %v1872 = vld [vmem:[%s4 + $0x90] sm:$0xff]
    %v1873 = vld [vmem:[%s4 + $0x98] sm:$0xff]
    %v1874 = vld [vmem:[%s4 + $0xa0] sm:$0xff]
    %v1875 = vld [vmem:[%s4 + $0xa8] sm:$0xff]
    %v1876 = vld [vmem:[%s4 + $0xb0] sm:$0xff]
    %v1877 = vld [vmem:[%s4 + $0xb8] sm:$0xff]
    %v1878 = vld [vmem:[%s4 + $0xc0] sm:$0xff]
    %v1879 = vld [vmem:[%s4 + $0xc8] sm:$0xff]
    %v1880 = vld [vmem:[%s4 + $0xd0] sm:$0xff]
    %v1881 = vld [vmem:[%s4 + $0xd8] sm:$0xff]
    %v1882 = vld [vmem:[%s4 + $0xe0] sm:$0xff]
    %v1883 = vld [vmem:[%s4 + $0xe8] sm:$0xff]
    %v1884 = vld [vmem:[%s4 + $0xf0] sm:$0xff]
    %v1885 = vld [vmem:[%s4 + $0xf8] sm:$0xff]
    %v1886 = vld [vmem:[%s4 + $0x100] sm:$0xff]
    %v1887 = vld [vmem:[%s4 + $0x108] sm:$0xff]
    %v1888 = vld [vmem:[%s4 + $0x110] sm:$0xff]
    %v1889 = vld [vmem:[%s4 + $0x118] sm:$0xff]
    %v1890 = vld [vmem:[%s4 + $0x120] sm:$0xff]
    %v1891 = vld [vmem:[%s4 + $0x128] sm:$0xff]
    %v1892 = vld [vmem:[%s4 + $0x130] sm:$0xff]
    %v1893 = vld [vmem:[%s4 + $0x138] sm:$0xff]
    %v1894 = vld [vmem:[%s4 + $0x140] sm:$0xff]
    %v1895 = vld [vmem:[%s4 + $0x148] sm:$0xff]
    %v1896 = vld [vmem:[%s4 + $0x150] sm:$0xff]
    %v1897 = vld [vmem:[%s4 + $0x158] sm:$0xff]
    %v1898 = vld [vmem:[%s4 + $0x160] sm:$0xff]
    %v1899 = vld [vmem:[%s4 + $0x168] sm:$0xff]
    %v1900 = vld [vmem:[%s4 + $0x170] sm:$0xff]
    %v1901 = vld [vmem:[%s4 + $0x178] sm:$0xff]
    %v1902 = vld [vmem:[%s4 + $0x180] sm:$0xff]
    %v1903 = vld [vmem:[%s4 + $0x188] sm:$0xff]
    %v1904 = vld [vmem:[%s4 + $0x190] sm:$0xff]
    %v1905 = vld [vmem:[%s4 + $0x198] sm:$0xff]
    %v1906 = vld [vmem:[%s4 + $0x1a0] sm:$0xff]
    %v1907 = vld [vmem:[%s4 + $0x1a8] sm:$0xff]
    %v1908 = vld [vmem:[%s4 + $0x1b0] sm:$0xff]
    %v1909 = vld [vmem:[%s4 + $0x1b8] sm:$0xff]
    %v1910 = vld [vmem:[%s4 + $0x1c0] sm:$0xff]
    %v1911 = vld [vmem:[%s4 + $0x1c8] sm:$0xff]
    %v1912 = vld [vmem:[%s4 + $0x1d0] sm:$0xff]
    %v1913 = vld [vmem:[%s4 + $0x1d8] sm:$0xff]
    %v1914 = vld [vmem:[%s4 + $0x1e0] sm:$0xff]
    %v1915 = vld [vmem:[%s4 + $0x1e8] sm:$0xff]
    %v1916 = vld [vmem:[%s4 + $0x1f0] sm:$0xff]
    %v1917 = vld [vmem:[%s4 + $0x1f8] sm:$0xff]
    %v1918 = vld [vmem:[%s4 + $0x200] sm:$0xff]
    %v1919 = vld [vmem:[%s4 + $0x208] sm:$0xff]
    %v1920 = vld [vmem:[%s4 + $0x210] sm:$0xff]
    %v1921 = vld [vmem:[%s4 + $0x218] sm:$0xff]
    %v1922 = vld [vmem:[%s4 + $0x220] sm:$0xff]
    %v1923 = vld [vmem:[%s4 + $0x228] sm:$0xff]
    %v1924 = vld [vmem:[%s4 + $0x230] sm:$0xff]
    %v1925 = vld [vmem:[%s4 + $0x238] sm:$0xff]
    %v1926 = vld [vmem:[%s4 + $0x240] sm:$0xff]
    %v1927 = vld [vmem:[%s4 + $0x248] sm:$0xff]
    %v1928 = vld [vmem:[%s4 + $0x250] sm:$0xff]
    %v1929 = vld [vmem:[%s4 + $0x258] sm:$0xff]
    %v1930 = vld [vmem:[%s4 + $0x260] sm:$0xff]
    %v1931 = vld [vmem:[%s4 + $0x268] sm:$0xff]
    %v1932 = vld [vmem:[%s4 + $0x270] sm:$0xff]
    %v1933 = vld [vmem:[%s4 + $0x278] sm:$0xff]
    %v1934 = vld [vmem:[%s4 + $0x280] sm:$0xff]
    %v1935 = vld [vmem:[%s4 + $0x288] sm:$0xff]
    %v1936 = vld [vmem:[%s4 + $0x290] sm:$0xff]
    %v1937 = vld [vmem:[%s4 + $0x298] sm:$0xff]
    %v1938 = vld [vmem:[%s4 + $0x2a0] sm:$0xff]
    %v1939 = vld [vmem:[%s4 + $0x2a8] sm:$0xff]
    %v1940 = vld [vmem:[%s4 + $0x2b0] sm:$0xff]
    %v1941 = vld [vmem:[%s4 + $0x2b8] sm:$0xff]
    %v1942 = vld [vmem:[%s4 + $0x2c0] sm:$0xff]
    %v1943 = vld [vmem:[%s4 + $0x2c8] sm:$0xff]
    %v1944 = vld [vmem:[%s4 + $0x2d0] sm:$0xff]
    %v1945 = vld [vmem:[%s4 + $0x2d8] sm:$0xff]
    %v1946 = vld [vmem:[%s4 + $0x2e0] sm:$0xff]
    %v1947 = vld [vmem:[%s4 + $0x2e8] sm:$0xff]
    %v1948 = vld [vmem:[%s4 + $0x2f0] sm:$0xff]
    %v1949 = vld [vmem:[%s4 + $0x2f8] sm:$0xff]
    %v1950 = vld [vmem:[%s4 + $0x300] sm:$0xff]
    %v1951 = vld [vmem:[%s4 + $0x308] sm:$0xff]
    %v1952 = vld [vmem:[%s4 + $0x310] sm:$0xff]
    %v1953 = vld [vmem:[%s4 + $0x318] sm:$0xff]
    %v1954 = vld [vmem:[%s4 + $0x320] sm:$0xff]
    %v1955 = vld [vmem:[%s4 + $0x328] sm:$0xff]
    %v1956 = vld [vmem:[%s4 + $0x330] sm:$0xff]
    %v1957 = vld [vmem:[%s4 + $0x338] sm:$0xff]
    %v1958 = vld [vmem:[%s4 + $0x340] sm:$0xff]
    %v1959 = vld [vmem:[%s4 + $0x348] sm:$0xff]
    %v1960 = vld [vmem:[%s4 + $0x350] sm:$0xff]
    %v1961 = vld [vmem:[%s4 + $0x358] sm:$0xff]
    %v1962 = vld [vmem:[%s4 + $0x360] sm:$0xff]
    %v1963 = vld [vmem:[%s4 + $0x368] sm:$0xff]
    %v1964 = vld [vmem:[%s4 + $0x370] sm:$0xff]
    %v1965 = vld [vmem:[%s4 + $0x378] sm:$0xff]
    %v1966 = vld [vmem:[%s4 + $0x380] sm:$0xff]
    %v1967 = vld [vmem:[%s4 + $0x388] sm:$0xff]
    %v1968 = vld [vmem:[%s4 + $0x390] sm:$0xff]
    %v1969 = vld [vmem:[%s4 + $0x398] sm:$0xff]
    %v1970 = vld [vmem:[%s4 + $0x3a0] sm:$0xff]
    %v1971 = vld [vmem:[%s4 + $0x3a8] sm:$0xff]
    %v1972 = vld [vmem:[%s4 + $0x3b0] sm:$0xff]
    %v1973 = vld [vmem:[%s4 + $0x3b8] sm:$0xff]
    %v1974 = vld [vmem:[%s4 + $0x3c0] sm:$0xff]
    %v1975 = vld [vmem:[%s4 + $0x3c8] sm:$0xff]
    %v1976 = vld [vmem:[%s4 + $0x3d0] sm:$0xff]
    %v1977 = vld [vmem:[%s4 + $0x3d8] sm:$0xff]
    %v1978 = vld [vmem:[%s4 + $0x3e0] sm:$0xff]
    %v1979 = vld [vmem:[%s4 + $0x3e8] sm:$0xff]
    %v1980 = vld [vmem:[%s4 + $0x3f0] sm:$0xff]
    %v1981 = vld [vmem:[%s4 + $0x3f8] sm:$0xff]
    %v1982 = vld [vmem:[%s4 + $0x400] sm:$0xff]
    %v1983 = vld [vmem:[%s4 + $0x408] sm:$0xff]
    %v1984 = vld [vmem:[%s4 + $0x410] sm:$0xff]
    %v1985 = vld [vmem:[%s4 + $0x418] sm:$0xff]
    %v1986 = vld [vmem:[%s4 + $0x420] sm:$0xff]
    %v1987 = vld [vmem:[%s4 + $0x428] sm:$0xff]
    %v1988 = vld [vmem:[%s4 + $0x430] sm:$0xff]
    %v1989 = vld [vmem:[%s4 + $0x438] sm:$0xff]
    %v1990 = vld [vmem:[%s4 + $0x440] sm:$0xff]
    %v1991 = vld [vmem:[%s4 + $0x448] sm:$0xff]
    %v1992 = vld [vmem:[%s4 + $0x450] sm:$0xff]
    %v1993 = vld [vmem:[%s4 + $0x458] sm:$0xff]
    %v1994 = vld [vmem:[%s4 + $0x460] sm:$0xff]
    %v1995 = vld [vmem:[%s4 + $0x468] sm:$0xff]
    %v1996 = vld [vmem:[%s4 + $0x470] sm:$0xff]
    %v1997 = vld [vmem:[%s4 + $0x478] sm:$0xff]
    %v1998 = vld [vmem:[%s4 + $0x480] sm:$0xff]
    %v1999 = vld [vmem:[%s4 + $0x488] sm:$0xff]
    %v2000 = vld [vmem:[%s4 + $0x490] sm:$0xff]
    %v2001 = vld [vmem:[%s4 + $0x498] sm:$0xff]
    %v2002 = vld [vmem:[%s4 + $0x4a0] sm:$0xff]
    %v2003 = vld [vmem:[%s4 + $0x4a8] sm:$0xff]
    %v2004 = vld [vmem:[%s4 + $0x4b0] sm:$0xff]
    %v2005 = vld [vmem:[%s4 + $0x4b8] sm:$0xff]
    %v2006 = vld [vmem:[%s4 + $0x4c0] sm:$0xff]
    %v2007 = vld [vmem:[%s4 + $0x4c8] sm:$0xff]
    %v2008 = vld [vmem:[%s4 + $0x4d0] sm:$0xff]
    %v2009 = vld [vmem:[%s4 + $0x4d8] sm:$0xff]
    %v2010 = vld [vmem:[%s4 + $0x4e0] sm:$0xff]
    %v2011 = vld [vmem:[%s4 + $0x4e8] sm:$0xff]
    %v2012 = vld [vmem:[%s4 + $0x4f0] sm:$0xff]
    %v2013 = vld [vmem:[%s4 + $0x4f8] sm:$0xff]
    %v2014 = vld [vmem:[%s4 + $0x500] sm:$0xff]
    %v2015 = vld [vmem:[%s4 + $0x508] sm:$0xff]
    %v2016 = vld [vmem:[%s4 + $0x510] sm:$0xff]
    %v2017 = vld [vmem:[%s4 + $0x518] sm:$0xff]
    %v2018 = vld [vmem:[%s4 + $0x520] sm:$0xff]
    %v2019 = vld [vmem:[%s4 + $0x528] sm:$0xff]
    %v2020 = vld [vmem:[%s4 + $0x530] sm:$0xff]
    %v2021 = vld [vmem:[%s4 + $0x538] sm:$0xff]
    %v2022 = vld [vmem:[%s4 + $0x540] sm:$0xff]
    %v2023 = vld [vmem:[%s4 + $0x548] sm:$0xff]
    %v2024 = vld [vmem:[%s4 + $0x550] sm:$0xff]
    %v2025 = vld [vmem:[%s4 + $0x558] sm:$0xff]
    %v2026 = vld [vmem:[%s4 + $0x560] sm:$0xff]
    %v2027 = vld [vmem:[%s4 + $0x568] sm:$0xff]
    %v2028 = vld [vmem:[%s4 + $0x570] sm:$0xff]
    %v2029 = vld [vmem:[%s4 + $0x578] sm:$0xff]
    %v2030 = vld [vmem:[%s4 + $0x580] sm:$0xff]
    %v2031 = vld [vmem:[%s4 + $0x588] sm:$0xff]
    %v2032 = vld [vmem:[%s4 + $0x590] sm:$0xff]
    %v2033 = vld [vmem:[%s4 + $0x598] sm:$0xff]
    %v2034 = vld [vmem:[%s4 + $0x5a0] sm:$0xff]
    %v2035 = vld [vmem:[%s4 + $0x5a8] sm:$0xff]
    %v2036 = vld [vmem:[%s4 + $0x5b0] sm:$0xff]
    %v2037 = vld [vmem:[%s4 + $0x5b8] sm:$0xff]
    %v2038 = vld [vmem:[%s4 + $0x5c0] sm:$0xff]
    %v2039 = vld [vmem:[%s4 + $0x5c8] sm:$0xff]
    %v2040 = vld [vmem:[%s4 + $0x5d0] sm:$0xff]
    %v2041 = vld [vmem:[%s4 + $0x5d8] sm:$0xff]
    %v2042 = vld [vmem:[%s4 + $0x5e0] sm:$0xff]
    %v2043 = vld [vmem:[%s4 + $0x5e8] sm:$0xff]
    %v2044 = vld [vmem:[%s4 + $0x5f0] sm:$0xff]
    %v2045 = vld [vmem:[%s4 + $0x5f8] sm:$0xff]
    %v2046 = vld [vmem:[%s4 + $0x600] sm:$0xff]
    %v2047 = vld [vmem:[%s4 + $0x608] sm:$0xff]
    %v2048 = vld [vmem:[%s4 + $0x610] sm:$0xff]
    %v2049 = vld [vmem:[%s4 + $0x618] sm:$0xff]
    %v2050 = vld [vmem:[%s4 + $0x620] sm:$0xff]
    %v2051 = vld [vmem:[%s4 + $0x628] sm:$0xff]
    %v2052 = vld [vmem:[%s4 + $0x630] sm:$0xff]
    %v2053 = vld [vmem:[%s4 + $0x638] sm:$0xff]
    %v2054 = vld [vmem:[%s4 + $0x640] sm:$0xff]
    %v2055 = vld [vmem:[%s4 + $0x648] sm:$0xff]
    %v2056 = vld [vmem:[%s4 + $0x650] sm:$0xff]
    %v2057 = vld [vmem:[%s4 + $0x658] sm:$0xff]
    %v2058 = vld [vmem:[%s4 + $0x660] sm:$0xff]
    %v2059 = vld [vmem:[%s4 + $0x668] sm:$0xff]
    %v2060 = vld [vmem:[%s4 + $0x670] sm:$0xff]
    %v2061 = vld [vmem:[%s4 + $0x678] sm:$0xff]
    %v2062 = vld [vmem:[%s4 + $0x680] sm:$0xff]
    %v2063 = vld [vmem:[%s4 + $0x688] sm:$0xff]
    %v2064 = vld [vmem:[%s4 + $0x690] sm:$0xff]
    %v2065 = vld [vmem:[%s4 + $0x698] sm:$0xff]
    %v2066 = vld [vmem:[%s4 + $0x6a0] sm:$0xff]
    %v2067 = vld [vmem:[%s4 + $0x6a8] sm:$0xff]
    %v2068 = vld [vmem:[%s4 + $0x6b0] sm:$0xff]
    %v2069 = vld [vmem:[%s4 + $0x6b8] sm:$0xff]
    %v2070 = vld [vmem:[%s4 + $0x6c0] sm:$0xff]
    %v2071 = vld [vmem:[%s4 + $0x6c8] sm:$0xff]
    %v2072 = vld [vmem:[%s4 + $0x6d0] sm:$0xff]
    %v2073 = vld [vmem:[%s4 + $0x6d8] sm:$0xff]
    %v2074 = vld [vmem:[%s4 + $0x6e0] sm:$0xff]
    %v2075 = vld [vmem:[%s4 + $0x6e8] sm:$0xff]
    %v2076 = vld [vmem:[%s4 + $0x6f0] sm:$0xff]
    %v2077 = vld [vmem:[%s4 + $0x6f8] sm:$0xff]
    %v2078 = vld [vmem:[%s4 + $0x700] sm:$0xff]
    %v2079 = vld [vmem:[%s4 + $0x708] sm:$0xff]
    %v2080 = vld [vmem:[%s4 + $0x710] sm:$0xff]
    %v2081 = vld [vmem:[%s4 + $0x718] sm:$0xff]
    %v2082 = vld [vmem:[%s4 + $0x720] sm:$0xff]
    %v2083 = vld [vmem:[%s4 + $0x728] sm:$0xff]
    %v2084 = vld [vmem:[%s4 + $0x730] sm:$0xff]
    %v2085 = vld [vmem:[%s4 + $0x738] sm:$0xff]
    %v2086 = vld [vmem:[%s4 + $0x740] sm:$0xff]
    %v2087 = vld [vmem:[%s4 + $0x748] sm:$0xff]
    %v2088 = vld [vmem:[%s4 + $0x750] sm:$0xff]
    %v2089 = vld [vmem:[%s4 + $0x758] sm:$0xff]
    %v2090 = vld [vmem:[%s4 + $0x760] sm:$0xff]
    %v2091 = vld [vmem:[%s4 + $0x768] sm:$0xff]
    %v2092 = vld [vmem:[%s4 + $0x770] sm:$0xff]
    %v2093 = vld [vmem:[%s4 + $0x778] sm:$0xff]
    %v2094 = vld [vmem:[%s4 + $0x780] sm:$0xff]
    %v2095 = vld [vmem:[%s4 + $0x788] sm:$0xff]
    %v2096 = vld [vmem:[%s4 + $0x790] sm:$0xff]
    %v2097 = vld [vmem:[%s4 + $0x798] sm:$0xff]
    %v2098 = vld [vmem:[%s4 + $0x7a0] sm:$0xff]
    %v2099 = vld [vmem:[%s4 + $0x7a8] sm:$0xff]
    %v2100 = vld [vmem:[%s4 + $0x7b0] sm:$0xff]
    %v2101 = vld [vmem:[%s4 + $0x7b8] sm:$0xff]
    %v2102 = vld [vmem:[%s4 + $0x7c0] sm:$0xff]
    %v2103 = vld [vmem:[%s4 + $0x7c8] sm:$0xff]
    %v2104 = vld [vmem:[%s4 + $0x7d0] sm:$0xff]
    %v2105 = vld [vmem:[%s4 + $0x7d8] sm:$0xff]
    %v2106 = vld [vmem:[%s4 + $0x7e0] sm:$0xff]
    %v2107 = vld [vmem:[%s4 + $0x7e8] sm:$0xff]
    %v2108 = vld [vmem:[%s4 + $0x7f0] sm:$0xff]
    %v2109 = vld [vmem:[%s4 + $0x7f8] sm:$0xff]
    %v2111 = vsel %vm1694, %v1853, 0
    %2113 = vmatprep.subr.mxu0 %v1855
    %2114 = vmatpush1.msra.mxu0 %v1854
    %2115 = vmatprep.subr.mxu0 %v1887
    %2116 = vmatpush1.msra.mxu0 %v1886
    %2117 = vmatprep.subr.mxu0 %v1919
    %2118 = vmatpush1.msra.mxu0 %v1918
    %2119 = vmatprep.subr.mxu0 %v1951
    %2120 = vmatpush1.msra.mxu0 %v1950
    %2121 = vmatprep.subr.mxu0 %v1983
    %2122 = vmatpush1.msra.mxu0 %v1982
    %2123 = vmatprep.subr.mxu0 %v2015
    %2124 = vmatpush1.msra.mxu0 %v2014
    %2125 = vmatprep.subr.mxu0 %v2047
    %2126 = vmatpush1.msra.mxu0 %v2046
    %2127 = vmatprep.subr.mxu0 %v2079
    %2128 = vmatpush1.msra.mxu0 %v2078
    %2129 = vmatprep.subr.mxu0 0.0
    %2130 = vmatpush1.msra.mxu0 0.0
    %2131 = vmatprep.subr.mxu0 0.0
    %2132 = vmatpush1.msra.mxu0 0.0
    %2133 = vmatprep.subr.mxu0 0.0
    %2134 = vmatpush1.msra.mxu0 0.0
    %2135 = vmatprep.subr.mxu0 0.0
    %2136 = vmatpush1.msra.mxu0 0.0
    %2137 = vmatprep.subr.mxu0 0.0
    %2138 = vmatpush1.msra.mxu0 0.0
    %2139 = vmatprep.subr.mxu0 0.0
    %2140 = vmatpush1.msra.mxu0 0.0
    %2141 = vmatprep.subr.mxu0 0.0
    %2142 = vmatpush1.msra.mxu0 0.0
    %2143 = vmatprep.subr.mxu0 0.0
    %2144 = vmatpush1.msra.mxu0 0.0
    %2145 = vmatprep.subr.mxu0 0.0
    %2146 = vmatpush1.msra.mxu0 0.0
    %2147 = vmatprep.subr.mxu0 0.0
    %2148 = vmatpush1.msra.mxu0 0.0
    %2149 = vmatprep.subr.mxu0 0.0
    %2150 = vmatpush1.msra.mxu0 0.0
    %2151 = vmatprep.subr.mxu0 0.0
    %2152 = vmatpush1.msra.mxu0 0.0
    %2153 = vmatprep.subr.mxu0 0.0
    %2154 = vmatpush1.msra.mxu0 0.0
    %2155 = vmatprep.subr.mxu0 0.0
    %2156 = vmatpush1.msra.mxu0 0.0
    %2157 = vmatprep.subr.mxu0 0.0
    %2158 = vmatpush1.msra.mxu0 0.0
    %2159 = vmatprep.subr.mxu0 0.0
    %2160 = vmatpush1.msra.mxu0 0.0
    %2161 = vmatprep.subr.mxu0 0.0
    %2162 = vmatpush1.msra.mxu0 0.0
    %2163 = vmatprep.subr.mxu0 0.0
    %2164 = vmatpush1.msra.mxu0 0.0
    %2165 = vmatprep.subr.mxu0 0.0
    %2166 = vmatpush1.msra.mxu0 0.0
    %2167 = vmatprep.subr.mxu0 0.0
    %2168 = vmatpush1.msra.mxu0 0.0
    %2169 = vmatprep.subr.mxu0 0.0
    %2170 = vmatpush1.msra.mxu0 0.0
    %2171 = vmatprep.subr.mxu0 0.0
    %2172 = vmatpush1.msra.mxu0 0.0
    %2173 = vmatprep.subr.mxu0 0.0
    %2174 = vmatpush1.msra.mxu0 0.0
    %2175 = vmatprep.subr.mxu0 0.0
    %2176 = vmatpush1.msra.mxu0 0.0
    %2177 = vmatprep.mubr.f32.mxu0 0.0
    %2178 = vmatmul.mubr.f32.gmra.mrb[0].mxu0 %v2111
    %v2179 = vpop.f32.mrb[0].mxu0
    %v2180 = vadd.f32 0.0, %v2179
    %v2181 = vpop.f32.mrb[0].mxu0
    %v2182 = vadd.f32 0.0, %v2181
    %2183 = vdwg.mxu0
    %2184 = vmatprep.subr.mxu0 %v1857
    %2185 = vmatpush1.msra.mxu0 %v1856
    %2186 = vmatprep.subr.mxu0 %v1889
    %2187 = vmatpush1.msra.mxu0 %v1888
    %2188 = vmatprep.subr.mxu0 %v1921
    %2189 = vmatpush1.msra.mxu0 %v1920
    %2190 = vmatprep.subr.mxu0 %v1953
    %2191 = vmatpush1.msra.mxu0 %v1952
    %2192 = vmatprep.subr.mxu0 %v1985
    %2193 = vmatpush1.msra.mxu0 %v1984
    %2194 = vmatprep.subr.mxu0 %v2017
    %2195 = vmatpush1.msra.mxu0 %v2016
    %2196 = vmatprep.subr.mxu0 %v2049
    %2197 = vmatpush1.msra.mxu0 %v2048
    %2198 = vmatprep.subr.mxu0 %v2081
    %2199 = vmatpush1.msra.mxu0 %v2080
    %2200 = vmatprep.subr.mxu0 0.0
    %2201 = vmatpush1.msra.mxu0 0.0
    %2202 = vmatprep.subr.mxu0 0.0
    %2203 = vmatpush1.msra.mxu0 0.0
    %2204 = vmatprep.subr.mxu0 0.0
    %2205 = vmatpush1.msra.mxu0 0.0
    %2206 = vmatprep.subr.mxu0 0.0
    %2207 = vmatpush1.msra.mxu0 0.0
    %2208 = vmatprep.subr.mxu0 0.0
    %2209 = vmatpush1.msra.mxu0 0.0
    %2210 = vmatprep.subr.mxu0 0.0
    %2211 = vmatpush1.msra.mxu0 0.0
    %2212 = vmatprep.subr.mxu0 0.0
    %2213 = vmatpush1.msra.mxu0 0.0
    %2214 = vmatprep.subr.mxu0 0.0
    %2215 = vmatpush1.msra.mxu0 0.0
    %2216 = vmatprep.subr.mxu0 0.0
    %2217 = vmatpush1.msra.mxu0 0.0
    %2218 = vmatprep.subr.mxu0 0.0
    %2219 = vmatpush1.msra.mxu0 0.0
    %2220 = vmatprep.subr.mxu0 0.0
    %2221 = vmatpush1.msra.mxu0 0.0
    %2222 = vmatprep.subr.mxu0 0.0
    %2223 = vmatpush1.msra.mxu0 0.0
    %2224 = vmatprep.subr.mxu0 0.0
    %2225 = vmatpush1.msra.mxu0 0.0
    %2226 = vmatprep.subr.mxu0 0.0
    %2227 = vmatpush1.msra.mxu0 0.0
    %2228 = vmatprep.subr.mxu0 0.0
    %2229 = vmatpush1.msra.mxu0 0.0
    %2230 = vmatprep.subr.mxu0 0.0
    %2231 = vmatpush1.msra.mxu0 0.0
    %2232 = vmatprep.subr.mxu0 0.0
    %2233 = vmatpush1.msra.mxu0 0.0
    %2234 = vmatprep.subr.mxu0 0.0
    %2235 = vmatpush1.msra.mxu0 0.0
    %2236 = vmatprep.subr.mxu0 0.0
    %2237 = vmatpush1.msra.mxu0 0.0
    %2238 = vmatprep.subr.mxu0 0.0
    %2239 = vmatpush1.msra.mxu0 0.0
    %2240 = vmatprep.subr.mxu0 0.0
    %2241 = vmatpush1.msra.mxu0 0.0
    %2242 = vmatprep.subr.mxu0 0.0
    %2243 = vmatpush1.msra.mxu0 0.0
    %2244 = vmatprep.subr.mxu0 0.0
    %2245 = vmatpush1.msra.mxu0 0.0
    %2246 = vmatprep.subr.mxu0 0.0
    %2247 = vmatpush1.msra.mxu0 0.0
    %2248 = vmatprep.mubr.f32.mxu0 0.0
    %2249 = vmatmul.mubr.f32.gmra.mrb[0].mxu0 %v2111
    %v2250 = vpop.f32.mrb[0].mxu0
    %v2251 = vadd.f32 0.0, %v2250
    %v2252 = vpop.f32.mrb[0].mxu0
    %v2253 = vadd.f32 0.0, %v2252
    %2254 = vdwg.mxu0
    %2255 = vmatprep.subr.mxu0 %v1859
    %2256 = vmatpush1.msra.mxu0 %v1858
    %2257 = vmatprep.subr.mxu0 %v1891
    %2258 = vmatpush1.msra.mxu0 %v1890
    %2259 = vmatprep.subr.mxu0 %v1923
    %2260 = vmatpush1.msra.mxu0 %v1922
    %2261 = vmatprep.subr.mxu0 %v1955
    %2262 = vmatpush1.msra.mxu0 %v1954
    %2263 = vmatprep.subr.mxu0 %v1987
    %2264 = vmatpush1.msra.mxu0 %v1986
    %2265 = vmatprep.subr.mxu0 %v2019
    %2266 = vmatpush1.msra.mxu0 %v2018
    %2267 = vmatprep.subr.mxu0 %v2051
    %2268 = vmatpush1.msra.mxu0 %v2050
    %2269 = vmatprep.subr.mxu0 %v2083
    %2270 = vmatpush1.msra.mxu0 %v2082
    %2271 = vmatprep.subr.mxu0 0.0
    %2272 = vmatpush1.msra.mxu0 0.0
    %2273 = vmatprep.subr.mxu0 0.0
    %2274 = vmatpush1.msra.mxu0 0.0
    %2275 = vmatprep.subr.mxu0 0.0
    %2276 = vmatpush1.msra.mxu0 0.0
    %2277 = vmatprep.subr.mxu0 0.0
    %2278 = vmatpush1.msra.mxu0 0.0
    %2279 = vmatprep.subr.mxu0 0.0
    %2280 = vmatpush1.msra.mxu0 0.0
    %2281 = vmatprep.subr.mxu0 0.0
    %2282 = vmatpush1.msra.mxu0 0.0
    %2283 = vmatprep.subr.mxu0 0.0
    %2284 = vmatpush1.msra.mxu0 0.0
    %2285 = vmatprep.subr.mxu0 0.0
    %2286 = vmatpush1.msra.mxu0 0.0
    %2287 = vmatprep.subr.mxu0 0.0
    %2288 = vmatpush1.msra.mxu0 0.0
    %2289 = vmatprep.subr.mxu0 0.0
    %2290 = vmatpush1.msra.mxu0 0.0
    %2291 = vmatprep.subr.mxu0 0.0
    %2292 = vmatpush1.msra.mxu0 0.0
    %2293 = vmatprep.subr.mxu0 0.0
    %2294 = vmatpush1.msra.mxu0 0.0
    %2295 = vmatprep.subr.mxu0 0.0
    %2296 = vmatpush1.msra.mxu0 0.0
    %2297 = vmatprep.subr.mxu0 0.0
    %2298 = vmatpush1.msra.mxu0 0.0
    %2299 = vmatprep.subr.mxu0 0.0
    %2300 = vmatpush1.msra.mxu0 0.0
    %2301 = vmatprep.subr.mxu0 0.0
    %2302 = vmatpush1.msra.mxu0 0.0
    %2303 = vmatprep.subr.mxu0 0.0
    %2304 = vmatpush1.msra.mxu0 0.0
    %2305 = vmatprep.subr.mxu0 0.0
    %2306 = vmatpush1.msra.mxu0 0.0
    %2307 = vmatprep.subr.mxu0 0.0
    %2308 = vmatpush1.msra.mxu0 0.0
    %2309 = vmatprep.subr.mxu0 0.0
    %2310 = vmatpush1.msra.mxu0 0.0
    %2311 = vmatprep.subr.mxu0 0.0
    %2312 = vmatpush1.msra.mxu0 0.0
    %2313 = vmatprep.subr.mxu0 0.0
    %2314 = vmatpush1.msra.mxu0 0.0
    %2315 = vmatprep.subr.mxu0 0.0
    %2316 = vmatpush1.msra.mxu0 0.0
    %2317 = vmatprep.subr.mxu0 0.0
    %2318 = vmatpush1.msra.mxu0 0.0
    %2319 = vmatprep.mubr.f32.mxu0 0.0
    %2320 = vmatmul.mubr.f32.gmra.mrb[0].mxu0 %v2111
    %v2321 = vpop.f32.mrb[0].mxu0
    %v2322 = vadd.f32 0.0, %v2321
    %v2323 = vpop.f32.mrb[0].mxu0
    %v2324 = vadd.f32 0.0, %v2323
    %2325 = vdwg.mxu0
    %2326 = vmatprep.subr.mxu0 %v1861
    %2327 = vmatpush1.msra.mxu0 %v1860
    %2328 = vmatprep.subr.mxu0 %v1893
    %2329 = vmatpush1.msra.mxu0 %v1892
    %2330 = vmatprep.subr.mxu0 %v1925
    %2331 = vmatpush1.msra.mxu0 %v1924
    %2332 = vmatprep.subr.mxu0 %v1957
    %2333 = vmatpush1.msra.mxu0 %v1956
    %2334 = vmatprep.subr.mxu0 %v1989
    %2335 = vmatpush1.msra.mxu0 %v1988
    %2336 = vmatprep.subr.mxu0 %v2021
    %2337 = vmatpush1.msra.mxu0 %v2020
    %2338 = vmatprep.subr.mxu0 %v2053
    %2339 = vmatpush1.msra.mxu0 %v2052
    %2340 = vmatprep.subr.mxu0 %v2085
    %2341 = vmatpush1.msra.mxu0 %v2084
    %2342 = vmatprep.subr.mxu0 0.0
    %2343 = vmatpush1.msra.mxu0 0.0
    %2344 = vmatprep.subr.mxu0 0.0
    %2345 = vmatpush1.msra.mxu0 0.0
    %2346 = vmatprep.subr.mxu0 0.0
    %2347 = vmatpush1.msra.mxu0 0.0
    %2348 = vmatprep.subr.mxu0 0.0
    %2349 = vmatpush1.msra.mxu0 0.0
    %2350 = vmatprep.subr.mxu0 0.0
    %2351 = vmatpush1.msra.mxu0 0.0
    %2352 = vmatprep.subr.mxu0 0.0
    %2353 = vmatpush1.msra.mxu0 0.0
    %2354 = vmatprep.subr.mxu0 0.0
    %2355 = vmatpush1.msra.mxu0 0.0
    %2356 = vmatprep.subr.mxu0 0.0
    %2357 = vmatpush1.msra.mxu0 0.0
    %2358 = vmatprep.subr.mxu0 0.0
    %2359 = vmatpush1.msra.mxu0 0.0
    %2360 = vmatprep.subr.mxu0 0.0
    %2361 = vmatpush1.msra.mxu0 0.0
    %2362 = vmatprep.subr.mxu0 0.0
    %2363 = vmatpush1.msra.mxu0 0.0
    %2364 = vmatprep.subr.mxu0 0.0
    %2365 = vmatpush1.msra.mxu0 0.0
    %2366 = vmatprep.subr.mxu0 0.0
    %2367 = vmatpush1.msra.mxu0 0.0
    %2368 = vmatprep.subr.mxu0 0.0
    %2369 = vmatpush1.msra.mxu0 0.0
    %2370 = vmatprep.subr.mxu0 0.0
    %2371 = vmatpush1.msra.mxu0 0.0
    %2372 = vmatprep.subr.mxu0 0.0
    %2373 = vmatpush1.msra.mxu0 0.0
    %2374 = vmatprep.subr.mxu0 0.0
    %2375 = vmatpush1.msra.mxu0 0.0
    %2376 = vmatprep.subr.mxu0 0.0
    %2377 = vmatpush1.msra.mxu0 0.0
    %2378 = vmatprep.subr.mxu0 0.0
    %2379 = vmatpush1.msra.mxu0 0.0
    %2380 = vmatprep.subr.mxu0 0.0
    %2381 = vmatpush1.msra.mxu0 0.0
    %2382 = vmatprep.subr.mxu0 0.0
    %2383 = vmatpush1.msra.mxu0 0.0
    %2384 = vmatprep.subr.mxu0 0.0
    %2385 = vmatpush1.msra.mxu0 0.0
    %2386 = vmatprep.subr.mxu0 0.0
    %2387 = vmatpush1.msra.mxu0 0.0
    %2388 = vmatprep.subr.mxu0 0.0
    %2389 = vmatpush1.msra.mxu0 0.0
    %2390 = vmatprep.mubr.f32.mxu0 0.0
    %2391 = vmatmul.mubr.f32.gmra.mrb[0].mxu0 %v2111
    %v2392 = vpop.f32.mrb[0].mxu0
    %v2393 = vadd.f32 0.0, %v2392
    %v2394 = vpop.f32.mrb[0].mxu0
    %v2395 = vadd.f32 0.0, %v2394
    %2396 = vdwg.mxu0
    %2397 = vmatprep.subr.mxu0 %v1863
    %2398 = vmatpush1.msra.mxu0 %v1862
    %2399 = vmatprep.subr.mxu0 %v1895
    %2400 = vmatpush1.msra.mxu0 %v1894
    %2401 = vmatprep.subr.mxu0 %v1927
    %2402 = vmatpush1.msra.mxu0 %v1926
    %2403 = vmatprep.subr.mxu0 %v1959
    %2404 = vmatpush1.msra.mxu0 %v1958
    %2405 = vmatprep.subr.mxu0 %v1991
    %2406 = vmatpush1.msra.mxu0 %v1990
    %2407 = vmatprep.subr.mxu0 %v2023
    %2408 = vmatpush1.msra.mxu0 %v2022
    %2409 = vmatprep.subr.mxu0 %v2055
    %2410 = vmatpush1.msra.mxu0 %v2054
    %2411 = vmatprep.subr.mxu0 %v2087
    %2412 = vmatpush1.msra.mxu0 %v2086
    %2413 = vmatprep.subr.mxu0 0.0
    %2414 = vmatpush1.msra.mxu0 0.0
    %2415 = vmatprep.subr.mxu0 0.0
    %2416 = vmatpush1.msra.mxu0 0.0
    %2417 = vmatprep.subr.mxu0 0.0
    %2418 = vmatpush1.msra.mxu0 0.0
    %2419 = vmatprep.subr.mxu0 0.0
    %2420 = vmatpush1.msra.mxu0 0.0
    %2421 = vmatprep.subr.mxu0 0.0
    %2422 = vmatpush1.msra.mxu0 0.0
    %2423 = vmatprep.subr.mxu0 0.0
    %2424 = vmatpush1.msra.mxu0 0.0
    %2425 = vmatprep.subr.mxu0 0.0
    %2426 = vmatpush1.msra.mxu0 0.0
    %2427 = vmatprep.subr.mxu0 0.0
    %2428 = vmatpush1.msra.mxu0 0.0
    %2429 = vmatprep.subr.mxu0 0.0
    %2430 = vmatpush1.msra.mxu0 0.0
    %2431 = vmatprep.subr.mxu0 0.0
    %2432 = vmatpush1.msra.mxu0 0.0
    %2433 = vmatprep.subr.mxu0 0.0
    %2434 = vmatpush1.msra.mxu0 0.0
    %2435 = vmatprep.subr.mxu0 0.0
    %2436 = vmatpush1.msra.mxu0 0.0
    %2437 = vmatprep.subr.mxu0 0.0
    %2438 = vmatpush1.msra.mxu0 0.0
    %2439 = vmatprep.subr.mxu0 0.0
    %2440 = vmatpush1.msra.mxu0 0.0
    %2441 = vmatprep.subr.mxu0 0.0
    %2442 = vmatpush1.msra.mxu0 0.0
    %2443 = vmatprep.subr.mxu0 0.0
    %2444 = vmatpush1.msra.mxu0 0.0
    %2445 = vmatprep.subr.mxu0 0.0
    %2446 = vmatpush1.msra.mxu0 0.0
    %2447 = vmatprep.subr.mxu0 0.0
    %2448 = vmatpush1.msra.mxu0 0.0
    %2449 = vmatprep.subr.mxu0 0.0
    %2450 = vmatpush1.msra.mxu0 0.0
    %2451 = vmatprep.subr.mxu0 0.0
    %2452 = vmatpush1.msra.mxu0 0.0
    %2453 = vmatprep.subr.mxu0 0.0
    %2454 = vmatpush1.msra.mxu0 0.0
    %2455 = vmatprep.subr.mxu0 0.0
    %2456 = vmatpush1.msra.mxu0 0.0
    %2457 = vmatprep.subr.mxu0 0.0
    %2458 = vmatpush1.msra.mxu0 0.0
    %2459 = vmatprep.subr.mxu0 0.0
    %2460 = vmatpush1.msra.mxu0 0.0
    %2461 = vmatprep.mubr.f32.mxu0 0.0
    %2462 = vmatmul.mubr.f32.gmra.mrb[0].mxu0 %v2111
    %v2463 = vpop.f32.mrb[0].mxu0
    %v2464 = vadd.f32 0.0, %v2463
    %v2465 = vpop.f32.mrb[0].mxu0
    %v2466 = vadd.f32 0.0, %v2465
    %2467 = vdwg.mxu0
    %2468 = vmatprep.subr.mxu0 %v1865
    %2469 = vmatpush1.msra.mxu0 %v1864
    %2470 = vmatprep.subr.mxu0 %v1897
    %2471 = vmatpush1.msra.mxu0 %v1896
    %2472 = vmatprep.subr.mxu0 %v1929
    %2473 = vmatpush1.msra.mxu0 %v1928
    %2474 = vmatprep.subr.mxu0 %v1961
    %2475 = vmatpush1.msra.mxu0 %v1960
    %2476 = vmatprep.subr.mxu0 %v1993
    %2477 = vmatpush1.msra.mxu0 %v1992
    %2478 = vmatprep.subr.mxu0 %v2025
    %2479 = vmatpush1.msra.mxu0 %v2024
    %2480 = vmatprep.subr.mxu0 %v2057
    %2481 = vmatpush1.msra.mxu0 %v2056
    %2482 = vmatprep.subr.mxu0 %v2089
    %2483 = vmatpush1.msra.mxu0 %v2088
    %2484 = vmatprep.subr.mxu0 0.0
    %2485 = vmatpush1.msra.mxu0 0.0
    %2486 = vmatprep.subr.mxu0 0.0
    %2487 = vmatpush1.msra.mxu0 0.0
    %2488 = vmatprep.subr.mxu0 0.0
    %2489 = vmatpush1.msra.mxu0 0.0
    %2490 = vmatprep.subr.mxu0 0.0
    %2491 = vmatpush1.msra.mxu0 0.0
    %2492 = vmatprep.subr.mxu0 0.0
    %2493 = vmatpush1.msra.mxu0 0.0
    %2494 = vmatprep.subr.mxu0 0.0
    %2495 = vmatpush1.msra.mxu0 0.0
    %2496 = vmatprep.subr.mxu0 0.0
    %2497 = vmatpush1.msra.mxu0 0.0
    %2498 = vmatprep.subr.mxu0 0.0
    %2499 = vmatpush1.msra.mxu0 0.0
    %2500 = vmatprep.subr.mxu0 0.0
    %2501 = vmatpush1.msra.mxu0 0.0
    %2502 = vmatprep.subr.mxu0 0.0
    %2503 = vmatpush1.msra.mxu0 0.0
    %2504 = vmatprep.subr.mxu0 0.0
    %2505 = vmatpush1.msra.mxu0 0.0
    %2506 = vmatprep.subr.mxu0 0.0
    %2507 = vmatpush1.msra.mxu0 0.0
    %2508 = vmatprep.subr.mxu0 0.0
    %2509 = vmatpush1.msra.mxu0 0.0
    %2510 = vmatprep.subr.mxu0 0.0
    %2511 = vmatpush1.msra.mxu0 0.0
    %2512 = vmatprep.subr.mxu0 0.0
    %2513 = vmatpush1.msra.mxu0 0.0
    %2514 = vmatprep.subr.mxu0 0.0
    %2515 = vmatpush1.msra.mxu0 0.0
    %2516 = vmatprep.subr.mxu0 0.0
    %2517 = vmatpush1.msra.mxu0 0.0
    %2518 = vmatprep.subr.mxu0 0.0
    %2519 = vmatpush1.msra.mxu0 0.0
    %2520 = vmatprep.subr.mxu0 0.0
    %2521 = vmatpush1.msra.mxu0 0.0
    %2522 = vmatprep.subr.mxu0 0.0
    %2523 = vmatpush1.msra.mxu0 0.0
    %2524 = vmatprep.subr.mxu0 0.0
    %2525 = vmatpush1.msra.mxu0 0.0
    %2526 = vmatprep.subr.mxu0 0.0
    %2527 = vmatpush1.msra.mxu0 0.0
    %2528 = vmatprep.subr.mxu0 0.0
    %2529 = vmatpush1.msra.mxu0 0.0
    %2530 = vmatprep.subr.mxu0 0.0
    %2531 = vmatpush1.msra.mxu0 0.0
    %2532 = vmatprep.mubr.f32.mxu0 0.0
    %2533 = vmatmul.mubr.f32.gmra.mrb[0].mxu0 %v2111
    %v2534 = vpop.f32.mrb[0].mxu0
    %v2535 = vadd.f32 0.0, %v2534
    %v2536 = vpop.f32.mrb[0].mxu0
    %v2537 = vadd.f32 0.0, %v2536
    %2538 = vdwg.mxu0
    %2539 = vmatprep.subr.mxu0 %v1867
    %2540 = vmatpush1.msra.mxu0 %v1866
    %2541 = vmatprep.subr.mxu0 %v1899
    %2542 = vmatpush1.msra.mxu0 %v1898
    %2543 = vmatprep.subr.mxu0 %v1931
    %2544 = vmatpush1.msra.mxu0 %v1930
    %2545 = vmatprep.subr.mxu0 %v1963
    %2546 = vmatpush1.msra.mxu0 %v1962
    %2547 = vmatprep.subr.mxu0 %v1995
    %2548 = vmatpush1.msra.mxu0 %v1994
    %2549 = vmatprep.subr.mxu0 %v2027
    %2550 = vmatpush1.msra.mxu0 %v2026
    %2551 = vmatprep.subr.mxu0 %v2059
    %2552 = vmatpush1.msra.mxu0 %v2058
    %2553 = vmatprep.subr.mxu0 %v2091
    %2554 = vmatpush1.msra.mxu0 %v2090
    %2555 = vmatprep.subr.mxu0 0.0
    %2556 = vmatpush1.msra.mxu0 0.0
    %2557 = vmatprep.subr.mxu0 0.0
    %2558 = vmatpush1.msra.mxu0 0.0
    %2559 = vmatprep.subr.mxu0 0.0
    %2560 = vmatpush1.msra.mxu0 0.0
    %2561 = vmatprep.subr.mxu0 0.0
    %2562 = vmatpush1.msra.mxu0 0.0
    %2563 = vmatprep.subr.mxu0 0.0
    %2564 = vmatpush1.msra.mxu0 0.0
    %2565 = vmatprep.subr.mxu0 0.0
    %2566 = vmatpush1.msra.mxu0 0.0
    %2567 = vmatprep.subr.mxu0 0.0
    %2568 = vmatpush1.msra.mxu0 0.0
    %2569 = vmatprep.subr.mxu0 0.0
    %2570 = vmatpush1.msra.mxu0 0.0
    %2571 = vmatprep.subr.mxu0 0.0
    %2572 = vmatpush1.msra.mxu0 0.0
    %2573 = vmatprep.subr.mxu0 0.0
    %2574 = vmatpush1.msra.mxu0 0.0
    %2575 = vmatprep.subr.mxu0 0.0
    %2576 = vmatpush1.msra.mxu0 0.0
    %2577 = vmatprep.subr.mxu0 0.0
    %2578 = vmatpush1.msra.mxu0 0.0
    %2579 = vmatprep.subr.mxu0 0.0
    %2580 = vmatpush1.msra.mxu0 0.0
    %2581 = vmatprep.subr.mxu0 0.0
    %2582 = vmatpush1.msra.mxu0 0.0
    %2583 = vmatprep.subr.mxu0 0.0
    %2584 = vmatpush1.msra.mxu0 0.0
    %2585 = vmatprep.subr.mxu0 0.0
    %2586 = vmatpush1.msra.mxu0 0.0
    %2587 = vmatprep.subr.mxu0 0.0
    %2588 = vmatpush1.msra.mxu0 0.0
    %2589 = vmatprep.subr.mxu0 0.0
    %2590 = vmatpush1.msra.mxu0 0.0
    %2591 = vmatprep.subr.mxu0 0.0
    %2592 = vmatpush1.msra.mxu0 0.0
    %2593 = vmatprep.subr.mxu0 0.0
    %2594 = vmatpush1.msra.mxu0 0.0
    %2595 = vmatprep.subr.mxu0 0.0
    %2596 = vmatpush1.msra.mxu0 0.0
    %2597 = vmatprep.subr.mxu0 0.0
    %2598 = vmatpush1.msra.mxu0 0.0
    %2599 = vmatprep.subr.mxu0 0.0
    %2600 = vmatpush1.msra.mxu0 0.0
    %2601 = vmatprep.subr.mxu0 0.0
    %2602 = vmatpush1.msra.mxu0 0.0
    %2603 = vmatprep.mubr.f32.mxu0 0.0
    %2604 = vmatmul.mubr.f32.gmra.mrb[0].mxu0 %v2111
    %v2605 = vpop.f32.mrb[0].mxu0
    %v2606 = vadd.f32 0.0, %v2605
    %v2607 = vpop.f32.mrb[0].mxu0
    %v2608 = vadd.f32 0.0, %v2607
    %2609 = vdwg.mxu0
    %2610 = vmatprep.subr.mxu0 %v1869
    %2611 = vmatpush1.msra.mxu0 %v1868
    %2612 = vmatprep.subr.mxu0 %v1901
    %2613 = vmatpush1.msra.mxu0 %v1900
    %2614 = vmatprep.subr.mxu0 %v1933
    %2615 = vmatpush1.msra.mxu0 %v1932
    %2616 = vmatprep.subr.mxu0 %v1965
    %2617 = vmatpush1.msra.mxu0 %v1964
    %2618 = vmatprep.subr.mxu0 %v1997
    %2619 = vmatpush1.msra.mxu0 %v1996
    %2620 = vmatprep.subr.mxu0 %v2029
    %2621 = vmatpush1.msra.mxu0 %v2028
    %2622 = vmatprep.subr.mxu0 %v2061
    %2623 = vmatpush1.msra.mxu0 %v2060
    %2624 = vmatprep.subr.mxu0 %v2093
    %2625 = vmatpush1.msra.mxu0 %v2092
    %2626 = vmatprep.subr.mxu0 0.0
    %2627 = vmatpush1.msra.mxu0 0.0
    %2628 = vmatprep.subr.mxu0 0.0
    %2629 = vmatpush1.msra.mxu0 0.0
    %2630 = vmatprep.subr.mxu0 0.0
    %2631 = vmatpush1.msra.mxu0 0.0
    %2632 = vmatprep.subr.mxu0 0.0
    %2633 = vmatpush1.msra.mxu0 0.0
    %2634 = vmatprep.subr.mxu0 0.0
    %2635 = vmatpush1.msra.mxu0 0.0
    %2636 = vmatprep.subr.mxu0 0.0
    %2637 = vmatpush1.msra.mxu0 0.0
    %2638 = vmatprep.subr.mxu0 0.0
    %2639 = vmatpush1.msra.mxu0 0.0
    %2640 = vmatprep.subr.mxu0 0.0
    %2641 = vmatpush1.msra.mxu0 0.0
    %2642 = vmatprep.subr.mxu0 0.0
    %2643 = vmatpush1.msra.mxu0 0.0
    %2644 = vmatprep.subr.mxu0 0.0
    %2645 = vmatpush1.msra.mxu0 0.0
    %2646 = vmatprep.subr.mxu0 0.0
    %2647 = vmatpush1.msra.mxu0 0.0
    %2648 = vmatprep.subr.mxu0 0.0
    %2649 = vmatpush1.msra.mxu0 0.0
    %2650 = vmatprep.subr.mxu0 0.0
    %2651 = vmatpush1.msra.mxu0 0.0
    %2652 = vmatprep.subr.mxu0 0.0
    %2653 = vmatpush1.msra.mxu0 0.0
    %2654 = vmatprep.subr.mxu0 0.0
    %2655 = vmatpush1.msra.mxu0 0.0
    %2656 = vmatprep.subr.mxu0 0.0
    %2657 = vmatpush1.msra.mxu0 0.0
    %2658 = vmatprep.subr.mxu0 0.0
    %2659 = vmatpush1.msra.mxu0 0.0
    %2660 = vmatprep.subr.mxu0 0.0
    %2661 = vmatpush1.msra.mxu0 0.0
    %2662 = vmatprep.subr.mxu0 0.0
    %2663 = vmatpush1.msra.mxu0 0.0
    %2664 = vmatprep.subr.mxu0 0.0
    %2665 = vmatpush1.msra.mxu0 0.0
    %2666 = vmatprep.subr.mxu0 0.0
    %2667 = vmatpush1.msra.mxu0 0.0
    %2668 = vmatprep.subr.mxu0 0.0
    %2669 = vmatpush1.msra.mxu0 0.0
    %2670 = vmatprep.subr.mxu0 0.0
    %2671 = vmatpush1.msra.mxu0 0.0
    %2672 = vmatprep.subr.mxu0 0.0
    %2673 = vmatpush1.msra.mxu0 0.0
    %2674 = vmatprep.mubr.f32.mxu0 0.0
    %2675 = vmatmul.mubr.f32.gmra.mrb[0].mxu0 %v2111
    %v2676 = vpop.f32.mrb[0].mxu0
    %v2677 = vadd.f32 0.0, %v2676
    %v2678 = vpop.f32.mrb[0].mxu0
    %v2679 = vadd.f32 0.0, %v2678
    %2680 = vdwg.mxu0
    %2681 = vmatprep.subr.mxu0 %v1871
    %2682 = vmatpush1.msra.mxu0 %v1870
    %2683 = vmatprep.subr.mxu0 %v1903
    %2684 = vmatpush1.msra.mxu0 %v1902
    %2685 = vmatprep.subr.mxu0 %v1935
    %2686 = vmatpush1.msra.mxu0 %v1934
    %2687 = vmatprep.subr.mxu0 %v1967
    %2688 = vmatpush1.msra.mxu0 %v1966
    %2689 = vmatprep.subr.mxu0 %v1999
    %2690 = vmatpush1.msra.mxu0 %v1998
    %2691 = vmatprep.subr.mxu0 %v2031
    %2692 = vmatpush1.msra.mxu0 %v2030
    %2693 = vmatprep.subr.mxu0 %v2063
    %2694 = vmatpush1.msra.mxu0 %v2062
    %2695 = vmatprep.subr.mxu0 %v2095
    %2696 = vmatpush1.msra.mxu0 %v2094
    %2697 = vmatprep.subr.mxu0 0.0
    %2698 = vmatpush1.msra.mxu0 0.0
    %2699 = vmatprep.subr.mxu0 0.0
    %2700 = vmatpush1.msra.mxu0 0.0
    %2701 = vmatprep.subr.mxu0 0.0
    %2702 = vmatpush1.msra.mxu0 0.0
    %2703 = vmatprep.subr.mxu0 0.0
    %2704 = vmatpush1.msra.mxu0 0.0
    %2705 = vmatprep.subr.mxu0 0.0
    %2706 = vmatpush1.msra.mxu0 0.0
    %2707 = vmatprep.subr.mxu0 0.0
    %2708 = vmatpush1.msra.mxu0 0.0
    %2709 = vmatprep.subr.mxu0 0.0
    %2710 = vmatpush1.msra.mxu0 0.0
    %2711 = vmatprep.subr.mxu0 0.0
    %2712 = vmatpush1.msra.mxu0 0.0
    %2713 = vmatprep.subr.mxu0 0.0
    %2714 = vmatpush1.msra.mxu0 0.0
    %2715 = vmatprep.subr.mxu0 0.0
    %2716 = vmatpush1.msra.mxu0 0.0
    %2717 = vmatprep.subr.mxu0 0.0
    %2718 = vmatpush1.msra.mxu0 0.0
    %2719 = vmatprep.subr.mxu0 0.0
    %2720 = vmatpush1.msra.mxu0 0.0
    %2721 = vmatprep.subr.mxu0 0.0
    %2722 = vmatpush1.msra.mxu0 0.0
    %2723 = vmatprep.subr.mxu0 0.0
    %2724 = vmatpush1.msra.mxu0 0.0
    %2725 = vmatprep.subr.mxu0 0.0
    %2726 = vmatpush1.msra.mxu0 0.0
    %2727 = vmatprep.subr.mxu0 0.0
    %2728 = vmatpush1.msra.mxu0 0.0
    %2729 = vmatprep.subr.mxu0 0.0
    %2730 = vmatpush1.msra.mxu0 0.0
    %2731 = vmatprep.subr.mxu0 0.0
    %2732 = vmatpush1.msra.mxu0 0.0
    %2733 = vmatprep.subr.mxu0 0.0
    %2734 = vmatpush1.msra.mxu0 0.0
    %2735 = vmatprep.subr.mxu0 0.0
    %2736 = vmatpush1.msra.mxu0 0.0
    %2737 = vmatprep.subr.mxu0 0.0
    %2738 = vmatpush1.msra.mxu0 0.0
    %2739 = vmatprep.subr.mxu0 0.0
    %2740 = vmatpush1.msra.mxu0 0.0
    %2741 = vmatprep.subr.mxu0 0.0
    %2742 = vmatpush1.msra.mxu0 0.0
    %2743 = vmatprep.subr.mxu0 0.0
    %2744 = vmatpush1.msra.mxu0 0.0
    %2745 = vmatprep.mubr.f32.mxu0 0.0
    %2746 = vmatmul.mubr.f32.gmra.mrb[0].mxu0 %v2111
    %v2747 = vpop.f32.mrb[0].mxu0
    %v2748 = vadd.f32 0.0, %v2747
    %v2749 = vpop.f32.mrb[0].mxu0
    %v2750 = vadd.f32 0.0, %v2749
    %2751 = vdwg.mxu0
    %2752 = vmatprep.subr.mxu0 %v1873
    %2753 = vmatpush1.msra.mxu0 %v1872
    %2754 = vmatprep.subr.mxu0 %v1905
    %2755 = vmatpush1.msra.mxu0 %v1904
    %2756 = vmatprep.subr.mxu0 %v1937
    %2757 = vmatpush1.msra.mxu0 %v1936
    %2758 = vmatprep.subr.mxu0 %v1969
    %2759 = vmatpush1.msra.mxu0 %v1968
    %2760 = vmatprep.subr.mxu0 %v2001
    %2761 = vmatpush1.msra.mxu0 %v2000
    %2762 = vmatprep.subr.mxu0 %v2033
    %2763 = vmatpush1.msra.mxu0 %v2032
    %2764 = vmatprep.subr.mxu0 %v2065
    %2765 = vmatpush1.msra.mxu0 %v2064
    %2766 = vmatprep.subr.mxu0 %v2097
    %2767 = vmatpush1.msra.mxu0 %v2096
    %2768 = vmatprep.subr.mxu0 0.0
    %2769 = vmatpush1.msra.mxu0 0.0
    %2770 = vmatprep.subr.mxu0 0.0
    %2771 = vmatpush1.msra.mxu0 0.0
    %2772 = vmatprep.subr.mxu0 0.0
    %2773 = vmatpush1.msra.mxu0 0.0
    %2774 = vmatprep.subr.mxu0 0.0
    %2775 = vmatpush1.msra.mxu0 0.0
    %2776 = vmatprep.subr.mxu0 0.0
    %2777 = vmatpush1.msra.mxu0 0.0
    %2778 = vmatprep.subr.mxu0 0.0
    %2779 = vmatpush1.msra.mxu0 0.0
    %2780 = vmatprep.subr.mxu0 0.0
    %2781 = vmatpush1.msra.mxu0 0.0
    %2782 = vmatprep.subr.mxu0 0.0
    %2783 = vmatpush1.msra.mxu0 0.0
    %2784 = vmatprep.subr.mxu0 0.0
    %2785 = vmatpush1.msra.mxu0 0.0
    %2786 = vmatprep.subr.mxu0 0.0
    %2787 = vmatpush1.msra.mxu0 0.0
    %2788 = vmatprep.subr.mxu0 0.0
    %2789 = vmatpush1.msra.mxu0 0.0
    %2790 = vmatprep.subr.mxu0 0.0
    %2791 = vmatpush1.msra.mxu0 0.0
    %2792 = vmatprep.subr.mxu0 0.0
    %2793 = vmatpush1.msra.mxu0 0.0
    %2794 = vmatprep.subr.mxu0 0.0
    %2795 = vmatpush1.msra.mxu0 0.0
    %2796 = vmatprep.subr.mxu0 0.0
    %2797 = vmatpush1.msra.mxu0 0.0
    %2798 = vmatprep.subr.mxu0 0.0
    %2799 = vmatpush1.msra.mxu0 0.0
    %2800 = vmatprep.subr.mxu0 0.0
    %2801 = vmatpush1.msra.mxu0 0.0
    %2802 = vmatprep.subr.mxu0 0.0
    %2803 = vmatpush1.msra.mxu0 0.0
    %2804 = vmatprep.subr.mxu0 0.0
    %2805 = vmatpush1.msra.mxu0 0.0
    %2806 = vmatprep.subr.mxu0 0.0
    %2807 = vmatpush1.msra.mxu0 0.0
    %2808 = vmatprep.subr.mxu0 0.0
    %2809 = vmatpush1.msra.mxu0 0.0
    %2810 = vmatprep.subr.mxu0 0.0
    %2811 = vmatpush1.msra.mxu0 0.0
    %2812 = vmatprep.subr.mxu0 0.0
    %2813 = vmatpush1.msra.mxu0 0.0
    %2814 = vmatprep.subr.mxu0 0.0
    %2815 = vmatpush1.msra.mxu0 0.0
    %2816 = vmatprep.mubr.f32.mxu0 0.0
    %2817 = vmatmul.mubr.f32.gmra.mrb[0].mxu0 %v2111
    %v2818 = vpop.f32.mrb[0].mxu0
    %v2819 = vadd.f32 0.0, %v2818
    %v2820 = vpop.f32.mrb[0].mxu0
    %v2821 = vadd.f32 0.0, %v2820
    %2822 = vdwg.mxu0
    %2823 = vmatprep.subr.mxu0 %v1875
    %2824 = vmatpush1.msra.mxu0 %v1874
    %2825 = vmatprep.subr.mxu0 %v1907
    %2826 = vmatpush1.msra.mxu0 %v1906
    %2827 = vmatprep.subr.mxu0 %v1939
    %2828 = vmatpush1.msra.mxu0 %v1938
    %2829 = vmatprep.subr.mxu0 %v1971
    %2830 = vmatpush1.msra.mxu0 %v1970
    %2831 = vmatprep.subr.mxu0 %v2003
    %2832 = vmatpush1.msra.mxu0 %v2002
    %2833 = vmatprep.subr.mxu0 %v2035
    %2834 = vmatpush1.msra.mxu0 %v2034
    %2835 = vmatprep.subr.mxu0 %v2067
    %2836 = vmatpush1.msra.mxu0 %v2066
    %2837 = vmatprep.subr.mxu0 %v2099
    %2838 = vmatpush1.msra.mxu0 %v2098
    %2839 = vmatprep.subr.mxu0 0.0
    %2840 = vmatpush1.msra.mxu0 0.0
    %2841 = vmatprep.subr.mxu0 0.0
    %2842 = vmatpush1.msra.mxu0 0.0
    %2843 = vmatprep.subr.mxu0 0.0
    %2844 = vmatpush1.msra.mxu0 0.0
    %2845 = vmatprep.subr.mxu0 0.0
    %2846 = vmatpush1.msra.mxu0 0.0
    %2847 = vmatprep.subr.mxu0 0.0
    %2848 = vmatpush1.msra.mxu0 0.0
    %2849 = vmatprep.subr.mxu0 0.0
    %2850 = vmatpush1.msra.mxu0 0.0
    %2851 = vmatprep.subr.mxu0 0.0
    %2852 = vmatpush1.msra.mxu0 0.0
    %2853 = vmatprep.subr.mxu0 0.0
    %2854 = vmatpush1.msra.mxu0 0.0
    %2855 = vmatprep.subr.mxu0 0.0
    %2856 = vmatpush1.msra.mxu0 0.0
    %2857 = vmatprep.subr.mxu0 0.0
    %2858 = vmatpush1.msra.mxu0 0.0
    %2859 = vmatprep.subr.mxu0 0.0
    %2860 = vmatpush1.msra.mxu0 0.0
    %2861 = vmatprep.subr.mxu0 0.0
    %2862 = vmatpush1.msra.mxu0 0.0
    %2863 = vmatprep.subr.mxu0 0.0
    %2864 = vmatpush1.msra.mxu0 0.0
    %2865 = vmatprep.subr.mxu0 0.0
    %2866 = vmatpush1.msra.mxu0 0.0
    %2867 = vmatprep.subr.mxu0 0.0
    %2868 = vmatpush1.msra.mxu0 0.0
    %2869 = vmatprep.subr.mxu0 0.0
    %2870 = vmatpush1.msra.mxu0 0.0
    %2871 = vmatprep.subr.mxu0 0.0
    %2872 = vmatpush1.msra.mxu0 0.0
    %2873 = vmatprep.subr.mxu0 0.0
    %2874 = vmatpush1.msra.mxu0 0.0
    %2875 = vmatprep.subr.mxu0 0.0
    %2876 = vmatpush1.msra.mxu0 0.0
    %2877 = vmatprep.subr.mxu0 0.0
    %2878 = vmatpush1.msra.mxu0 0.0
    %2879 = vmatprep.subr.mxu0 0.0
    %2880 = vmatpush1.msra.mxu0 0.0
    %2881 = vmatprep.subr.mxu0 0.0
    %2882 = vmatpush1.msra.mxu0 0.0
    %2883 = vmatprep.subr.mxu0 0.0
    %2884 = vmatpush1.msra.mxu0 0.0
    %2885 = vmatprep.subr.mxu0 0.0
    %2886 = vmatpush1.msra.mxu0 0.0
    %2887 = vmatprep.mubr.f32.mxu0 0.0
    %2888 = vmatmul.mubr.f32.gmra.mrb[0].mxu0 %v2111
    %v2889 = vpop.f32.mrb[0].mxu0
    %v2890 = vadd.f32 0.0, %v2889
    %v2891 = vpop.f32.mrb[0].mxu0
    %v2892 = vadd.f32 0.0, %v2891
    %2893 = vdwg.mxu0
    %2894 = vmatprep.subr.mxu0 %v1877
    %2895 = vmatpush1.msra.mxu0 %v1876
    %2896 = vmatprep.subr.mxu0 %v1909
    %2897 = vmatpush1.msra.mxu0 %v1908
    %2898 = vmatprep.subr.mxu0 %v1941
    %2899 = vmatpush1.msra.mxu0 %v1940
    %2900 = vmatprep.subr.mxu0 %v1973
    %2901 = vmatpush1.msra.mxu0 %v1972
    %2902 = vmatprep.subr.mxu0 %v2005
    %2903 = vmatpush1.msra.mxu0 %v2004
    %2904 = vmatprep.subr.mxu0 %v2037
    %2905 = vmatpush1.msra.mxu0 %v2036
    %2906 = vmatprep.subr.mxu0 %v2069
    %2907 = vmatpush1.msra.mxu0 %v2068
    %2908 = vmatprep.subr.mxu0 %v2101
    %2909 = vmatpush1.msra.mxu0 %v2100
    %2910 = vmatprep.subr.mxu0 0.0
    %2911 = vmatpush1.msra.mxu0 0.0
    %2912 = vmatprep.subr.mxu0 0.0
    %2913 = vmatpush1.msra.mxu0 0.0
    %2914 = vmatprep.subr.mxu0 0.0
    %2915 = vmatpush1.msra.mxu0 0.0
    %2916 = vmatprep.subr.mxu0 0.0
    %2917 = vmatpush1.msra.mxu0 0.0
    %2918 = vmatprep.subr.mxu0 0.0
    %2919 = vmatpush1.msra.mxu0 0.0
    %2920 = vmatprep.subr.mxu0 0.0
    %2921 = vmatpush1.msra.mxu0 0.0
    %2922 = vmatprep.subr.mxu0 0.0
    %2923 = vmatpush1.msra.mxu0 0.0
    %2924 = vmatprep.subr.mxu0 0.0
    %2925 = vmatpush1.msra.mxu0 0.0
    %2926 = vmatprep.subr.mxu0 0.0
    %2927 = vmatpush1.msra.mxu0 0.0
    %2928 = vmatprep.subr.mxu0 0.0
    %2929 = vmatpush1.msra.mxu0 0.0
    %2930 = vmatprep.subr.mxu0 0.0
    %2931 = vmatpush1.msra.mxu0 0.0
    %2932 = vmatprep.subr.mxu0 0.0
    %2933 = vmatpush1.msra.mxu0 0.0
    %2934 = vmatprep.subr.mxu0 0.0
    %2935 = vmatpush1.msra.mxu0 0.0
    %2936 = vmatprep.subr.mxu0 0.0
    %2937 = vmatpush1.msra.mxu0 0.0
    %2938 = vmatprep.subr.mxu0 0.0
    %2939 = vmatpush1.msra.mxu0 0.0
    %2940 = vmatprep.subr.mxu0 0.0
    %2941 = vmatpush1.msra.mxu0 0.0
    %2942 = vmatprep.subr.mxu0 0.0
    %2943 = vmatpush1.msra.mxu0 0.0
    %2944 = vmatprep.subr.mxu0 0.0
    %2945 = vmatpush1.msra.mxu0 0.0
    %2946 = vmatprep.subr.mxu0 0.0
    %2947 = vmatpush1.msra.mxu0 0.0
    %2948 = vmatprep.subr.mxu0 0.0
    %2949 = vmatpush1.msra.mxu0 0.0
    %2950 = vmatprep.subr.mxu0 0.0
    %2951 = vmatpush1.msra.mxu0 0.0
    %2952 = vmatprep.subr.mxu0 0.0
    %2953 = vmatpush1.msra.mxu0 0.0
    %2954 = vmatprep.subr.mxu0 0.0
    %2955 = vmatpush1.msra.mxu0 0.0
    %2956 = vmatprep.subr.mxu0 0.0
    %2957 = vmatpush1.msra.mxu0 0.0
    %2958 = vmatprep.mubr.f32.mxu0 0.0
    %2959 = vmatmul.mubr.f32.gmra.mrb[0].mxu0 %v2111
    %v2960 = vpop.f32.mrb[0].mxu0
    %v2961 = vadd.f32 0.0, %v2960
    %v2962 = vpop.f32.mrb[0].mxu0
    %v2963 = vadd.f32 0.0, %v2962
    %2964 = vdwg.mxu0
    %2965 = vmatprep.subr.mxu0 %v1879
    %2966 = vmatpush1.msra.mxu0 %v1878
    %2967 = vmatprep.subr.mxu0 %v1911
    %2968 = vmatpush1.msra.mxu0 %v1910
    %2969 = vmatprep.subr.mxu0 %v1943
    %2970 = vmatpush1.msra.mxu0 %v1942
    %2971 = vmatprep.subr.mxu0 %v1975
    %2972 = vmatpush1.msra.mxu0 %v1974
    %2973 = vmatprep.subr.mxu0 %v2007
    %2974 = vmatpush1.msra.mxu0 %v2006
    %2975 = vmatprep.subr.mxu0 %v2039
    %2976 = vmatpush1.msra.mxu0 %v2038
    %2977 = vmatprep.subr.mxu0 %v2071
    %2978 = vmatpush1.msra.mxu0 %v2070
    %2979 = vmatprep.subr.mxu0 %v2103
    %2980 = vmatpush1.msra.mxu0 %v2102
    %2981 = vmatprep.subr.mxu0 0.0
    %2982 = vmatpush1.msra.mxu0 0.0
    %2983 = vmatprep.subr.mxu0 0.0
    %2984 = vmatpush1.msra.mxu0 0.0
    %2985 = vmatprep.subr.mxu0 0.0
    %2986 = vmatpush1.msra.mxu0 0.0
    %2987 = vmatprep.subr.mxu0 0.0
    %2988 = vmatpush1.msra.mxu0 0.0
    %2989 = vmatprep.subr.mxu0 0.0
    %2990 = vmatpush1.msra.mxu0 0.0
    %2991 = vmatprep.subr.mxu0 0.0
    %2992 = vmatpush1.msra.mxu0 0.0
    %2993 = vmatprep.subr.mxu0 0.0
    %2994 = vmatpush1.msra.mxu0 0.0
    %2995 = vmatprep.subr.mxu0 0.0
    %2996 = vmatpush1.msra.mxu0 0.0
    %2997 = vmatprep.subr.mxu0 0.0
    %2998 = vmatpush1.msra.mxu0 0.0
    %2999 = vmatprep.subr.mxu0 0.0
    %3000 = vmatpush1.msra.mxu0 0.0
    %3001 = vmatprep.subr.mxu0 0.0
    %3002 = vmatpush1.msra.mxu0 0.0
    %3003 = vmatprep.subr.mxu0 0.0
    %3004 = vmatpush1.msra.mxu0 0.0
    %3005 = vmatprep.subr.mxu0 0.0
    %3006 = vmatpush1.msra.mxu0 0.0
    %3007 = vmatprep.subr.mxu0 0.0
    %3008 = vmatpush1.msra.mxu0 0.0
    %3009 = vmatprep.subr.mxu0 0.0
    %3010 = vmatpush1.msra.mxu0 0.0
    %3011 = vmatprep.subr.mxu0 0.0
    %3012 = vmatpush1.msra.mxu0 0.0
    %3013 = vmatprep.subr.mxu0 0.0
    %3014 = vmatpush1.msra.mxu0 0.0
    %3015 = vmatprep.subr.mxu0 0.0
    %3016 = vmatpush1.msra.mxu0 0.0
    %3017 = vmatprep.subr.mxu0 0.0
    %3018 = vmatpush1.msra.mxu0 0.0
    %3019 = vmatprep.subr.mxu0 0.0
    %3020 = vmatpush1.msra.mxu0 0.0
    %3021 = vmatprep.subr.mxu0 0.0
    %3022 = vmatpush1.msra.mxu0 0.0
    %3023 = vmatprep.subr.mxu0 0.0
    %3024 = vmatpush1.msra.mxu0 0.0
    %3025 = vmatprep.subr.mxu0 0.0
    %3026 = vmatpush1.msra.mxu0 0.0
    %3027 = vmatprep.subr.mxu0 0.0
    %3028 = vmatpush1.msra.mxu0 0.0
    %3029 = vmatprep.mubr.f32.mxu0 0.0
    %3030 = vmatmul.mubr.f32.gmra.mrb[0].mxu0 %v2111
    %v3031 = vpop.f32.mrb[0].mxu0
    %v3032 = vadd.f32 0.0, %v3031
    %v3033 = vpop.f32.mrb[0].mxu0
    %v3034 = vadd.f32 0.0, %v3033
    %3035 = vdwg.mxu0
    %3036 = vmatprep.subr.mxu0 %v1881
    %3037 = vmatpush1.msra.mxu0 %v1880
    %3038 = vmatprep.subr.mxu0 %v1913
    %3039 = vmatpush1.msra.mxu0 %v1912
    %3040 = vmatprep.subr.mxu0 %v1945
    %3041 = vmatpush1.msra.mxu0 %v1944
    %3042 = vmatprep.subr.mxu0 %v1977
    %3043 = vmatpush1.msra.mxu0 %v1976
    %3044 = vmatprep.subr.mxu0 %v2009
    %3045 = vmatpush1.msra.mxu0 %v2008
    %3046 = vmatprep.subr.mxu0 %v2041
    %3047 = vmatpush1.msra.mxu0 %v2040
    %3048 = vmatprep.subr.mxu0 %v2073
    %3049 = vmatpush1.msra.mxu0 %v2072
    %3050 = vmatprep.subr.mxu0 %v2105
    %3051 = vmatpush1.msra.mxu0 %v2104
    %3052 = vmatprep.subr.mxu0 0.0
    %3053 = vmatpush1.msra.mxu0 0.0
    %3054 = vmatprep.subr.mxu0 0.0
    %3055 = vmatpush1.msra.mxu0 0.0
    %3056 = vmatprep.subr.mxu0 0.0
    %3057 = vmatpush1.msra.mxu0 0.0
    %3058 = vmatprep.subr.mxu0 0.0
    %3059 = vmatpush1.msra.mxu0 0.0
    %3060 = vmatprep.subr.mxu0 0.0
    %3061 = vmatpush1.msra.mxu0 0.0
    %3062 = vmatprep.subr.mxu0 0.0
    %3063 = vmatpush1.msra.mxu0 0.0
    %3064 = vmatprep.subr.mxu0 0.0
    %3065 = vmatpush1.msra.mxu0 0.0
    %3066 = vmatprep.subr.mxu0 0.0
    %3067 = vmatpush1.msra.mxu0 0.0
    %3068 = vmatprep.subr.mxu0 0.0
    %3069 = vmatpush1.msra.mxu0 0.0
    %3070 = vmatprep.subr.mxu0 0.0
    %3071 = vmatpush1.msra.mxu0 0.0
    %3072 = vmatprep.subr.mxu0 0.0
    %3073 = vmatpush1.msra.mxu0 0.0
    %3074 = vmatprep.subr.mxu0 0.0
    %3075 = vmatpush1.msra.mxu0 0.0
    %3076 = vmatprep.subr.mxu0 0.0
    %3077 = vmatpush1.msra.mxu0 0.0
    %3078 = vmatprep.subr.mxu0 0.0
    %3079 = vmatpush1.msra.mxu0 0.0
    %3080 = vmatprep.subr.mxu0 0.0
    %3081 = vmatpush1.msra.mxu0 0.0
    %3082 = vmatprep.subr.mxu0 0.0
    %3083 = vmatpush1.msra.mxu0 0.0
    %3084 = vmatprep.subr.mxu0 0.0
    %3085 = vmatpush1.msra.mxu0 0.0
    %3086 = vmatprep.subr.mxu0 0.0
    %3087 = vmatpush1.msra.mxu0 0.0
    %3088 = vmatprep.subr.mxu0 0.0
    %3089 = vmatpush1.msra.mxu0 0.0
    %3090 = vmatprep.subr.mxu0 0.0
    %3091 = vmatpush1.msra.mxu0 0.0
    %3092 = vmatprep.subr.mxu0 0.0
    %3093 = vmatpush1.msra.mxu0 0.0
    %3094 = vmatprep.subr.mxu0 0.0
    %3095 = vmatpush1.msra.mxu0 0.0
    %3096 = vmatprep.subr.mxu0 0.0
    %3097 = vmatpush1.msra.mxu0 0.0
    %3098 = vmatprep.subr.mxu0 0.0
    %3099 = vmatpush1.msra.mxu0 0.0
    %3100 = vmatprep.mubr.f32.mxu0 0.0
    %3101 = vmatmul.mubr.f32.gmra.mrb[0].mxu0 %v2111
    %v3102 = vpop.f32.mrb[0].mxu0
    %v3103 = vadd.f32 0.0, %v3102
    %v3104 = vpop.f32.mrb[0].mxu0
    %v3105 = vadd.f32 0.0, %v3104
    %3106 = vdwg.mxu0
    %3107 = vmatprep.subr.mxu0 %v1883
    %3108 = vmatpush1.msra.mxu0 %v1882
    %3109 = vmatprep.subr.mxu0 %v1915
    %3110 = vmatpush1.msra.mxu0 %v1914
    %3111 = vmatprep.subr.mxu0 %v1947
    %3112 = vmatpush1.msra.mxu0 %v1946
    %3113 = vmatprep.subr.mxu0 %v1979
    %3114 = vmatpush1.msra.mxu0 %v1978
    %3115 = vmatprep.subr.mxu0 %v2011
    %3116 = vmatpush1.msra.mxu0 %v2010
    %3117 = vmatprep.subr.mxu0 %v2043
    %3118 = vmatpush1.msra.mxu0 %v2042
    %3119 = vmatprep.subr.mxu0 %v2075
    %3120 = vmatpush1.msra.mxu0 %v2074
    %3121 = vmatprep.subr.mxu0 %v2107
    %3122 = vmatpush1.msra.mxu0 %v2106
    %3123 = vmatprep.subr.mxu0 0.0
    %3124 = vmatpush1.msra.mxu0 0.0
    %3125 = vmatprep.subr.mxu0 0.0
    %3126 = vmatpush1.msra.mxu0 0.0
    %3127 = vmatprep.subr.mxu0 0.0
    %3128 = vmatpush1.msra.mxu0 0.0
    %3129 = vmatprep.subr.mxu0 0.0
    %3130 = vmatpush1.msra.mxu0 0.0
    %3131 = vmatprep.subr.mxu0 0.0
    %3132 = vmatpush1.msra.mxu0 0.0
    %3133 = vmatprep.subr.mxu0 0.0
    %3134 = vmatpush1.msra.mxu0 0.0
    %3135 = vmatprep.subr.mxu0 0.0
    %3136 = vmatpush1.msra.mxu0 0.0
    %3137 = vmatprep.subr.mxu0 0.0
    %3138 = vmatpush1.msra.mxu0 0.0
    %3139 = vmatprep.subr.mxu0 0.0
    %3140 = vmatpush1.msra.mxu0 0.0
    %3141 = vmatprep.subr.mxu0 0.0
    %3142 = vmatpush1.msra.mxu0 0.0
    %3143 = vmatprep.subr.mxu0 0.0
    %3144 = vmatpush1.msra.mxu0 0.0
    %3145 = vmatprep.subr.mxu0 0.0
    %3146 = vmatpush1.msra.mxu0 0.0
    %3147 = vmatprep.subr.mxu0 0.0
    %3148 = vmatpush1.msra.mxu0 0.0
    %3149 = vmatprep.subr.mxu0 0.0
    %3150 = vmatpush1.msra.mxu0 0.0
    %3151 = vmatprep.subr.mxu0 0.0
    %3152 = vmatpush1.msra.mxu0 0.0
    %3153 = vmatprep.subr.mxu0 0.0
    %3154 = vmatpush1.msra.mxu0 0.0
    %3155 = vmatprep.subr.mxu0 0.0
    %3156 = vmatpush1.msra.mxu0 0.0
    %3157 = vmatprep.subr.mxu0 0.0
    %3158 = vmatpush1.msra.mxu0 0.0
    %3159 = vmatprep.subr.mxu0 0.0
    %3160 = vmatpush1.msra.mxu0 0.0
    %3161 = vmatprep.subr.mxu0 0.0
    %3162 = vmatpush1.msra.mxu0 0.0
    %3163 = vmatprep.subr.mxu0 0.0
    %3164 = vmatpush1.msra.mxu0 0.0
    %3165 = vmatprep.subr.mxu0 0.0
    %3166 = vmatpush1.msra.mxu0 0.0
    %3167 = vmatprep.subr.mxu0 0.0
    %3168 = vmatpush1.msra.mxu0 0.0
    %3169 = vmatprep.subr.mxu0 0.0
    %3170 = vmatpush1.msra.mxu0 0.0
    %3171 = vmatprep.mubr.f32.mxu0 0.0
    %3172 = vmatmul.mubr.f32.gmra.mrb[0].mxu0 %v2111
    %v3173 = vpop.f32.mrb[0].mxu0
    %v3174 = vadd.f32 0.0, %v3173
    %v3175 = vpop.f32.mrb[0].mxu0
    %v3176 = vadd.f32 0.0, %v3175
    %3177 = vdwg.mxu0
    %3178 = vmatprep.subr.mxu0 %v1885
    %3179 = vmatpush1.msra.mxu0 %v1884
    %3180 = vmatprep.subr.mxu0 %v1917
    %3181 = vmatpush1.msra.mxu0 %v1916
    %3182 = vmatprep.subr.mxu0 %v1949
    %3183 = vmatpush1.msra.mxu0 %v1948
    %3184 = vmatprep.subr.mxu0 %v1981
    %3185 = vmatpush1.msra.mxu0 %v1980
    %3186 = vmatprep.subr.mxu0 %v2013
    %3187 = vmatpush1.msra.mxu0 %v2012
    %3188 = vmatprep.subr.mxu0 %v2045
    %3189 = vmatpush1.msra.mxu0 %v2044
    %3190 = vmatprep.subr.mxu0 %v2077
    %3191 = vmatpush1.msra.mxu0 %v2076
    %3192 = vmatprep.subr.mxu0 %v2109
    %3193 = vmatpush1.msra.mxu0 %v2108
    %3194 = vmatprep.subr.mxu0 0.0
    %3195 = vmatpush1.msra.mxu0 0.0
    %3196 = vmatprep.subr.mxu0 0.0
    %3197 = vmatpush1.msra.mxu0 0.0
    %3198 = vmatprep.subr.mxu0 0.0
    %3199 = vmatpush1.msra.mxu0 0.0
    %3200 = vmatprep.subr.mxu0 0.0
    %3201 = vmatpush1.msra.mxu0 0.0
    %3202 = vmatprep.subr.mxu0 0.0
    %3203 = vmatpush1.msra.mxu0 0.0
    %3204 = vmatprep.subr.mxu0 0.0
    %3205 = vmatpush1.msra.mxu0 0.0
    %3206 = vmatprep.subr.mxu0 0.0
    %3207 = vmatpush1.msra.mxu0 0.0
    %3208 = vmatprep.subr.mxu0 0.0
    %3209 = vmatpush1.msra.mxu0 0.0
    %3210 = vmatprep.subr.mxu0 0.0
    %3211 = vmatpush1.msra.mxu0 0.0
    %3212 = vmatprep.subr.mxu0 0.0
    %3213 = vmatpush1.msra.mxu0 0.0
    %3214 = vmatprep.subr.mxu0 0.0
    %3215 = vmatpush1.msra.mxu0 0.0
    %3216 = vmatprep.subr.mxu0 0.0
    %3217 = vmatpush1.msra.mxu0 0.0
    %3218 = vmatprep.subr.mxu0 0.0
    %3219 = vmatpush1.msra.mxu0 0.0
    %3220 = vmatprep.subr.mxu0 0.0
    %3221 = vmatpush1.msra.mxu0 0.0
    %3222 = vmatprep.subr.mxu0 0.0
    %3223 = vmatpush1.msra.mxu0 0.0
    %3224 = vmatprep.subr.mxu0 0.0
    %3225 = vmatpush1.msra.mxu0 0.0
    %3226 = vmatprep.subr.mxu0 0.0
    %3227 = vmatpush1.msra.mxu0 0.0
    %3228 = vmatprep.subr.mxu0 0.0
    %3229 = vmatpush1.msra.mxu0 0.0
    %3230 = vmatprep.subr.mxu0 0.0
    %3231 = vmatpush1.msra.mxu0 0.0
    %3232 = vmatprep.subr.mxu0 0.0
    %3233 = vmatpush1.msra.mxu0 0.0
    %3234 = vmatprep.subr.mxu0 0.0
    %3235 = vmatpush1.msra.mxu0 0.0
    %3236 = vmatprep.subr.mxu0 0.0
    %3237 = vmatpush1.msra.mxu0 0.0
    %3238 = vmatprep.subr.mxu0 0.0
    %3239 = vmatpush1.msra.mxu0 0.0
    %3240 = vmatprep.subr.mxu0 0.0
    %3241 = vmatpush1.msra.mxu0 0.0
    %3242 = vmatprep.mubr.f32.mxu0 0.0
    %3243 = vmatmul.mubr.f32.gmra.mrb[0].mxu0 %v2111
    %v3244 = vpop.f32.mrb[0].mxu0
    %v3245 = vadd.f32 0.0, %v3244
    %v3246 = vpop.f32.mrb[0].mxu0
    %v3247 = vadd.f32 0.0, %v3246
    %3248 = vdwg.mxu0
    %v3249 = vmul.f32 %v21, %v2180
    %v3250 = vmul.f32 %v22, %v2182
    %v3251 = vmul.f32 %v23, %v2251
    %v3252 = vmul.f32 %v24, %v2253
    %v3253 = vmul.f32 %v25, %v2322
    %v3254 = vmul.f32 %v26, %v2324
    %v3255 = vmul.f32 %v27, %v2393
    %v3256 = vmul.f32 %v28, %v2395
    %v3257 = vmul.f32 %v29, %v2464
    %v3258 = vmul.f32 %v30, %v2466
    %v3259 = vmul.f32 %v31, %v2535
    %v3260 = vmul.f32 %v32, %v2537
    %v3261 = vmul.f32 %v33, %v2606
    %v3262 = vmul.f32 %v34, %v2608
    %v3263 = vmul.f32 %v35, %v2677
    %v3264 = vmul.f32 %v36, %v2679
    %v3265 = vmul.f32 %v37, %v2748
    %v3266 = vmul.f32 %v38, %v2750
    %v3267 = vmul.f32 %v39, %v2819
    %v3268 = vmul.f32 %v40, %v2821
    %v3269 = vmul.f32 %v41, %v2890
    %v3270 = vmul.f32 %v42, %v2892
    %v3271 = vmul.f32 %v43, %v2961
    %v3272 = vmul.f32 %v44, %v2963
    %v3273 = vmul.f32 %v45, %v3032
    %v3274 = vmul.f32 %v46, %v3034
    %v3275 = vmul.f32 %v47, %v3103
    %v3276 = vmul.f32 %v48, %v3105
    %v3277 = vmul.f32 %v49, %v3174
    %v3278 = vmul.f32 %v50, %v3176
    %v3279 = vmul.f32 %v51, %v3245
    %v3280 = vmul.f32 %v52, %v3247
    %3281 = vst [vmem:[#allocation2] sm:$0xff] %v3249
    %3282 = vst [vmem:[#allocation2 + $0x8] sm:$0xff] %v3250
    %3283 = vst [vmem:[#allocation2 + $0x10] sm:$0xff] %v3251
    %3284 = vst [vmem:[#allocation2 + $0x18] sm:$0xff] %v3252
    %3285 = vst [vmem:[#allocation2 + $0x20] sm:$0xff] %v3253
    %3286 = vst [vmem:[#allocation2 + $0x28] sm:$0xff] %v3254
    %3287 = vst [vmem:[#allocation2 + $0x30] sm:$0xff] %v3255
    %3288 = vst [vmem:[#allocation2 + $0x38] sm:$0xff] %v3256
    %3289 = vst [vmem:[#allocation2 + $0x40] sm:$0xff] %v3257
    %3290 = vst [vmem:[#allocation2 + $0x48] sm:$0xff] %v3258
    %3291 = vst [vmem:[#allocation2 + $0x50] sm:$0xff] %v3259
    %3292 = vst [vmem:[#allocation2 + $0x58] sm:$0xff] %v3260
    %3293 = vst [vmem:[#allocation2 + $0x60] sm:$0xff] %v3261
    %3294 = vst [vmem:[#allocation2 + $0x68] sm:$0xff] %v3262
    %3295 = vst [vmem:[#allocation2 + $0x70] sm:$0xff] %v3263
    %3296 = vst [vmem:[#allocation2 + $0x78] sm:$0xff] %v3264
    %3297 = vst [vmem:[#allocation2 + $0x80] sm:$0xff] %v3265
    %3298 = vst [vmem:[#allocation2 + $0x88] sm:$0xff] %v3266
    %3299 = vst [vmem:[#allocation2 + $0x90] sm:$0xff] %v3267
    %3300 = vst [vmem:[#allocation2 + $0x98] sm:$0xff] %v3268
    %3301 = vst [vmem:[#allocation2 + $0xa0] sm:$0xff] %v3269
    %3302 = vst [vmem:[#allocation2 + $0xa8] sm:$0xff] %v3270
    %3303 = vst [vmem:[#allocation2 + $0xb0] sm:$0xff] %v3271
    %3304 = vst [vmem:[#allocation2 + $0xb8] sm:$0xff] %v3272
    %3305 = vst [vmem:[#allocation2 + $0xc0] sm:$0xff] %v3273
    %3306 = vst [vmem:[#allocation2 + $0xc8] sm:$0xff] %v3274
    %3307 = vst [vmem:[#allocation2 + $0xd0] sm:$0xff] %v3275
    %3308 = vst [vmem:[#allocation2 + $0xd8] sm:$0xff] %v3276
    %3309 = vst [vmem:[#allocation2 + $0xe0] sm:$0xff] %v3277
    %3310 = vst [vmem:[#allocation2 + $0xe8] sm:$0xff] %v3278
    %3311 = vst [vmem:[#allocation2 + $0xf0] sm:$0xff] %v3279
    %3312 = vst [vmem:[#allocation2 + $0xf8] sm:$0xff] %v3280
    // Predicated region
    $region22: #{tpu_custom_call.1} parent=1 // pred_check
      _
    $region23: #{tpu_custom_call.1} parent=1 // pred_check_branch
      %3314 = sbr.rel (0) target = $region25
    $region24: #{tpu_custom_call.1} parent=1 // pred_region
      %s3316 = ssub.s32 4096, 4096
      %3317 = vsyncadd [#allocation3], %s3316
      %s3319 = sshll.u32 [#allocation2], 4
      %s3320 = int_to_ptr.vmem [resolvable:$true] %s3319
      %3322 = dma.vmem_to_hbm [thread:$0]  %s3320, 4096, %s5, [#allocation3]
    $region25: #{tpu_custom_call.1} parent=1 // pred_fallthru
      _
    // Predicated region
    $region26: #{tpu_custom_call.1} parent=1 // pred_check
      _
    $region27: #{tpu_custom_call.1} parent=1 // pred_check_branch
      %3324 = sbr.rel (0) target = $region29
    $region28: #{tpu_custom_call.1} parent=1 // pred_region
      %3325 = dma.done [#allocation3], 4096
    $region29: #{tpu_custom_call.1} parent=1 // pred_fallthru
      _
    %3326 = vsyncpa [#allocation3], 1

</llo_original>
